<compile_context>
chip_gen: v7x
topology: tpu7x:2x2x1
jax: 0.10.0
libtpu: 0.0.40
codegen_flags: <defaults>
</compile_context>

<pallas_src>
import math

import jax
import jax.numpy as jnp
from jax.experimental import pallas as pl
from jax.experimental.pallas import tpu as pltpu

_LN_EPS = 1e-5


def _erf(x):
    # Abramowitz & Stegun 7.1.26, |error| < 1.5e-7 — only exp / mul / add / div,
    # all of which lower cleanly on the TPU VPU/EUP.
    a1, a2, a3, a4, a5 = (0.254829592, -0.284496736, 1.421413741,
                          -1.453152027, 1.061405429)
    p = 0.3275911
    sgn = jnp.where(x >= 0.0, 1.0, -1.0)
    ax = jnp.abs(x)
    t = 1.0 / (1.0 + p * ax)
    poly = ((((a5 * t + a4) * t + a3) * t + a2) * t + a1) * t
    return sgn * (1.0 - poly * jnp.exp(-ax * ax))


def _gelu_exact(x):
    return 0.5 * x * (1.0 + _erf(x * (1.0 / math.sqrt(2.0))))


def _layer_norm(x, w, b):
    mu = jnp.mean(x, axis=-1, keepdims=True)
    var = jnp.mean((x - mu) * (x - mu), axis=-1, keepdims=True)
    return (x - mu) * jax.lax.rsqrt(var + _LN_EPS) * w + b


def _make_block_kernel(num_head: int, head_dim: int):
    scale = 1.0 / math.sqrt(head_dim)

    def kernel(x_ref,
               ln1w_ref, ln1b_ref,
               wq_ref, bq_ref, wk_ref, bk_ref, wv_ref, bv_ref,
               wp_ref, bp_ref,
               ln2w_ref, ln2b_ref,
               w1_ref, b1_ref, w2_ref, b2_ref,
               o_ref):
        f32 = jnp.float32
        x = x_ref[0].astype(f32)                                    # (T, C)

        # ----- attention branch ------------------------------------------
        h = _layer_norm(x, ln1w_ref[...].astype(f32), ln1b_ref[...].astype(f32))

        acc = None
        for hh in range(num_head):                                  # static unroll
            qh = jnp.dot(h, wq_ref[hh].astype(f32),
                         preferred_element_type=f32) + bq_ref[hh].astype(f32)
            kh = jnp.dot(h, wk_ref[hh].astype(f32),
                         preferred_element_type=f32) + bk_ref[hh].astype(f32)
            vh = jnp.dot(h, wv_ref[hh].astype(f32),
                         preferred_element_type=f32) + bv_ref[hh].astype(f32)

            att = jnp.dot(qh, kh.T, preferred_element_type=f32) * scale  # (T, T)
            att = att - jnp.max(att, axis=-1, keepdims=True)
            p = jnp.exp(att)
            p = p * pl.reciprocal(jnp.sum(p, axis=-1, keepdims=True))
            # attn_drop: identity (eval mode)
            yh = jnp.dot(p, vh, preferred_element_type=f32)              # (T, Dh)
            contrib = jnp.dot(yh, wp_ref[hh].astype(f32),
                              preferred_element_type=f32)                # (T, C)
            acc = contrib if acc is None else acc + contrib

        # resid_drop: identity (eval mode)
        x1 = x + acc + bp_ref[...].astype(f32)

        # ----- MLP branch --------------------------------------------------
        h2 = _layer_norm(x1, ln2w_ref[...].astype(f32), ln2b_ref[...].astype(f32))
        z = jnp.dot(h2, w1_ref[...].astype(f32),
                    preferred_element_type=f32) + b1_ref[...].astype(f32)
        g = _gelu_exact(z)
        mlp = jnp.dot(g, w2_ref[...].astype(f32),
                      preferred_element_type=f32) + b2_ref[...].astype(f32)

        o_ref[0] = (x1 + mlp).astype(o_ref.dtype)

    return kernel


def transformer_block(x, params, *, num_head):
    """Block forward. Weight matrices in `params` are (in, out) oriented."""
    B, T, C = x.shape
    assert C % num_head == 0
    Dh = C // num_head

    def row(v):                        # (n,) -> (1, n) lane-dense vector
        return v.reshape(1, -1)

    def split_heads(w, b):             # (C,C)->(H,C,Dh), (C,)->(H,1,Dh)
        wh = jnp.transpose(w.reshape(C, num_head, Dh), (1, 0, 2))
        bh = b.reshape(num_head, 1, Dh)
        return wh, bh

    wq, bq = split_heads(params["wq"], params["bq"])
    wk, bk = split_heads(params["wk"], params["bk"])
    wv, bv = split_heads(params["wv"], params["bv"])
    wp = params["wp"].reshape(num_head, Dh, C)        # head hh -> rows hh*Dh:(hh+1)*Dh
    bp = row(params["bp"])

    inputs = (
        x,
        row(params["ln1_w"]), row(params["ln1_b"]),
        wq, bq, wk, bk, wv, bv,
        wp, bp,
        row(params["ln2_w"]), row(params["ln2_b"]),
        params["w1"], row(params["b1"]),
        params["w2"], row(params["b2"]),
    )

    def full_spec(a):
        nd = a.ndim
        return pl.BlockSpec(a.shape, lambda b, _nd=nd: (0,) * _nd)

    in_specs = [pl.BlockSpec((1, T, C), lambda b: (b, 0, 0))]
    in_specs += [full_spec(a) for a in inputs[1:]]

    kernel = _make_block_kernel(num_head, Dh)

    return pl.pallas_call(
        kernel,
        out_shape=jax.ShapeDtypeStruct((B, T, C), x.dtype),
        grid_spec=pltpu.PrefetchScalarGridSpec(
            num_scalar_prefetch=0,
            grid=(B,),
            in_specs=in_specs,
            out_specs=pl.BlockSpec((1, T, C), lambda b: (b, 0, 0)),
        ),
        compiler_params=pltpu.CompilerParams(
            dimension_semantics=("parallel",),
        ),
    )(*inputs)


def reference_block(x, params, *, num_head):
    """Pure-JAX reference matching the PyTorch Block forward (eval mode)."""
    B, T, C = x.shape
    Dh = C // num_head

    def ln(v, w, b):
        mu = jnp.mean(v, axis=-1, keepdims=True)
        var = jnp.mean((v - mu) ** 2, axis=-1, keepdims=True)
        return (v - mu) / jnp.sqrt(var + _LN_EPS) * w + b

    h = ln(x, params["ln1_w"], params["ln1_b"])
    q = h @ params["wq"] + params["bq"]
    k = h @ params["wk"] + params["bk"]
    v = h @ params["wv"] + params["bv"]
    q = q.reshape(B, T, num_head, Dh).transpose(0, 2, 1, 3)
    k = k.reshape(B, T, num_head, Dh).transpose(0, 2, 1, 3)
    v = v.reshape(B, T, num_head, Dh).transpose(0, 2, 1, 3)
    att = (q @ k.transpose(0, 1, 3, 2)) * (1.0 / math.sqrt(Dh))
    att = jax.nn.softmax(att, axis=-1)
    y = (att @ v).transpose(0, 2, 1, 3).reshape(B, T, C)
    x1 = x + (y @ params["wp"] + params["bp"])
    h2 = ln(x1, params["ln2_w"], params["ln2_b"])
    z = h2 @ params["w1"] + params["b1"]
    g = jax.nn.gelu(z, approximate=False)
    return x1 + (g @ params["w2"] + params["b2"])


if __name__ == "__main__":
    B, T, C, H = 2, 8, 32, 4          # batch=2, seq=8, feature_dim=32, num_head=4

    key = jax.random.PRNGKey(0)
    ks = jax.random.split(key, 18)

    def linear(kw, kb, fan_in, fan_out):
        bound = 1.0 / math.sqrt(fan_in)
        w = jax.random.uniform(kw, (fan_in, fan_out), jnp.float32, -bound, bound)
        b = jax.random.uniform(kb, (fan_out,), jnp.float32, -bound, bound)
        return w, b

    wq, bq = linear(ks[0], ks[1], C, C)
    wk, bk = linear(ks[2], ks[3], C, C)
    wv, bv = linear(ks[4], ks[5], C, C)
    wp, bp = linear(ks[6], ks[7], C, C)
    w1, b1 = linear(ks[8], ks[9], C, 4 * C)
    w2, b2 = linear(ks[10], ks[11], 4 * C, C)

    params = dict(
        ln1_w=1.0 + 0.1 * jax.random.normal(ks[12], (C,), jnp.float32),
        ln1_b=0.1 * jax.random.normal(ks[13], (C,), jnp.float32),
        ln2_w=1.0 + 0.1 * jax.random.normal(ks[14], (C,), jnp.float32),
        ln2_b=0.1 * jax.random.normal(ks[15], (C,), jnp.float32),
        wq=wq, bq=bq, wk=wk, bk=bk, wv=wv, bv=bv, wp=wp, bp=bp,
        w1=w1, b1=b1, w2=w2, b2=b2,
    )

    x = jax.random.normal(ks[16], (B, T, C), jnp.float32)

    y = transformer_block(x, params, num_head=H)
    jax.block_until_ready(y)

    y_ref = reference_block(x, params, num_head=H)
    assert y.shape == x.shape and y.dtype == x.dtype
    err = float(jnp.max(jnp.abs(y - y_ref)))
    assert err < 2e-4, f"max abs err {err}"

    # TODO(synk): dropout (attn_pdrop / resid_pdrop) is implemented as identity
    # (eval-mode forward); training-mode RNG dropout is not kernelized.
    print("KERNEL_OK")
</pallas_src>

<mosaic_0001>
module attributes {stable_mosaic.version = 11 : i64} {
  func.func @kernel(%arg0: i32, %arg1: memref<1x8x32xf32, #tpu.memory_space<vmem>>, %arg2: memref<1x32xf32, #tpu.memory_space<vmem>>, %arg3: memref<1x32xf32, #tpu.memory_space<vmem>>, %arg4: memref<4x32x8xf32, #tpu.memory_space<vmem>>, %arg5: memref<4x1x8xf32, #tpu.memory_space<vmem>>, %arg6: memref<4x32x8xf32, #tpu.memory_space<vmem>>, %arg7: memref<4x1x8xf32, #tpu.memory_space<vmem>>, %arg8: memref<4x32x8xf32, #tpu.memory_space<vmem>>, %arg9: memref<4x1x8xf32, #tpu.memory_space<vmem>>, %arg10: memref<4x8x32xf32, #tpu.memory_space<vmem>>, %arg11: memref<1x32xf32, #tpu.memory_space<vmem>>, %arg12: memref<1x32xf32, #tpu.memory_space<vmem>>, %arg13: memref<1x32xf32, #tpu.memory_space<vmem>>, %arg14: memref<32x128xf32, #tpu.memory_space<vmem>>, %arg15: memref<1x128xf32, #tpu.memory_space<vmem>>, %arg16: memref<128x32xf32, #tpu.memory_space<vmem>>, %arg17: memref<1x32xf32, #tpu.memory_space<vmem>>, %arg18: memref<1x8x32xf32, #tpu.memory_space<vmem>>) attributes {dimension_semantics = [#tpu.dimension_semantics<parallel>], iteration_bounds = array<i64: 2>, scalar_prefetch = 0 : i64, scratch_operands = 0 : i64, tpu.core_type = #tpu.core_type<tc>, window_params = [{transform_indices = @transform_0, window_bounds = array<i64: 1, 8, 32>}, {pipeline_mode = #tpu.pipeline_mode<synchronous>, transform_indices = @transform_1, window_bounds = array<i64: 1, 32>}, {pipeline_mode = #tpu.pipeline_mode<synchronous>, transform_indices = @transform_2, window_bounds = array<i64: 1, 32>}, {pipeline_mode = #tpu.pipeline_mode<synchronous>, transform_indices = @transform_3, window_bounds = array<i64: 4, 32, 8>}, {pipeline_mode = #tpu.pipeline_mode<synchronous>, transform_indices = @transform_4, window_bounds = array<i64: 4, 1, 8>}, {pipeline_mode = #tpu.pipeline_mode<synchronous>, transform_indices = @transform_5, window_bounds = array<i64: 4, 32, 8>}, {pipeline_mode = #tpu.pipeline_mode<synchronous>, transform_indices = @transform_6, window_bounds = array<i64: 4, 1, 8>}, {pipeline_mode = #tpu.pipeline_mode<synchronous>, transform_indices = @transform_7, window_bounds = array<i64: 4, 32, 8>}, {pipeline_mode = #tpu.pipeline_mode<synchronous>, transform_indices = @transform_8, window_bounds = array<i64: 4, 1, 8>}, {pipeline_mode = #tpu.pipeline_mode<synchronous>, transform_indices = @transform_9, window_bounds = array<i64: 4, 8, 32>}, {pipeline_mode = #tpu.pipeline_mode<synchronous>, transform_indices = @transform_10, window_bounds = array<i64: 1, 32>}, {pipeline_mode = #tpu.pipeline_mode<synchronous>, transform_indices = @transform_11, window_bounds = array<i64: 1, 32>}, {pipeline_mode = #tpu.pipeline_mode<synchronous>, transform_indices = @transform_12, window_bounds = array<i64: 1, 32>}, {pipeline_mode = #tpu.pipeline_mode<synchronous>, transform_indices = @transform_13, window_bounds = array<i64: 32, 128>}, {pipeline_mode = #tpu.pipeline_mode<synchronous>, transform_indices = @transform_14, window_bounds = array<i64: 1, 128>}, {pipeline_mode = #tpu.pipeline_mode<synchronous>, transform_indices = @transform_15, window_bounds = array<i64: 128, 32>}, {pipeline_mode = #tpu.pipeline_mode<synchronous>, transform_indices = @transform_16, window_bounds = array<i64: 1, 32>}, {transform_indices = @transform_17, window_bounds = array<i64: 1, 8, 32>}]} {
    %c0 = arith.constant 0 : index
    %c0_0 = arith.constant 0 : index
    %c0_1 = arith.constant 0 : index
    %0 = vector.load %arg1[%c0, %c0_0, %c0_1] : memref<1x8x32xf32, #tpu.memory_space<vmem>>, vector<1x8x32xf32>
    %1 = vector.shape_cast %0 : vector<1x8x32xf32> to vector<8x32xf32>
    %c0_2 = arith.constant 0 : index
    %c0_3 = arith.constant 0 : index
    %2 = vector.load %arg2[%c0_2, %c0_3] : memref<1x32xf32, #tpu.memory_space<vmem>>, vector<1x32xf32>
    %c0_4 = arith.constant 0 : index
    %c0_5 = arith.constant 0 : index
    %3 = vector.load %arg3[%c0_4, %c0_5] : memref<1x32xf32, #tpu.memory_space<vmem>>, vector<1x32xf32>
    %cst = arith.constant dense<0.000000e+00> : vector<8xf32>
    %4 = vector.multi_reduction <add>, %1, %cst [1] : vector<8x32xf32> to vector<8xf32>
    %5 = vector.shape_cast %4 : vector<8xf32> to vector<8x1xf32>
    %cst_6 = arith.constant 3.200000e+01 : f32
    %6 = vector.broadcast %cst_6 : f32 to vector<8x1xf32>
    %7 = arith.divf %5, %6 : vector<8x1xf32>
    %8 = vector.broadcast %7 : vector<8x1xf32> to vector<8x32xf32>
    %9 = arith.subf %1, %8 : vector<8x32xf32>
    %10 = vector.broadcast %7 : vector<8x1xf32> to vector<8x32xf32>
    %11 = arith.subf %1, %10 : vector<8x32xf32>
    %12 = arith.mulf %9, %11 : vector<8x32xf32>
    %cst_7 = arith.constant dense<0.000000e+00> : vector<8xf32>
    %13 = vector.multi_reduction <add>, %12, %cst_7 [1] : vector<8x32xf32> to vector<8xf32>
    %14 = vector.shape_cast %13 : vector<8xf32> to vector<8x1xf32>
    %cst_8 = arith.constant 3.200000e+01 : f32
    %15 = vector.broadcast %cst_8 : f32 to vector<8x1xf32>
    %16 = arith.divf %14, %15 : vector<8x1xf32>
    %17 = vector.broadcast %7 : vector<8x1xf32> to vector<8x32xf32>
    %18 = arith.subf %1, %17 : vector<8x32xf32>
    %cst_9 = arith.constant 9.99999974E-6 : f32
    %19 = vector.broadcast %cst_9 : f32 to vector<8x1xf32>
    %20 = arith.addf %16, %19 : vector<8x1xf32>
    %21 = math.rsqrt %20 : vector<8x1xf32>
    %22 = vector.broadcast %21 : vector<8x1xf32> to vector<8x32xf32>
    %23 = arith.mulf %18, %22 : vector<8x32xf32>
    %24 = vector.broadcast %2 : vector<1x32xf32> to vector<8x32xf32>
    %25 = arith.mulf %23, %24 : vector<8x32xf32>
    %26 = vector.broadcast %3 : vector<1x32xf32> to vector<8x32xf32>
    %27 = arith.addf %25, %26 : vector<8x32xf32>
    %c0_10 = arith.constant 0 : index
    %c0_11 = arith.constant 0 : index
    %c0_12 = arith.constant 0 : index
    %28 = vector.load %arg4[%c0_10, %c0_11, %c0_12] : memref<4x32x8xf32, #tpu.memory_space<vmem>>, vector<1x32x8xf32>
    %29 = vector.shape_cast %28 : vector<1x32x8xf32> to vector<32x8xf32>
    %cst_13 = arith.constant dense<0.000000e+00> : vector<8x8xf32>
    %30 = tpu.matmul %27, %29, %cst_13 {dimension_numbers = #tpu.dot_dimension_numbers<[1], [0], [0], [1], [0, 0, 1, 1], [], []>} : vector<8x32xf32>, vector<32x8xf32>, vector<8x8xf32> -> vector<8x8xf32>
    %c0_14 = arith.constant 0 : index
    %c0_15 = arith.constant 0 : index
    %c0_16 = arith.constant 0 : index
    %31 = vector.load %arg5[%c0_14, %c0_15, %c0_16] : memref<4x1x8xf32, #tpu.memory_space<vmem>>, vector<1x1x8xf32>
    %32 = vector.shape_cast %31 : vector<1x1x8xf32> to vector<1x8xf32>
    %33 = vector.broadcast %32 : vector<1x8xf32> to vector<8x8xf32>
    %34 = arith.addf %30, %33 : vector<8x8xf32>
    %c0_17 = arith.constant 0 : index
    %c0_18 = arith.constant 0 : index
    %c0_19 = arith.constant 0 : index
    %35 = vector.load %arg6[%c0_17, %c0_18, %c0_19] : memref<4x32x8xf32, #tpu.memory_space<vmem>>, vector<1x32x8xf32>
    %36 = vector.shape_cast %35 : vector<1x32x8xf32> to vector<32x8xf32>
    %cst_20 = arith.constant dense<0.000000e+00> : vector<8x8xf32>
    %37 = tpu.matmul %27, %36, %cst_20 {dimension_numbers = #tpu.dot_dimension_numbers<[1], [0], [0], [1], [0, 0, 1, 1], [], []>} : vector<8x32xf32>, vector<32x8xf32>, vector<8x8xf32> -> vector<8x8xf32>
    %c0_21 = arith.constant 0 : index
    %c0_22 = arith.constant 0 : index
    %c0_23 = arith.constant 0 : index
    %38 = vector.load %arg7[%c0_21, %c0_22, %c0_23] : memref<4x1x8xf32, #tpu.memory_space<vmem>>, vector<1x1x8xf32>
    %39 = vector.shape_cast %38 : vector<1x1x8xf32> to vector<1x8xf32>
    %40 = vector.broadcast %39 : vector<1x8xf32> to vector<8x8xf32>
    %41 = arith.addf %37, %40 : vector<8x8xf32>
    %c0_24 = arith.constant 0 : index
    %c0_25 = arith.constant 0 : index
    %c0_26 = arith.constant 0 : index
    %42 = vector.load %arg8[%c0_24, %c0_25, %c0_26] : memref<4x32x8xf32, #tpu.memory_space<vmem>>, vector<1x32x8xf32>
    %43 = vector.shape_cast %42 : vector<1x32x8xf32> to vector<32x8xf32>
    %cst_27 = arith.constant dense<0.000000e+00> : vector<8x8xf32>
    %44 = tpu.matmul %27, %43, %cst_27 {dimension_numbers = #tpu.dot_dimension_numbers<[1], [0], [0], [1], [0, 0, 1, 1], [], []>} : vector<8x32xf32>, vector<32x8xf32>, vector<8x8xf32> -> vector<8x8xf32>
    %c0_28 = arith.constant 0 : index
    %c0_29 = arith.constant 0 : index
    %c0_30 = arith.constant 0 : index
    %45 = vector.load %arg9[%c0_28, %c0_29, %c0_30] : memref<4x1x8xf32, #tpu.memory_space<vmem>>, vector<1x1x8xf32>
    %46 = vector.shape_cast %45 : vector<1x1x8xf32> to vector<1x8xf32>
    %47 = vector.broadcast %46 : vector<1x8xf32> to vector<8x8xf32>
    %48 = arith.addf %44, %47 : vector<8x8xf32>
    %49 = tpu.transpose %41, [1, 0] : vector<8x8xf32> -> vector<8x8xf32>
    %cst_31 = arith.constant dense<0.000000e+00> : vector<8x8xf32>
    %50 = tpu.matmul %34, %49, %cst_31 {dimension_numbers = #tpu.dot_dimension_numbers<[1], [0], [0], [1], [0, 0, 1, 1], [], []>} : vector<8x8xf32>, vector<8x8xf32>, vector<8x8xf32> -> vector<8x8xf32>
    %cst_32 = arith.constant 0.353553385 : f32
    %51 = vector.broadcast %cst_32 : f32 to vector<8x8xf32>
    %52 = arith.mulf %50, %51 : vector<8x8xf32>
    %cst_33 = arith.constant dense<0xFF800000> : vector<8xf32>
    %53 = vector.multi_reduction <maximumf>, %52, %cst_33 [1] : vector<8x8xf32> to vector<8xf32>
    %54 = vector.shape_cast %53 : vector<8xf32> to vector<8x1xf32>
    %55 = vector.broadcast %54 : vector<8x1xf32> to vector<8x8xf32>
    %56 = arith.subf %52, %55 : vector<8x8xf32>
    %57 = math.exp %56 : vector<8x8xf32>
    %cst_34 = arith.constant dense<0.000000e+00> : vector<8xf32>
    %58 = vector.multi_reduction <add>, %57, %cst_34 [1] : vector<8x8xf32> to vector<8xf32>
    %59 = vector.shape_cast %58 : vector<8xf32> to vector<8x1xf32>
    %60 = tpu.reciprocal %59 : vector<8x1xf32> -> vector<8x1xf32>
    %61 = vector.broadcast %60 : vector<8x1xf32> to vector<8x8xf32>
    %62 = arith.mulf %57, %61 : vector<8x8xf32>
    %cst_35 = arith.constant dense<0.000000e+00> : vector<8x8xf32>
    %63 = tpu.matmul %62, %48, %cst_35 {dimension_numbers = #tpu.dot_dimension_numbers<[1], [0], [0], [1], [0, 0, 1, 1], [], []>} : vector<8x8xf32>, vector<8x8xf32>, vector<8x8xf32> -> vector<8x8xf32>
    %c0_36 = arith.constant 0 : index
    %c0_37 = arith.constant 0 : index
    %c0_38 = arith.constant 0 : index
    %64 = vector.load %arg10[%c0_36, %c0_37, %c0_38] : memref<4x8x32xf32, #tpu.memory_space<vmem>>, vector<1x8x32xf32>
    %65 = vector.shape_cast %64 : vector<1x8x32xf32> to vector<8x32xf32>
    %cst_39 = arith.constant dense<0.000000e+00> : vector<8x32xf32>
    %66 = tpu.matmul %63, %65, %cst_39 {dimension_numbers = #tpu.dot_dimension_numbers<[1], [0], [0], [1], [0, 0, 1, 1], [], []>} : vector<8x8xf32>, vector<8x32xf32>, vector<8x32xf32> -> vector<8x32xf32>
    %c1 = arith.constant 1 : index
    %c0_40 = arith.constant 0 : index
    %c0_41 = arith.constant 0 : index
    %67 = vector.load %arg4[%c1, %c0_40, %c0_41] : memref<4x32x8xf32, #tpu.memory_space<vmem>>, vector<1x32x8xf32>
    %68 = vector.shape_cast %67 : vector<1x32x8xf32> to vector<32x8xf32>
    %cst_42 = arith.constant dense<0.000000e+00> : vector<8x8xf32>
    %69 = tpu.matmul %27, %68, %cst_42 {dimension_numbers = #tpu.dot_dimension_numbers<[1], [0], [0], [1], [0, 0, 1, 1], [], []>} : vector<8x32xf32>, vector<32x8xf32>, vector<8x8xf32> -> vector<8x8xf32>
    %c1_43 = arith.constant 1 : index
    %c0_44 = arith.constant 0 : index
    %c0_45 = arith.constant 0 : index
    %70 = vector.load %arg5[%c1_43, %c0_44, %c0_45] : memref<4x1x8xf32, #tpu.memory_space<vmem>>, vector<1x1x8xf32>
    %71 = vector.shape_cast %70 : vector<1x1x8xf32> to vector<1x8xf32>
    %72 = vector.broadcast %71 : vector<1x8xf32> to vector<8x8xf32>
    %73 = arith.addf %69, %72 : vector<8x8xf32>
    %c1_46 = arith.constant 1 : index
    %c0_47 = arith.constant 0 : index
    %c0_48 = arith.constant 0 : index
    %74 = vector.load %arg6[%c1_46, %c0_47, %c0_48] : memref<4x32x8xf32, #tpu.memory_space<vmem>>, vector<1x32x8xf32>
    %75 = vector.shape_cast %74 : vector<1x32x8xf32> to vector<32x8xf32>
    %cst_49 = arith.constant dense<0.000000e+00> : vector<8x8xf32>
    %76 = tpu.matmul %27, %75, %cst_49 {dimension_numbers = #tpu.dot_dimension_numbers<[1], [0], [0], [1], [0, 0, 1, 1], [], []>} : vector<8x32xf32>, vector<32x8xf32>, vector<8x8xf32> -> vector<8x8xf32>
    %c1_50 = arith.constant 1 : index
    %c0_51 = arith.constant 0 : index
    %c0_52 = arith.constant 0 : index
    %77 = vector.load %arg7[%c1_50, %c0_51, %c0_52] : memref<4x1x8xf32, #tpu.memory_space<vmem>>, vector<1x1x8xf32>
    %78 = vector.shape_cast %77 : vector<1x1x8xf32> to vector<1x8xf32>
    %79 = vector.broadcast %78 : vector<1x8xf32> to vector<8x8xf32>
    %80 = arith.addf %76, %79 : vector<8x8xf32>
    %c1_53 = arith.constant 1 : index
    %c0_54 = arith.constant 0 : index
    %c0_55 = arith.constant 0 : index
    %81 = vector.load %arg8[%c1_53, %c0_54, %c0_55] : memref<4x32x8xf32, #tpu.memory_space<vmem>>, vector<1x32x8xf32>
    %82 = vector.shape_cast %81 : vector<1x32x8xf32> to vector<32x8xf32>
    %cst_56 = arith.constant dense<0.000000e+00> : vector<8x8xf32>
    %83 = tpu.matmul %27, %82, %cst_56 {dimension_numbers = #tpu.dot_dimension_numbers<[1], [0], [0], [1], [0, 0, 1, 1], [], []>} : vector<8x32xf32>, vector<32x8xf32>, vector<8x8xf32> -> vector<8x8xf32>
    %c1_57 = arith.constant 1 : index
    %c0_58 = arith.constant 0 : index
    %c0_59 = arith.constant 0 : index
    %84 = vector.load %arg9[%c1_57, %c0_58, %c0_59] : memref<4x1x8xf32, #tpu.memory_space<vmem>>, vector<1x1x8xf32>
    %85 = vector.shape_cast %84 : vector<1x1x8xf32> to vector<1x8xf32>
    %86 = vector.broadcast %85 : vector<1x8xf32> to vector<8x8xf32>
    %87 = arith.addf %83, %86 : vector<8x8xf32>
    %88 = tpu.transpose %80, [1, 0] : vector<8x8xf32> -> vector<8x8xf32>
    %cst_60 = arith.constant dense<0.000000e+00> : vector<8x8xf32>
    %89 = tpu.matmul %73, %88, %cst_60 {dimension_numbers = #tpu.dot_dimension_numbers<[1], [0], [0], [1], [0, 0, 1, 1], [], []>} : vector<8x8xf32>, vector<8x8xf32>, vector<8x8xf32> -> vector<8x8xf32>
    %cst_61 = arith.constant 0.353553385 : f32
    %90 = vector.broadcast %cst_61 : f32 to vector<8x8xf32>
    %91 = arith.mulf %89, %90 : vector<8x8xf32>
    %cst_62 = arith.constant dense<0xFF800000> : vector<8xf32>
    %92 = vector.multi_reduction <maximumf>, %91, %cst_62 [1] : vector<8x8xf32> to vector<8xf32>
    %93 = vector.shape_cast %92 : vector<8xf32> to vector<8x1xf32>
    %94 = vector.broadcast %93 : vector<8x1xf32> to vector<8x8xf32>
    %95 = arith.subf %91, %94 : vector<8x8xf32>
    %96 = math.exp %95 : vector<8x8xf32>
    %cst_63 = arith.constant dense<0.000000e+00> : vector<8xf32>
    %97 = vector.multi_reduction <add>, %96, %cst_63 [1] : vector<8x8xf32> to vector<8xf32>
    %98 = vector.shape_cast %97 : vector<8xf32> to vector<8x1xf32>
    %99 = tpu.reciprocal %98 : vector<8x1xf32> -> vector<8x1xf32>
    %100 = vector.broadcast %99 : vector<8x1xf32> to vector<8x8xf32>
    %101 = arith.mulf %96, %100 : vector<8x8xf32>
    %cst_64 = arith.constant dense<0.000000e+00> : vector<8x8xf32>
    %102 = tpu.matmul %101, %87, %cst_64 {dimension_numbers = #tpu.dot_dimension_numbers<[1], [0], [0], [1], [0, 0, 1, 1], [], []>} : vector<8x8xf32>, vector<8x8xf32>, vector<8x8xf32> -> vector<8x8xf32>
    %c1_65 = arith.constant 1 : index
    %c0_66 = arith.constant 0 : index
    %c0_67 = arith.constant 0 : index
    %103 = vector.load %arg10[%c1_65, %c0_66, %c0_67] : memref<4x8x32xf32, #tpu.memory_space<vmem>>, vector<1x8x32xf32>
    %104 = vector.shape_cast %103 : vector<1x8x32xf32> to vector<8x32xf32>
    %cst_68 = arith.constant dense<0.000000e+00> : vector<8x32xf32>
    %105 = tpu.matmul %102, %104, %cst_68 {dimension_numbers = #tpu.dot_dimension_numbers<[1], [0], [0], [1], [0, 0, 1, 1], [], []>} : vector<8x8xf32>, vector<8x32xf32>, vector<8x32xf32> -> vector<8x32xf32>
    %106 = arith.addf %66, %105 : vector<8x32xf32>
    %c2 = arith.constant 2 : index
    %c0_69 = arith.constant 0 : index
    %c0_70 = arith.constant 0 : index
    %107 = vector.load %arg4[%c2, %c0_69, %c0_70] : memref<4x32x8xf32, #tpu.memory_space<vmem>>, vector<1x32x8xf32>
    %108 = vector.shape_cast %107 : vector<1x32x8xf32> to vector<32x8xf32>
    %cst_71 = arith.constant dense<0.000000e+00> : vector<8x8xf32>
    %109 = tpu.matmul %27, %108, %cst_71 {dimension_numbers = #tpu.dot_dimension_numbers<[1], [0], [0], [1], [0, 0, 1, 1], [], []>} : vector<8x32xf32>, vector<32x8xf32>, vector<8x8xf32> -> vector<8x8xf32>
    %c2_72 = arith.constant 2 : index
    %c0_73 = arith.constant 0 : index
    %c0_74 = arith.constant 0 : index
    %110 = vector.load %arg5[%c2_72, %c0_73, %c0_74] : memref<4x1x8xf32, #tpu.memory_space<vmem>>, vector<1x1x8xf32>
    %111 = vector.shape_cast %110 : vector<1x1x8xf32> to vector<1x8xf32>
    %112 = vector.broadcast %111 : vector<1x8xf32> to vector<8x8xf32>
    %113 = arith.addf %109, %112 : vector<8x8xf32>
    %c2_75 = arith.constant 2 : index
    %c0_76 = arith.constant 0 : index
    %c0_77 = arith.constant 0 : index
    %114 = vector.load %arg6[%c2_75, %c0_76, %c0_77] : memref<4x32x8xf32, #tpu.memory_space<vmem>>, vector<1x32x8xf32>
    %115 = vector.shape_cast %114 : vector<1x32x8xf32> to vector<32x8xf32>
    %cst_78 = arith.constant dense<0.000000e+00> : vector<8x8xf32>
    %116 = tpu.matmul %27, %115, %cst_78 {dimension_numbers = #tpu.dot_dimension_numbers<[1], [0], [0], [1], [0, 0, 1, 1], [], []>} : vector<8x32xf32>, vector<32x8xf32>, vector<8x8xf32> -> vector<8x8xf32>
    %c2_79 = arith.constant 2 : index
    %c0_80 = arith.constant 0 : index
    %c0_81 = arith.constant 0 : index
    %117 = vector.load %arg7[%c2_79, %c0_80, %c0_81] : memref<4x1x8xf32, #tpu.memory_space<vmem>>, vector<1x1x8xf32>
    %118 = vector.shape_cast %117 : vector<1x1x8xf32> to vector<1x8xf32>
    %119 = vector.broadcast %118 : vector<1x8xf32> to vector<8x8xf32>
    %120 = arith.addf %116, %119 : vector<8x8xf32>
    %c2_82 = arith.constant 2 : index
    %c0_83 = arith.constant 0 : index
    %c0_84 = arith.constant 0 : index
    %121 = vector.load %arg8[%c2_82, %c0_83, %c0_84] : memref<4x32x8xf32, #tpu.memory_space<vmem>>, vector<1x32x8xf32>
    %122 = vector.shape_cast %121 : vector<1x32x8xf32> to vector<32x8xf32>
    %cst_85 = arith.constant dense<0.000000e+00> : vector<8x8xf32>
    %123 = tpu.matmul %27, %122, %cst_85 {dimension_numbers = #tpu.dot_dimension_numbers<[1], [0], [0], [1], [0, 0, 1, 1], [], []>} : vector<8x32xf32>, vector<32x8xf32>, vector<8x8xf32> -> vector<8x8xf32>
    %c2_86 = arith.constant 2 : index
    %c0_87 = arith.constant 0 : index
    %c0_88 = arith.constant 0 : index
    %124 = vector.load %arg9[%c2_86, %c0_87, %c0_88] : memref<4x1x8xf32, #tpu.memory_space<vmem>>, vector<1x1x8xf32>
    %125 = vector.shape_cast %124 : vector<1x1x8xf32> to vector<1x8xf32>
    %126 = vector.broadcast %125 : vector<1x8xf32> to vector<8x8xf32>
    %127 = arith.addf %123, %126 : vector<8x8xf32>
    %128 = tpu.transpose %120, [1, 0] : vector<8x8xf32> -> vector<8x8xf32>
    %cst_89 = arith.constant dense<0.000000e+00> : vector<8x8xf32>
    %129 = tpu.matmul %113, %128, %cst_89 {dimension_numbers = #tpu.dot_dimension_numbers<[1], [0], [0], [1], [0, 0, 1, 1], [], []>} : vector<8x8xf32>, vector<8x8xf32>, vector<8x8xf32> -> vector<8x8xf32>
    %cst_90 = arith.constant 0.353553385 : f32
    %130 = vector.broadcast %cst_90 : f32 to vector<8x8xf32>
    %131 = arith.mulf %129, %130 : vector<8x8xf32>
    %cst_91 = arith.constant dense<0xFF800000> : vector<8xf32>
    %132 = vector.multi_reduction <maximumf>, %131, %cst_91 [1] : vector<8x8xf32> to vector<8xf32>
    %133 = vector.shape_cast %132 : vector<8xf32> to vector<8x1xf32>
    %134 = vector.broadcast %133 : vector<8x1xf32> to vector<8x8xf32>
    %135 = arith.subf %131, %134 : vector<8x8xf32>
    %136 = math.exp %135 : vector<8x8xf32>
    %cst_92 = arith.constant dense<0.000000e+00> : vector<8xf32>
    %137 = vector.multi_reduction <add>, %136, %cst_92 [1] : vector<8x8xf32> to vector<8xf32>
    %138 = vector.shape_cast %137 : vector<8xf32> to vector<8x1xf32>
    %139 = tpu.reciprocal %138 : vector<8x1xf32> -> vector<8x1xf32>
    %140 = vector.broadcast %139 : vector<8x1xf32> to vector<8x8xf32>
    %141 = arith.mulf %136, %140 : vector<8x8xf32>
    %cst_93 = arith.constant dense<0.000000e+00> : vector<8x8xf32>
    %142 = tpu.matmul %141, %127, %cst_93 {dimension_numbers = #tpu.dot_dimension_numbers<[1], [0], [0], [1], [0, 0, 1, 1], [], []>} : vector<8x8xf32>, vector<8x8xf32>, vector<8x8xf32> -> vector<8x8xf32>
    %c2_94 = arith.constant 2 : index
    %c0_95 = arith.constant 0 : index
    %c0_96 = arith.constant 0 : index
    %143 = vector.load %arg10[%c2_94, %c0_95, %c0_96] : memref<4x8x32xf32, #tpu.memory_space<vmem>>, vector<1x8x32xf32>
    %144 = vector.shape_cast %143 : vector<1x8x32xf32> to vector<8x32xf32>
    %cst_97 = arith.constant dense<0.000000e+00> : vector<8x32xf32>
    %145 = tpu.matmul %142, %144, %cst_97 {dimension_numbers = #tpu.dot_dimension_numbers<[1], [0], [0], [1], [0, 0, 1, 1], [], []>} : vector<8x8xf32>, vector<8x32xf32>, vector<8x32xf32> -> vector<8x32xf32>
    %146 = arith.addf %106, %145 : vector<8x32xf32>
    %c3 = arith.constant 3 : index
    %c0_98 = arith.constant 0 : index
    %c0_99 = arith.constant 0 : index
    %147 = vector.load %arg4[%c3, %c0_98, %c0_99] : memref<4x32x8xf32, #tpu.memory_space<vmem>>, vector<1x32x8xf32>
    %148 = vector.shape_cast %147 : vector<1x32x8xf32> to vector<32x8xf32>
    %cst_100 = arith.constant dense<0.000000e+00> : vector<8x8xf32>
    %149 = tpu.matmul %27, %148, %cst_100 {dimension_numbers = #tpu.dot_dimension_numbers<[1], [0], [0], [1], [0, 0, 1, 1], [], []>} : vector<8x32xf32>, vector<32x8xf32>, vector<8x8xf32> -> vector<8x8xf32>
    %c3_101 = arith.constant 3 : index
    %c0_102 = arith.constant 0 : index
    %c0_103 = arith.constant 0 : index
    %150 = vector.load %arg5[%c3_101, %c0_102, %c0_103] : memref<4x1x8xf32, #tpu.memory_space<vmem>>, vector<1x1x8xf32>
    %151 = vector.shape_cast %150 : vector<1x1x8xf32> to vector<1x8xf32>
    %152 = vector.broadcast %151 : vector<1x8xf32> to vector<8x8xf32>
    %153 = arith.addf %149, %152 : vector<8x8xf32>
    %c3_104 = arith.constant 3 : index
    %c0_105 = arith.constant 0 : index
    %c0_106 = arith.constant 0 : index
    %154 = vector.load %arg6[%c3_104, %c0_105, %c0_106] : memref<4x32x8xf32, #tpu.memory_space<vmem>>, vector<1x32x8xf32>
    %155 = vector.shape_cast %154 : vector<1x32x8xf32> to vector<32x8xf32>
    %cst_107 = arith.constant dense<0.000000e+00> : vector<8x8xf32>
    %156 = tpu.matmul %27, %155, %cst_107 {dimension_numbers = #tpu.dot_dimension_numbers<[1], [0], [0], [1], [0, 0, 1, 1], [], []>} : vector<8x32xf32>, vector<32x8xf32>, vector<8x8xf32> -> vector<8x8xf32>
    %c3_108 = arith.constant 3 : index
    %c0_109 = arith.constant 0 : index
    %c0_110 = arith.constant 0 : index
    %157 = vector.load %arg7[%c3_108, %c0_109, %c0_110] : memref<4x1x8xf32, #tpu.memory_space<vmem>>, vector<1x1x8xf32>
    %158 = vector.shape_cast %157 : vector<1x1x8xf32> to vector<1x8xf32>
    %159 = vector.broadcast %158 : vector<1x8xf32> to vector<8x8xf32>
    %160 = arith.addf %156, %159 : vector<8x8xf32>
    %c3_111 = arith.constant 3 : index
    %c0_112 = arith.constant 0 : index
    %c0_113 = arith.constant 0 : index
    %161 = vector.load %arg8[%c3_111, %c0_112, %c0_113] : memref<4x32x8xf32, #tpu.memory_space<vmem>>, vector<1x32x8xf32>
    %162 = vector.shape_cast %161 : vector<1x32x8xf32> to vector<32x8xf32>
    %cst_114 = arith.constant dense<0.000000e+00> : vector<8x8xf32>
    %163 = tpu.matmul %27, %162, %cst_114 {dimension_numbers = #tpu.dot_dimension_numbers<[1], [0], [0], [1], [0, 0, 1, 1], [], []>} : vector<8x32xf32>, vector<32x8xf32>, vector<8x8xf32> -> vector<8x8xf32>
    %c3_115 = arith.constant 3 : index
    %c0_116 = arith.constant 0 : index
    %c0_117 = arith.constant 0 : index
    %164 = vector.load %arg9[%c3_115, %c0_116, %c0_117] : memref<4x1x8xf32, #tpu.memory_space<vmem>>, vector<1x1x8xf32>
    %165 = vector.shape_cast %164 : vector<1x1x8xf32> to vector<1x8xf32>
    %166 = vector.broadcast %165 : vector<1x8xf32> to vector<8x8xf32>
    %167 = arith.addf %163, %166 : vector<8x8xf32>
    %168 = tpu.transpose %160, [1, 0] : vector<8x8xf32> -> vector<8x8xf32>
    %cst_118 = arith.constant dense<0.000000e+00> : vector<8x8xf32>
    %169 = tpu.matmul %153, %168, %cst_118 {dimension_numbers = #tpu.dot_dimension_numbers<[1], [0], [0], [1], [0, 0, 1, 1], [], []>} : vector<8x8xf32>, vector<8x8xf32>, vector<8x8xf32> -> vector<8x8xf32>
    %cst_119 = arith.constant 0.353553385 : f32
    %170 = vector.broadcast %cst_119 : f32 to vector<8x8xf32>
    %171 = arith.mulf %169, %170 : vector<8x8xf32>
    %cst_120 = arith.constant dense<0xFF800000> : vector<8xf32>
    %172 = vector.multi_reduction <maximumf>, %171, %cst_120 [1] : vector<8x8xf32> to vector<8xf32>
    %173 = vector.shape_cast %172 : vector<8xf32> to vector<8x1xf32>
    %174 = vector.broadcast %173 : vector<8x1xf32> to vector<8x8xf32>
    %175 = arith.subf %171, %174 : vector<8x8xf32>
    %176 = math.exp %175 : vector<8x8xf32>
    %cst_121 = arith.constant dense<0.000000e+00> : vector<8xf32>
    %177 = vector.multi_reduction <add>, %176, %cst_121 [1] : vector<8x8xf32> to vector<8xf32>
    %178 = vector.shape_cast %177 : vector<8xf32> to vector<8x1xf32>
    %179 = tpu.reciprocal %178 : vector<8x1xf32> -> vector<8x1xf32>
    %180 = vector.broadcast %179 : vector<8x1xf32> to vector<8x8xf32>
    %181 = arith.mulf %176, %180 : vector<8x8xf32>
    %cst_122 = arith.constant dense<0.000000e+00> : vector<8x8xf32>
    %182 = tpu.matmul %181, %167, %cst_122 {dimension_numbers = #tpu.dot_dimension_numbers<[1], [0], [0], [1], [0, 0, 1, 1], [], []>} : vector<8x8xf32>, vector<8x8xf32>, vector<8x8xf32> -> vector<8x8xf32>
    %c3_123 = arith.constant 3 : index
    %c0_124 = arith.constant 0 : index
    %c0_125 = arith.constant 0 : index
    %183 = vector.load %arg10[%c3_123, %c0_124, %c0_125] : memref<4x8x32xf32, #tpu.memory_space<vmem>>, vector<1x8x32xf32>
    %184 = vector.shape_cast %183 : vector<1x8x32xf32> to vector<8x32xf32>
    %cst_126 = arith.constant dense<0.000000e+00> : vector<8x32xf32>
    %185 = tpu.matmul %182, %184, %cst_126 {dimension_numbers = #tpu.dot_dimension_numbers<[1], [0], [0], [1], [0, 0, 1, 1], [], []>} : vector<8x8xf32>, vector<8x32xf32>, vector<8x32xf32> -> vector<8x32xf32>
    %186 = arith.addf %146, %185 : vector<8x32xf32>
    %187 = arith.addf %1, %186 : vector<8x32xf32>
    %c0_127 = arith.constant 0 : index
    %c0_128 = arith.constant 0 : index
    %188 = vector.load %arg11[%c0_127, %c0_128] : memref<1x32xf32, #tpu.memory_space<vmem>>, vector<1x32xf32>
    %189 = vector.broadcast %188 : vector<1x32xf32> to vector<8x32xf32>
    %190 = arith.addf %187, %189 : vector<8x32xf32>
    %c0_129 = arith.constant 0 : index
    %c0_130 = arith.constant 0 : index
    %191 = vector.load %arg12[%c0_129, %c0_130] : memref<1x32xf32, #tpu.memory_space<vmem>>, vector<1x32xf32>
    %c0_131 = arith.constant 0 : index
    %c0_132 = arith.constant 0 : index
    %192 = vector.load %arg13[%c0_131, %c0_132] : memref<1x32xf32, #tpu.memory_space<vmem>>, vector<1x32xf32>
    %cst_133 = arith.constant dense<0.000000e+00> : vector<8xf32>
    %193 = vector.multi_reduction <add>, %190, %cst_133 [1] : vector<8x32xf32> to vector<8xf32>
    %194 = vector.shape_cast %193 : vector<8xf32> to vector<8x1xf32>
    %cst_134 = arith.constant 3.200000e+01 : f32
    %195 = vector.broadcast %cst_134 : f32 to vector<8x1xf32>
    %196 = arith.divf %194, %195 : vector<8x1xf32>
    %197 = vector.broadcast %196 : vector<8x1xf32> to vector<8x32xf32>
    %198 = arith.subf %190, %197 : vector<8x32xf32>
    %199 = vector.broadcast %196 : vector<8x1xf32> to vector<8x32xf32>
    %200 = arith.subf %190, %199 : vector<8x32xf32>
    %201 = arith.mulf %198, %200 : vector<8x32xf32>
    %cst_135 = arith.constant dense<0.000000e+00> : vector<8xf32>
    %202 = vector.multi_reduction <add>, %201, %cst_135 [1] : vector<8x32xf32> to vector<8xf32>
    %203 = vector.shape_cast %202 : vector<8xf32> to vector<8x1xf32>
    %cst_136 = arith.constant 3.200000e+01 : f32
    %204 = vector.broadcast %cst_136 : f32 to vector<8x1xf32>
    %205 = arith.divf %203, %204 : vector<8x1xf32>
    %206 = vector.broadcast %196 : vector<8x1xf32> to vector<8x32xf32>
    %207 = arith.subf %190, %206 : vector<8x32xf32>
    %cst_137 = arith.constant 9.99999974E-6 : f32
    %208 = vector.broadcast %cst_137 : f32 to vector<8x1xf32>
    %209 = arith.addf %205, %208 : vector<8x1xf32>
    %210 = math.rsqrt %209 : vector<8x1xf32>
    %211 = vector.broadcast %210 : vector<8x1xf32> to vector<8x32xf32>
    %212 = arith.mulf %207, %211 : vector<8x32xf32>
    %213 = vector.broadcast %191 : vector<1x32xf32> to vector<8x32xf32>
    %214 = arith.mulf %212, %213 : vector<8x32xf32>
    %215 = vector.broadcast %192 : vector<1x32xf32> to vector<8x32xf32>
    %216 = arith.addf %214, %215 : vector<8x32xf32>
    %c0_138 = arith.constant 0 : index
    %c0_139 = arith.constant 0 : index
    %217 = vector.load %arg14[%c0_138, %c0_139] : memref<32x128xf32, #tpu.memory_space<vmem>>, vector<32x128xf32>
    %cst_140 = arith.constant dense<0.000000e+00> : vector<8x128xf32>
    %218 = tpu.matmul %216, %217, %cst_140 {dimension_numbers = #tpu.dot_dimension_numbers<[1], [0], [0], [1], [0, 0, 1, 1], [], []>} : vector<8x32xf32>, vector<32x128xf32>, vector<8x128xf32> -> vector<8x128xf32>
    %c0_141 = arith.constant 0 : index
    %c0_142 = arith.constant 0 : index
    %219 = vector.load %arg15[%c0_141, %c0_142] : memref<1x128xf32, #tpu.memory_space<vmem>>, vector<1x128xf32>
    %220 = vector.broadcast %219 : vector<1x128xf32> to vector<8x128xf32>
    %221 = arith.addf %218, %220 : vector<8x128xf32>
    %cst_143 = arith.constant 5.000000e-01 : f32
    %222 = vector.broadcast %cst_143 : f32 to vector<8x128xf32>
    %223 = arith.mulf %222, %221 : vector<8x128xf32>
    %cst_144 = arith.constant 0.707106769 : f32
    %224 = vector.broadcast %cst_144 : f32 to vector<8x128xf32>
    %225 = arith.mulf %221, %224 : vector<8x128xf32>
    %cst_145 = arith.constant 0.000000e+00 : f32
    %226 = vector.broadcast %cst_145 : f32 to vector<8x128xf32>
    %227 = arith.cmpf oge, %225, %226 : vector<8x128xf32>
    %cst_146 = arith.constant 1.000000e+00 : f32
    %cst_147 = arith.constant -1.000000e+00 : f32
    %228 = vector.broadcast %cst_146 : f32 to vector<8x128xf32>
    %229 = vector.broadcast %cst_147 : f32 to vector<8x128xf32>
    %230 = arith.select %227, %228, %229 : vector<8x128xi1>, vector<8x128xf32>
    %231 = math.absf %225 : vector<8x128xf32>
    %cst_148 = arith.constant 0.327591091 : f32
    %232 = vector.broadcast %cst_148 : f32 to vector<8x128xf32>
    %233 = arith.mulf %232, %231 : vector<8x128xf32>
    %cst_149 = arith.constant 1.000000e+00 : f32
    %234 = vector.broadcast %cst_149 : f32 to vector<8x128xf32>
    %235 = arith.addf %234, %233 : vector<8x128xf32>
    %cst_150 = arith.constant 1.000000e+00 : f32
    %236 = vector.broadcast %cst_150 : f32 to vector<8x128xf32>
    %237 = arith.divf %236, %235 : vector<8x128xf32>
    %cst_151 = arith.constant 1.06140542 : f32
    %238 = vector.broadcast %cst_151 : f32 to vector<8x128xf32>
    %239 = arith.mulf %238, %237 : vector<8x128xf32>
    %cst_152 = arith.constant -1.45315206 : f32
    %240 = vector.broadcast %cst_152 : f32 to vector<8x128xf32>
    %241 = arith.addf %239, %240 : vector<8x128xf32>
    %242 = arith.mulf %241, %237 : vector<8x128xf32>
    %cst_153 = arith.constant 1.42141378 : f32
    %243 = vector.broadcast %cst_153 : f32 to vector<8x128xf32>
    %244 = arith.addf %242, %243 : vector<8x128xf32>
    %245 = arith.mulf %244, %237 : vector<8x128xf32>
    %cst_154 = arith.constant -0.284496725 : f32
    %246 = vector.broadcast %cst_154 : f32 to vector<8x128xf32>
    %247 = arith.addf %245, %246 : vector<8x128xf32>
    %248 = arith.mulf %247, %237 : vector<8x128xf32>
    %cst_155 = arith.constant 0.254829586 : f32
    %249 = vector.broadcast %cst_155 : f32 to vector<8x128xf32>
    %250 = arith.addf %248, %249 : vector<8x128xf32>
    %251 = arith.mulf %250, %237 : vector<8x128xf32>
    %cst_156 = arith.constant 0.000000e+00 : f32
    %252 = vector.broadcast %cst_156 : f32 to vector<8x128xf32>
    %253 = arith.subf %252, %231 : vector<8x128xf32>
    %254 = arith.mulf %253, %231 : vector<8x128xf32>
    %255 = math.exp %254 : vector<8x128xf32>
    %256 = arith.mulf %251, %255 : vector<8x128xf32>
    %cst_157 = arith.constant 1.000000e+00 : f32
    %257 = vector.broadcast %cst_157 : f32 to vector<8x128xf32>
    %258 = arith.subf %257, %256 : vector<8x128xf32>
    %259 = arith.mulf %230, %258 : vector<8x128xf32>
    %cst_158 = arith.constant 1.000000e+00 : f32
    %260 = vector.broadcast %cst_158 : f32 to vector<8x128xf32>
    %261 = arith.addf %260, %259 : vector<8x128xf32>
    %262 = arith.mulf %223, %261 : vector<8x128xf32>
    %c0_159 = arith.constant 0 : index
    %c0_160 = arith.constant 0 : index
    %263 = vector.load %arg16[%c0_159, %c0_160] : memref<128x32xf32, #tpu.memory_space<vmem>>, vector<128x32xf32>
    %cst_161 = arith.constant dense<0.000000e+00> : vector<8x32xf32>
    %264 = tpu.matmul %262, %263, %cst_161 {dimension_numbers = #tpu.dot_dimension_numbers<[1], [0], [0], [1], [0, 0, 1, 1], [], []>} : vector<8x128xf32>, vector<128x32xf32>, vector<8x32xf32> -> vector<8x32xf32>
    %c0_162 = arith.constant 0 : index
    %c0_163 = arith.constant 0 : index
    %265 = vector.load %arg17[%c0_162, %c0_163] : memref<1x32xf32, #tpu.memory_space<vmem>>, vector<1x32xf32>
    %266 = vector.broadcast %265 : vector<1x32xf32> to vector<8x32xf32>
    %267 = arith.addf %264, %266 : vector<8x32xf32>
    %268 = arith.addf %190, %267 : vector<8x32xf32>
    %c0_164 = arith.constant 0 : index
    %c0_165 = arith.constant 0 : index
    %c0_166 = arith.constant 0 : index
    %269 = vector.load %arg18[%c0_164, %c0_165, %c0_166] : memref<1x8x32xf32, #tpu.memory_space<vmem>>, vector<1x8x32xf32>
    %270 = vector.shape_cast %269 : vector<1x8x32xf32> to vector<8x32xf32>
    %271 = vector.shape_cast %268 : vector<8x32xf32> to vector<1x8x32xf32>
    tpu.vector_store %arg18[%c0_164, %c0_165, %c0_166], %271 {strides = array<i32>} : memref<1x8x32xf32, #tpu.memory_space<vmem>>, vector<1x8x32xf32>,
    return
  }
  func.func @transform_0(%arg0: i32) -> (i32, i32, i32) {
    %c0_i32 = arith.constant 0 : i32
    %c0_i32_0 = arith.constant 0 : i32
    %c0_i32_1 = arith.constant 0 : i32
    return %arg0, %c0_i32, %c0_i32_0 : i32, i32, i32
  }
  func.func @transform_1(%arg0: i32) -> (i32, i32) {
    %c0_i32 = arith.constant 0 : i32
    %c0_i32_0 = arith.constant 0 : i32
    %c0_i32_1 = arith.constant 0 : i32
    return %c0_i32, %c0_i32_0 : i32, i32
  }
  func.func @transform_2(%arg0: i32) -> (i32, i32) {
    %c0_i32 = arith.constant 0 : i32
    %c0_i32_0 = arith.constant 0 : i32
    %c0_i32_1 = arith.constant 0 : i32
    return %c0_i32, %c0_i32_0 : i32, i32
  }
  func.func @transform_3(%arg0: i32) -> (i32, i32, i32) {
    %c0_i32 = arith.constant 0 : i32
    %c0_i32_0 = arith.constant 0 : i32
    %c0_i32_1 = arith.constant 0 : i32
    %c0_i32_2 = arith.constant 0 : i32
    return %c0_i32, %c0_i32_0, %c0_i32_1 : i32, i32, i32
  }
  func.func @transform_4(%arg0: i32) -> (i32, i32, i32) {
    %c0_i32 = arith.constant 0 : i32
    %c0_i32_0 = arith.constant 0 : i32
    %c0_i32_1 = arith.constant 0 : i32
    %c0_i32_2 = arith.constant 0 : i32
    return %c0_i32, %c0_i32_0, %c0_i32_1 : i32, i32, i32
  }
  func.func @transform_5(%arg0: i32) -> (i32, i32, i32) {
    %c0_i32 = arith.constant 0 : i32
    %c0_i32_0 = arith.constant 0 : i32
    %c0_i32_1 = arith.constant 0 : i32
    %c0_i32_2 = arith.constant 0 : i32
    return %c0_i32, %c0_i32_0, %c0_i32_1 : i32, i32, i32
  }
  func.func @transform_6(%arg0: i32) -> (i32, i32, i32) {
    %c0_i32 = arith.constant 0 : i32
    %c0_i32_0 = arith.constant 0 : i32
    %c0_i32_1 = arith.constant 0 : i32
    %c0_i32_2 = arith.constant 0 : i32
    return %c0_i32, %c0_i32_0, %c0_i32_1 : i32, i32, i32
  }
  func.func @transform_7(%arg0: i32) -> (i32, i32, i32) {
    %c0_i32 = arith.constant 0 : i32
    %c0_i32_0 = arith.constant 0 : i32
    %c0_i32_1 = arith.constant 0 : i32
    %c0_i32_2 = arith.constant 0 : i32
    return %c0_i32, %c0_i32_0, %c0_i32_1 : i32, i32, i32
  }
  func.func @transform_8(%arg0: i32) -> (i32, i32, i32) {
    %c0_i32 = arith.constant 0 : i32
    %c0_i32_0 = arith.constant 0 : i32
    %c0_i32_1 = arith.constant 0 : i32
    %c0_i32_2 = arith.constant 0 : i32
    return %c0_i32, %c0_i32_0, %c0_i32_1 : i32, i32, i32
  }
  func.func @transform_9(%arg0: i32) -> (i32, i32, i32) {
    %c0_i32 = arith.constant 0 : i32
    %c0_i32_0 = arith.constant 0 : i32
    %c0_i32_1 = arith.constant 0 : i32
    %c0_i32_2 = arith.constant 0 : i32
    return %c0_i32, %c0_i32_0, %c0_i32_1 : i32, i32, i32
  }
  func.func @transform_10(%arg0: i32) -> (i32, i32) {
    %c0_i32 = arith.constant 0 : i32
    %c0_i32_0 = arith.constant 0 : i32
    %c0_i32_1 = arith.constant 0 : i32
    return %c0_i32, %c0_i32_0 : i32, i32
  }
  func.func @transform_11(%arg0: i32) -> (i32, i32) {
    %c0_i32 = arith.constant 0 : i32
    %c0_i32_0 = arith.constant 0 : i32
    %c0_i32_1 = arith.constant 0 : i32
    return %c0_i32, %c0_i32_0 : i32, i32
  }
  func.func @transform_12(%arg0: i32) -> (i32, i32) {
    %c0_i32 = arith.constant 0 : i32
    %c0_i32_0 = arith.constant 0 : i32
    %c0_i32_1 = arith.constant 0 : i32
    return %c0_i32, %c0_i32_0 : i32, i32
  }
  func.func @transform_13(%arg0: i32) -> (i32, i32) {
    %c0_i32 = arith.constant 0 : i32
    %c0_i32_0 = arith.constant 0 : i32
    %c0_i32_1 = arith.constant 0 : i32
    return %c0_i32, %c0_i32_0 : i32, i32
  }
  func.func @transform_14(%arg0: i32) -> (i32, i32) {
    %c0_i32 = arith.constant 0 : i32
    %c0_i32_0 = arith.constant 0 : i32
    %c0_i32_1 = arith.constant 0 : i32
    return %c0_i32, %c0_i32_0 : i32, i32
  }
  func.func @transform_15(%arg0: i32) -> (i32, i32) {
    %c0_i32 = arith.constant 0 : i32
    %c0_i32_0 = arith.constant 0 : i32
    %c0_i32_1 = arith.constant 0 : i32
    return %c0_i32, %c0_i32_0 : i32, i32
  }
  func.func @transform_16(%arg0: i32) -> (i32, i32) {
    %c0_i32 = arith.constant 0 : i32
    %c0_i32_0 = arith.constant 0 : i32
    %c0_i32_1 = arith.constant 0 : i32
    return %c0_i32, %c0_i32_0 : i32, i32
  }
  func.func @transform_17(%arg0: i32) -> (i32, i32, i32) {
    %c0_i32 = arith.constant 0 : i32
    %c0_i32_0 = arith.constant 0 : i32
    %c0_i32_1 = arith.constant 0 : i32
    return %arg0, %c0_i32, %c0_i32_0 : i32, i32, i32
  }
}

</mosaic_0001>

<llo_original>
// kernel: tpu_custom_call.1
$region0: #{tpu_custom_call.1}
  #allocation0 [shape = 'u32[]', space=smem, size = 0x4, offset = 0x4, fixed_abs, tag = 'smem constant byte address 0x4 - core index']
  #allocation1 [shape = 'u32[144,128]{1,0:T(1,128)}', space=vmem, size = 0x12000, scoped, tag = 'internal scratch']
  %s0 = inlined_call_operand.vmem [shape: f32[2,8,32], index: 0, kind: input, shape index: {}]
  %s1 = inlined_call_operand.vmem [shape: f32[1,32], index: 1, kind: input, shape index: {}]
  %s2 = inlined_call_operand.vmem [shape: f32[1,32], index: 2, kind: input, shape index: {}]
  %s3 = inlined_call_operand.vmem [shape: f32[4,32,8], index: 3, kind: input, shape index: {}]
  %s4 = inlined_call_operand.vmem [shape: f32[4,1,8], index: 4, kind: input, shape index: {}]
  %s5 = inlined_call_operand.vmem [shape: f32[4,32,8], index: 5, kind: input, shape index: {}]
  %s6 = inlined_call_operand.vmem [shape: f32[4,1,8], index: 6, kind: input, shape index: {}]
  %s7 = inlined_call_operand.vmem [shape: f32[4,32,8], index: 7, kind: input, shape index: {}]
  %s8 = inlined_call_operand.vmem [shape: f32[4,1,8], index: 8, kind: input, shape index: {}]
  %s9 = inlined_call_operand.vmem [shape: f32[4,8,32], index: 9, kind: input, shape index: {}]
  %s10 = inlined_call_operand.vmem [shape: f32[1,32], index: 10, kind: input, shape index: {}]
  %s11 = inlined_call_operand.vmem [shape: f32[1,32], index: 11, kind: input, shape index: {}]
  %s12 = inlined_call_operand.vmem [shape: f32[1,32], index: 12, kind: input, shape index: {}]
  %s13 = inlined_call_operand.vmem [shape: f32[32,128], index: 13, kind: input, shape index: {}]
  %s14 = inlined_call_operand.vmem [shape: f32[1,128], index: 14, kind: input, shape index: {}]
  %s15 = inlined_call_operand.vmem [shape: f32[128,32], index: 15, kind: input, shape index: {}]
  %s16 = inlined_call_operand.vmem [shape: f32[1,32], index: 16, kind: input, shape index: {}]
  %s17 = inlined_call_operand.hbm [shape: f32[2,8,32], index: 17, kind: output, shape index: {}]
  %s18 = sld [smem:[#allocation0]]
  $region101: #{tpu_custom_call.1} parent=0
    _
  %s20 = ssub.s32 1, %s18
  %s21 = scalar_select 0, %s20, %s18
  $region1: #{tpu_custom_call.1} parent=0
    #allocation2 [shape = 'u8[8192]{0}', space=vmem, size = 0x2000, scoped, tag = 'output window, operand 0']
    #allocation3 [shape = 's32[2]{0}', space=sflag, size = 0x8, scoped, tag = 'scoped memory for tpu_custom_call.1']
    %22 = vsyncpa [#allocation3], 0
    %s23 = scalar_lea.sflag [#allocation3], 1
    %24 = vsyncpa %s23, 0
    loop: start=0, step=1, limit=4
    $region2: #{tpu_custom_call.1} parent=1 // loop_pre_header
      _
    $region3: #{tpu_custom_call.1} parent=1 // loop_header
      %s26 = sphi 0, %s30
      %p27 = scmp.ge.s32.totalorder %s26, 4
      %s36 = sphi 0, %s38
      %s39 = sphi 0, %s36
      %s40 = sphi 0, %s39
      %s56 = sphi 0, %s40
      %s60 = sphi 0, %s60
      %s62 = sphi 0, %s60
      %s63 = sphi 0, %s62
      %s77 = sphi 0, %s63
      %s81 = sphi 0, %s81
      %s83 = sphi 0, %s81
      %s84 = sphi 0, %s83
      %s98 = sphi 0, %s84
      %s102 = sphi 0, %s102
      %s104 = sphi 0, %s102
      %s105 = sphi 0, %s104
      %s119 = sphi 0, %s105
      %s123 = sphi 0, %s123
      %s125 = sphi 0, %s123
      %s126 = sphi 0, %s125
      %s140 = sphi 0, %s126
      %s144 = sphi 0, %s144
      %s146 = sphi 0, %s144
      %s147 = sphi 0, %s146
      %s161 = sphi 0, %s147
      %s165 = sphi 0, %s165
      %s167 = sphi 0, %s165
      %s168 = sphi 0, %s167
      %s182 = sphi 0, %s168
      %s186 = sphi 0, %s186
      %s188 = sphi 0, %s186
      %s189 = sphi 0, %s188
      %s203 = sphi 0, %s189
      %s207 = sphi 0, %s207
      %s209 = sphi 0, %s207
      %s210 = sphi 0, %s209
      %s224 = sphi 0, %s210
      %s228 = sphi 0, %s228
      %s230 = sphi 0, %s228
      %s231 = sphi 0, %s230
      %s245 = sphi 0, %s231
      %s249 = sphi 0, %s249
      %s251 = sphi 0, %s249
      %s252 = sphi 0, %s251
      %s266 = sphi 0, %s252
      %s270 = sphi 0, %s270
      %s272 = sphi 0, %s270
      %s273 = sphi 0, %s272
      %s287 = sphi 0, %s273
      %s291 = sphi 0, %s291
      %s293 = sphi 0, %s291
      %s294 = sphi 0, %s293
      %s308 = sphi 0, %s294
      %s312 = sphi 0, %s312
      %s314 = sphi 0, %s312
      %s315 = sphi 0, %s314
      %s329 = sphi 0, %s315
      %s333 = sphi 0, %s333
      %s335 = sphi 0, %s333
      %s336 = sphi 0, %s335
      %s350 = sphi 0, %s336
      %s354 = sphi 0, %s354
      %s356 = sphi 0, %s354
      %s357 = sphi 0, %s356
      %s371 = sphi 0, %s357
      %s375 = sphi 0, %s375
      %s377 = sphi 0, %s375
      %s378 = sphi 0, %s377
      %s392 = sphi 0, %s378
      %s398 = sphi 0, %s400
      %s401 = sphi 0, %s398
      %s402 = sphi 0, %s401
      %s418 = sphi 0, %s402
    $region4: #{tpu_custom_call.1} parent=1 // loop_header_branch
      %29 = sbr.rel (%p27) target = $region8
    $region5: #{tpu_custom_call.1} parent=1 // loop_body
      %s31 = ssub.s32 %s26, 1
      %s32 = ssub.s32 %s26, 2
      %s33 = sadd.s32 %s26, 1
      %s34 = ssub.s32 %s26, %s33
      %p35 = scmp.eq.s32.totalorder %s34, 0
      %s37 = sadd.s32 %s36, 1
      %s38 = scalar_select %p35, %s36, %s37
      %p41 = pneg %p35
      %p42 = scmp.eq.s32.totalorder %s26, 1
      %p43 = por %p41, %p42
      %p44 = scmp.ne.s32.totalorder %s36, %s39
      %p45 = scmp.eq.s32.totalorder %s26, 0
      %p46 = por %p44, %p45
      %p47 = scmp.ne.s32.totalorder %s36, %s39
      %p48 = scmp.eq.s32.totalorder %s31, 1
      %p49 = por %p47, %p48
      %p50 = scmp.ne.s32.totalorder %s39, %s40
      %p51 = scmp.eq.s32.totalorder %s31, 0
      %p52 = por %p50, %p51
      %p53 = scmp.ne.s32.totalorder %s39, %s40
      %p54 = scmp.eq.s32.totalorder %s32, 1
      %p55 = por %p53, %p54
      %p57 = scmp.ne.s32.totalorder %s40, %s56
      %p58 = scmp.eq.s32.totalorder %s32, 0
      %p59 = por %p57, %p58
      %s61 = sadd.s32 %s60, 1
      %p64 = scmp.eq.s32.totalorder %s26, 1
      %p65 = scmp.ne.s32.totalorder %s60, %s62
      %p66 = scmp.eq.s32.totalorder %s26, 0
      %p67 = por %p65, %p66
      %p68 = scmp.ne.s32.totalorder %s60, %s62
      %p69 = scmp.eq.s32.totalorder %s31, 1
      %p70 = por %p68, %p69
      %p71 = scmp.ne.s32.totalorder %s62, %s63
      %p72 = scmp.eq.s32.totalorder %s31, 0
      %p73 = por %p71, %p72
      %p74 = scmp.ne.s32.totalorder %s62, %s63
      %p75 = scmp.eq.s32.totalorder %s32, 1
      %p76 = por %p74, %p75
      %p78 = scmp.ne.s32.totalorder %s63, %s77
      %p79 = scmp.eq.s32.totalorder %s32, 0
      %p80 = por %p78, %p79
      %s82 = sadd.s32 %s81, 1
      %p85 = scmp.eq.s32.totalorder %s26, 1
      %p86 = scmp.ne.s32.totalorder %s81, %s83
      %p87 = scmp.eq.s32.totalorder %s26, 0
      %p88 = por %p86, %p87
      %p89 = scmp.ne.s32.totalorder %s81, %s83
      %p90 = scmp.eq.s32.totalorder %s31, 1
      %p91 = por %p89, %p90
      %p92 = scmp.ne.s32.totalorder %s83, %s84
      %p93 = scmp.eq.s32.totalorder %s31, 0
      %p94 = por %p92, %p93
      %p95 = scmp.ne.s32.totalorder %s83, %s84
      %p96 = scmp.eq.s32.totalorder %s32, 1
      %p97 = por %p95, %p96
      %p99 = scmp.ne.s32.totalorder %s84, %s98
      %p100 = scmp.eq.s32.totalorder %s32, 0
      %p101 = por %p99, %p100
      %s103 = sadd.s32 %s102, 1
      %p106 = scmp.eq.s32.totalorder %s26, 1
      %p107 = scmp.ne.s32.totalorder %s102, %s104
      %p108 = scmp.eq.s32.totalorder %s26, 0
      %p109 = por %p107, %p108
      %p110 = scmp.ne.s32.totalorder %s102, %s104
      %p111 = scmp.eq.s32.totalorder %s31, 1
      %p112 = por %p110, %p111
      %p113 = scmp.ne.s32.totalorder %s104, %s105
      %p114 = scmp.eq.s32.totalorder %s31, 0
      %p115 = por %p113, %p114
      %p116 = scmp.ne.s32.totalorder %s104, %s105
      %p117 = scmp.eq.s32.totalorder %s32, 1
      %p118 = por %p116, %p117
      %p120 = scmp.ne.s32.totalorder %s105, %s119
      %p121 = scmp.eq.s32.totalorder %s32, 0
      %p122 = por %p120, %p121
      %s124 = sadd.s32 %s123, 1
      %p127 = scmp.eq.s32.totalorder %s26, 1
      %p128 = scmp.ne.s32.totalorder %s123, %s125
      %p129 = scmp.eq.s32.totalorder %s26, 0
      %p130 = por %p128, %p129
      %p131 = scmp.ne.s32.totalorder %s123, %s125
      %p132 = scmp.eq.s32.totalorder %s31, 1
      %p133 = por %p131, %p132
      %p134 = scmp.ne.s32.totalorder %s125, %s126
      %p135 = scmp.eq.s32.totalorder %s31, 0
      %p136 = por %p134, %p135
      %p137 = scmp.ne.s32.totalorder %s125, %s126
      %p138 = scmp.eq.s32.totalorder %s32, 1
      %p139 = por %p137, %p138
      %p141 = scmp.ne.s32.totalorder %s126, %s140
      %p142 = scmp.eq.s32.totalorder %s32, 0
      %p143 = por %p141, %p142
      %s145 = sadd.s32 %s144, 1
      %p148 = scmp.eq.s32.totalorder %s26, 1
      %p149 = scmp.ne.s32.totalorder %s144, %s146
      %p150 = scmp.eq.s32.totalorder %s26, 0
      %p151 = por %p149, %p150
      %p152 = scmp.ne.s32.totalorder %s144, %s146
      %p153 = scmp.eq.s32.totalorder %s31, 1
      %p154 = por %p152, %p153
      %p155 = scmp.ne.s32.totalorder %s146, %s147
      %p156 = scmp.eq.s32.totalorder %s31, 0
      %p157 = por %p155, %p156
      %p158 = scmp.ne.s32.totalorder %s146, %s147
      %p159 = scmp.eq.s32.totalorder %s32, 1
      %p160 = por %p158, %p159
      %p162 = scmp.ne.s32.totalorder %s147, %s161
      %p163 = scmp.eq.s32.totalorder %s32, 0
      %p164 = por %p162, %p163
      %s166 = sadd.s32 %s165, 1
      %p169 = scmp.eq.s32.totalorder %s26, 1
      %p170 = scmp.ne.s32.totalorder %s165, %s167
      %p171 = scmp.eq.s32.totalorder %s26, 0
      %p172 = por %p170, %p171
      %p173 = scmp.ne.s32.totalorder %s165, %s167
      %p174 = scmp.eq.s32.totalorder %s31, 1
      %p175 = por %p173, %p174
      %p176 = scmp.ne.s32.totalorder %s167, %s168
      %p177 = scmp.eq.s32.totalorder %s31, 0
      %p178 = por %p176, %p177
      %p179 = scmp.ne.s32.totalorder %s167, %s168
      %p180 = scmp.eq.s32.totalorder %s32, 1
      %p181 = por %p179, %p180
      %p183 = scmp.ne.s32.totalorder %s168, %s182
      %p184 = scmp.eq.s32.totalorder %s32, 0
      %p185 = por %p183, %p184
      %s187 = sadd.s32 %s186, 1
      %p190 = scmp.eq.s32.totalorder %s26, 1
      %p191 = scmp.ne.s32.totalorder %s186, %s188
      %p192 = scmp.eq.s32.totalorder %s26, 0
      %p193 = por %p191, %p192
      %p194 = scmp.ne.s32.totalorder %s186, %s188
      %p195 = scmp.eq.s32.totalorder %s31, 1
      %p196 = por %p194, %p195
      %p197 = scmp.ne.s32.totalorder %s188, %s189
      %p198 = scmp.eq.s32.totalorder %s31, 0
      %p199 = por %p197, %p198
      %p200 = scmp.ne.s32.totalorder %s188, %s189
      %p201 = scmp.eq.s32.totalorder %s32, 1
      %p202 = por %p200, %p201
      %p204 = scmp.ne.s32.totalorder %s189, %s203
      %p205 = scmp.eq.s32.totalorder %s32, 0
      %p206 = por %p204, %p205
      %s208 = sadd.s32 %s207, 1
      %p211 = scmp.eq.s32.totalorder %s26, 1
      %p212 = scmp.ne.s32.totalorder %s207, %s209
      %p213 = scmp.eq.s32.totalorder %s26, 0
      %p214 = por %p212, %p213
      %p215 = scmp.ne.s32.totalorder %s207, %s209
      %p216 = scmp.eq.s32.totalorder %s31, 1
      %p217 = por %p215, %p216
      %p218 = scmp.ne.s32.totalorder %s209, %s210
      %p219 = scmp.eq.s32.totalorder %s31, 0
      %p220 = por %p218, %p219
      %p221 = scmp.ne.s32.totalorder %s209, %s210
      %p222 = scmp.eq.s32.totalorder %s32, 1
      %p223 = por %p221, %p222
      %p225 = scmp.ne.s32.totalorder %s210, %s224
      %p226 = scmp.eq.s32.totalorder %s32, 0
      %p227 = por %p225, %p226
      %s229 = sadd.s32 %s228, 1
      %p232 = scmp.eq.s32.totalorder %s26, 1
      %p233 = scmp.ne.s32.totalorder %s228, %s230
      %p234 = scmp.eq.s32.totalorder %s26, 0
      %p235 = por %p233, %p234
      %p236 = scmp.ne.s32.totalorder %s228, %s230
      %p237 = scmp.eq.s32.totalorder %s31, 1
      %p238 = por %p236, %p237
      %p239 = scmp.ne.s32.totalorder %s230, %s231
      %p240 = scmp.eq.s32.totalorder %s31, 0
      %p241 = por %p239, %p240
      %p242 = scmp.ne.s32.totalorder %s230, %s231
      %p243 = scmp.eq.s32.totalorder %s32, 1
      %p244 = por %p242, %p243
      %p246 = scmp.ne.s32.totalorder %s231, %s245
      %p247 = scmp.eq.s32.totalorder %s32, 0
      %p248 = por %p246, %p247
      %s250 = sadd.s32 %s249, 1
      %p253 = scmp.eq.s32.totalorder %s26, 1
      %p254 = scmp.ne.s32.totalorder %s249, %s251
      %p255 = scmp.eq.s32.totalorder %s26, 0
      %p256 = por %p254, %p255
      %p257 = scmp.ne.s32.totalorder %s249, %s251
      %p258 = scmp.eq.s32.totalorder %s31, 1
      %p259 = por %p257, %p258
      %p260 = scmp.ne.s32.totalorder %s251, %s252
      %p261 = scmp.eq.s32.totalorder %s31, 0
      %p262 = por %p260, %p261
      %p263 = scmp.ne.s32.totalorder %s251, %s252
      %p264 = scmp.eq.s32.totalorder %s32, 1
      %p265 = por %p263, %p264
      %p267 = scmp.ne.s32.totalorder %s252, %s266
      %p268 = scmp.eq.s32.totalorder %s32, 0
      %p269 = por %p267, %p268
      %s271 = sadd.s32 %s270, 1
      %p274 = scmp.eq.s32.totalorder %s26, 1
      %p275 = scmp.ne.s32.totalorder %s270, %s272
      %p276 = scmp.eq.s32.totalorder %s26, 0
      %p277 = por %p275, %p276
      %p278 = scmp.ne.s32.totalorder %s270, %s272
      %p279 = scmp.eq.s32.totalorder %s31, 1
      %p280 = por %p278, %p279
      %p281 = scmp.ne.s32.totalorder %s272, %s273
      %p282 = scmp.eq.s32.totalorder %s31, 0
      %p283 = por %p281, %p282
      %p284 = scmp.ne.s32.totalorder %s272, %s273
      %p285 = scmp.eq.s32.totalorder %s32, 1
      %p286 = por %p284, %p285
      %p288 = scmp.ne.s32.totalorder %s273, %s287
      %p289 = scmp.eq.s32.totalorder %s32, 0
      %p290 = por %p288, %p289
      %s292 = sadd.s32 %s291, 1
      %p295 = scmp.eq.s32.totalorder %s26, 1
      %p296 = scmp.ne.s32.totalorder %s291, %s293
      %p297 = scmp.eq.s32.totalorder %s26, 0
      %p298 = por %p296, %p297
      %p299 = scmp.ne.s32.totalorder %s291, %s293
      %p300 = scmp.eq.s32.totalorder %s31, 1
      %p301 = por %p299, %p300
      %p302 = scmp.ne.s32.totalorder %s293, %s294
      %p303 = scmp.eq.s32.totalorder %s31, 0
      %p304 = por %p302, %p303
      %p305 = scmp.ne.s32.totalorder %s293, %s294
      %p306 = scmp.eq.s32.totalorder %s32, 1
      %p307 = por %p305, %p306
      %p309 = scmp.ne.s32.totalorder %s294, %s308
      %p310 = scmp.eq.s32.totalorder %s32, 0
      %p311 = por %p309, %p310
      %s313 = sadd.s32 %s312, 1
      %p316 = scmp.eq.s32.totalorder %s26, 1
      %p317 = scmp.ne.s32.totalorder %s312, %s314
      %p318 = scmp.eq.s32.totalorder %s26, 0
      %p319 = por %p317, %p318
      %p320 = scmp.ne.s32.totalorder %s312, %s314
      %p321 = scmp.eq.s32.totalorder %s31, 1
      %p322 = por %p320, %p321
      %p323 = scmp.ne.s32.totalorder %s314, %s315
      %p324 = scmp.eq.s32.totalorder %s31, 0
      %p325 = por %p323, %p324
      %p326 = scmp.ne.s32.totalorder %s314, %s315
      %p327 = scmp.eq.s32.totalorder %s32, 1
      %p328 = por %p326, %p327
      %p330 = scmp.ne.s32.totalorder %s315, %s329
      %p331 = scmp.eq.s32.totalorder %s32, 0
      %p332 = por %p330, %p331
      %s334 = sadd.s32 %s333, 1
      %p337 = scmp.eq.s32.totalorder %s26, 1
      %p338 = scmp.ne.s32.totalorder %s333, %s335
      %p339 = scmp.eq.s32.totalorder %s26, 0
      %p340 = por %p338, %p339
      %p341 = scmp.ne.s32.totalorder %s333, %s335
      %p342 = scmp.eq.s32.totalorder %s31, 1
      %p343 = por %p341, %p342
      %p344 = scmp.ne.s32.totalorder %s335, %s336
      %p345 = scmp.eq.s32.totalorder %s31, 0
      %p346 = por %p344, %p345
      %p347 = scmp.ne.s32.totalorder %s335, %s336
      %p348 = scmp.eq.s32.totalorder %s32, 1
      %p349 = por %p347, %p348
      %p351 = scmp.ne.s32.totalorder %s336, %s350
      %p352 = scmp.eq.s32.totalorder %s32, 0
      %p353 = por %p351, %p352
      %s355 = sadd.s32 %s354, 1
      %p358 = scmp.eq.s32.totalorder %s26, 1
      %p359 = scmp.ne.s32.totalorder %s354, %s356
      %p360 = scmp.eq.s32.totalorder %s26, 0
      %p361 = por %p359, %p360
      %p362 = scmp.ne.s32.totalorder %s354, %s356
      %p363 = scmp.eq.s32.totalorder %s31, 1
      %p364 = por %p362, %p363
      %p365 = scmp.ne.s32.totalorder %s356, %s357
      %p366 = scmp.eq.s32.totalorder %s31, 0
      %p367 = por %p365, %p366
      %p368 = scmp.ne.s32.totalorder %s356, %s357
      %p369 = scmp.eq.s32.totalorder %s32, 1
      %p370 = por %p368, %p369
      %p372 = scmp.ne.s32.totalorder %s357, %s371
      %p373 = scmp.eq.s32.totalorder %s32, 0
      %p374 = por %p372, %p373
      %s376 = sadd.s32 %s375, 1
      %p379 = scmp.eq.s32.totalorder %s26, 1
      %p380 = scmp.ne.s32.totalorder %s375, %s377
      %p381 = scmp.eq.s32.totalorder %s26, 0
      %p382 = por %p380, %p381
      %p383 = scmp.ne.s32.totalorder %s375, %s377
      %p384 = scmp.eq.s32.totalorder %s31, 1
      %p385 = por %p383, %p384
      %p386 = scmp.ne.s32.totalorder %s377, %s378
      %p387 = scmp.eq.s32.totalorder %s31, 0
      %p388 = por %p386, %p387
      %p389 = scmp.ne.s32.totalorder %s377, %s378
      %p390 = scmp.eq.s32.totalorder %s32, 1
      %p391 = por %p389, %p390
      %p393 = scmp.ne.s32.totalorder %s378, %s392
      %p394 = scmp.eq.s32.totalorder %s32, 0
      %p395 = por %p393, %p394
      %s396 = ssub.s32 %s26, %s33
      %p397 = scmp.eq.s32.totalorder %s396, 0
      %s399 = sadd.s32 %s398, 1
      %s400 = scalar_select %p397, %s398, %s399
      %p403 = pneg %p397
      %p404 = scmp.eq.s32.totalorder %s26, 1
      %p405 = por %p403, %p404
      %p406 = scmp.ne.s32.totalorder %s398, %s401
      %p407 = scmp.eq.s32.totalorder %s26, 0
      %p408 = por %p406, %p407
      %p409 = scmp.ne.s32.totalorder %s398, %s401
      %p410 = scmp.eq.s32.totalorder %s31, 1
      %p411 = por %p409, %p410
      %p412 = scmp.ne.s32.totalorder %s401, %s402
      %p413 = scmp.eq.s32.totalorder %s31, 0
      %p414 = por %p412, %p413
      %p415 = scmp.ne.s32.totalorder %s401, %s402
      %p416 = scmp.eq.s32.totalorder %s32, 1
      %p417 = por %p415, %p416
      %p419 = scmp.ne.s32.totalorder %s402, %s418
      %p420 = scmp.eq.s32.totalorder %s32, 0
      %p421 = por %p419, %p420
      %p422 = scmp.le.s32.totalorder 1, %s26
      %p423 = scmp.lt.s32.totalorder %s26, 3
      %p424 = pnand %p422, %p423
      %p425 = pneg %p424
      // Predicated region
      $region9: #{tpu_custom_call.1} parent=5 // pred_check
        _
      $region10: #{tpu_custom_call.1} parent=5 // pred_check_branch
        %427 = sbr.rel (%p424) target = $region12
      $region11: #{tpu_custom_call.1} parent=5 // pred_region
        %s428 = ssub.s32 %s26, 1
        // Predicated region
        $region13: #{tpu_custom_call.1} parent=11 // pred_check
          %p429 = pneg %p73
        $region14: #{tpu_custom_call.1} parent=11 // pred_check_branch
          %431 = sbr.rel (%p429) target = $region16
        $region15: #{tpu_custom_call.1} parent=11 // pred_region
          _
        $region16: #{tpu_custom_call.1} parent=11 // pred_fallthru
          _
        // Predicated region
        $region17: #{tpu_custom_call.1} parent=11 // pred_check
          %p432 = pneg %p94
        $region18: #{tpu_custom_call.1} parent=11 // pred_check_branch
          %434 = sbr.rel (%p432) target = $region20
        $region19: #{tpu_custom_call.1} parent=11 // pred_region
          _
        $region20: #{tpu_custom_call.1} parent=11 // pred_fallthru
          _
        // Predicated region
        $region21: #{tpu_custom_call.1} parent=11 // pred_check
          %p435 = pneg %p115
        $region22: #{tpu_custom_call.1} parent=11 // pred_check_branch
          %437 = sbr.rel (%p435) target = $region24
        $region23: #{tpu_custom_call.1} parent=11 // pred_region
          _
        $region24: #{tpu_custom_call.1} parent=11 // pred_fallthru
          _
        // Predicated region
        $region25: #{tpu_custom_call.1} parent=11 // pred_check
          %p438 = pneg %p136
        $region26: #{tpu_custom_call.1} parent=11 // pred_check_branch
          %440 = sbr.rel (%p438) target = $region28
        $region27: #{tpu_custom_call.1} parent=11 // pred_region
          _
        $region28: #{tpu_custom_call.1} parent=11 // pred_fallthru
          _
        // Predicated region
        $region29: #{tpu_custom_call.1} parent=11 // pred_check
          %p441 = pneg %p157
        $region30: #{tpu_custom_call.1} parent=11 // pred_check_branch
          %443 = sbr.rel (%p441) target = $region32
        $region31: #{tpu_custom_call.1} parent=11 // pred_region
          _
        $region32: #{tpu_custom_call.1} parent=11 // pred_fallthru
          _
        // Predicated region
        $region33: #{tpu_custom_call.1} parent=11 // pred_check
          %p444 = pneg %p178
        $region34: #{tpu_custom_call.1} parent=11 // pred_check_branch
          %446 = sbr.rel (%p444) target = $region36
        $region35: #{tpu_custom_call.1} parent=11 // pred_region
          _
        $region36: #{tpu_custom_call.1} parent=11 // pred_fallthru
          _
        // Predicated region
        $region37: #{tpu_custom_call.1} parent=11 // pred_check
          %p447 = pneg %p199
        $region38: #{tpu_custom_call.1} parent=11 // pred_check_branch
          %449 = sbr.rel (%p447) target = $region40
        $region39: #{tpu_custom_call.1} parent=11 // pred_region
          _
        $region40: #{tpu_custom_call.1} parent=11 // pred_fallthru
          _
        // Predicated region
        $region41: #{tpu_custom_call.1} parent=11 // pred_check
          %p450 = pneg %p220
        $region42: #{tpu_custom_call.1} parent=11 // pred_check_branch
          %452 = sbr.rel (%p450) target = $region44
        $region43: #{tpu_custom_call.1} parent=11 // pred_region
          _
        $region44: #{tpu_custom_call.1} parent=11 // pred_fallthru
          _
        // Predicated region
        $region45: #{tpu_custom_call.1} parent=11 // pred_check
          %p453 = pneg %p241
        $region46: #{tpu_custom_call.1} parent=11 // pred_check_branch
          %455 = sbr.rel (%p453) target = $region48
        $region47: #{tpu_custom_call.1} parent=11 // pred_region
          _
        $region48: #{tpu_custom_call.1} parent=11 // pred_fallthru
          _
        // Predicated region
        $region49: #{tpu_custom_call.1} parent=11 // pred_check
          %p456 = pneg %p262
        $region50: #{tpu_custom_call.1} parent=11 // pred_check_branch
          %458 = sbr.rel (%p456) target = $region52
        $region51: #{tpu_custom_call.1} parent=11 // pred_region
          _
        $region52: #{tpu_custom_call.1} parent=11 // pred_fallthru
          _
        // Predicated region
        $region53: #{tpu_custom_call.1} parent=11 // pred_check
          %p459 = pneg %p283
        $region54: #{tpu_custom_call.1} parent=11 // pred_check_branch
          %461 = sbr.rel (%p459) target = $region56
        $region55: #{tpu_custom_call.1} parent=11 // pred_region
          _
        $region56: #{tpu_custom_call.1} parent=11 // pred_fallthru
          _
        // Predicated region
        $region57: #{tpu_custom_call.1} parent=11 // pred_check
          %p462 = pneg %p304
        $region58: #{tpu_custom_call.1} parent=11 // pred_check_branch
          %464 = sbr.rel (%p462) target = $region60
        $region59: #{tpu_custom_call.1} parent=11 // pred_region
          _
        $region60: #{tpu_custom_call.1} parent=11 // pred_fallthru
          _
        // Predicated region
        $region61: #{tpu_custom_call.1} parent=11 // pred_check
          %p465 = pneg %p325
        $region62: #{tpu_custom_call.1} parent=11 // pred_check_branch
          %467 = sbr.rel (%p465) target = $region64
        $region63: #{tpu_custom_call.1} parent=11 // pred_region
          _
        $region64: #{tpu_custom_call.1} parent=11 // pred_fallthru
          _
        // Predicated region
        $region65: #{tpu_custom_call.1} parent=11 // pred_check
          %p468 = pneg %p346
        $region66: #{tpu_custom_call.1} parent=11 // pred_check_branch
          %470 = sbr.rel (%p468) target = $region68
        $region67: #{tpu_custom_call.1} parent=11 // pred_region
          _
        $region68: #{tpu_custom_call.1} parent=11 // pred_fallthru
          _
        // Predicated region
        $region69: #{tpu_custom_call.1} parent=11 // pred_check
          %p471 = pneg %p367
        $region70: #{tpu_custom_call.1} parent=11 // pred_check_branch
          %473 = sbr.rel (%p471) target = $region72
        $region71: #{tpu_custom_call.1} parent=11 // pred_region
          _
        $region72: #{tpu_custom_call.1} parent=11 // pred_fallthru
          _
        // Predicated region
        $region73: #{tpu_custom_call.1} parent=11 // pred_check
          %p474 = pneg %p388
        $region74: #{tpu_custom_call.1} parent=11 // pred_check_branch
          %476 = sbr.rel (%p474) target = $region76
        $region75: #{tpu_custom_call.1} parent=11 // pred_region
          _
        $region76: #{tpu_custom_call.1} parent=11 // pred_fallthru
          _
      $region12: #{tpu_custom_call.1} parent=5 // pred_fallthru
        _
      %p477 = scmp.lt.s32.totalorder %s26, 2
      // Predicated region
      $region77: #{tpu_custom_call.1} parent=5 // pred_check
        %p478 = pneg %p477
      $region78: #{tpu_custom_call.1} parent=5 // pred_check_branch
        %480 = sbr.rel (%p478) target = $region80
      $region79: #{tpu_custom_call.1} parent=5 // pred_region
        // Predicated region
        $region81: #{tpu_custom_call.1} parent=79 // pred_check
          %p481 = pneg %p46
        $region82: #{tpu_custom_call.1} parent=79 // pred_check_branch
          %483 = sbr.rel (%p481) target = $region84
        $region83: #{tpu_custom_call.1} parent=79 // pred_region
          %p484 = scmp.lt.s32.totalorder %s26, 1
          %s485 = scalar_select %p484, %s26, 1
          %s486 = smul.addr %s485, 8
          %s487 = scalar_lea.vmem %s0, %s486
        $region84: #{tpu_custom_call.1} parent=79 // pred_fallthru
          _
      $region80: #{tpu_custom_call.1} parent=5 // pred_fallthru
        _
      %p488 = scmp.le.s32.totalorder 1, %s26
      %p489 = scmp.lt.s32.totalorder %s26, 3
      %p490 = pnand %p488, %p489
      %p491 = pneg %p490
      // Predicated region
      $region85: #{tpu_custom_call.1} parent=5 // pred_check
        _
      $region86: #{tpu_custom_call.1} parent=5 // pred_check_branch
        %493 = sbr.rel (%p490) target = $region88
      $region87: #{tpu_custom_call.1} parent=5 // pred_region
        %s494 = ssub.s32 %s26, 1
        %p495 = scmp.lt.s32.totalorder %s31, 1
        %s496 = scalar_select %p495, %s31, 1
        %s497 = smul.addr %s496, 8
        %s498 = scalar_lea.vmem %s0, %s497
        %p499 = pneg %p52
        %p500 = pneg %p49
        %p501 = pneg %p73
        %p502 = pneg %p70
        %p503 = pneg %p94
        %p504 = pneg %p91
        %p505 = pneg %p115
        %p506 = pneg %p112
        %p507 = pneg %p136
        %p508 = pneg %p133
        %p509 = pneg %p157
        %p510 = pneg %p154
        %p511 = pneg %p178
        %p512 = pneg %p175
        %p513 = pneg %p199
        %p514 = pneg %p196
        %p515 = pneg %p220
        %p516 = pneg %p217
        %p517 = pneg %p241
        %p518 = pneg %p238
        %p519 = pneg %p262
        %p520 = pneg %p259
        %p521 = pneg %p283
        %p522 = pneg %p280
        %p523 = pneg %p304
        %p524 = pneg %p301
        %p525 = pneg %p325
        %p526 = pneg %p322
        %p527 = pneg %p346
        %p528 = pneg %p343
        %p529 = pneg %p367
        %p530 = pneg %p364
        %p531 = pneg %p388
        %p532 = pneg %p385
        %p533 = pneg %p414
        %p534 = pneg %p411
        %s535 = sand.u32 %s401, 1
        %s536 = scalar_lea.sflag [#allocation3], %s535
        %s537 = sand.u32 %s401, 1
        %s538 = smul.addr %s537, 8
        %s539 = scalar_lea.vmem [#allocation2], %s538
        %p540 = scmp.lt.s32.totalorder %s31, 1
        %s541 = scalar_select %p540, %s31, 1
        %s542 = smul.addr %s541, 8
        %s543 = scalar_lea.vmem %s0, %s542
        %v544 = vld [vmem:[%s543] sm:$0xff]
        %v545 = vld [vmem:[%s1] sm:$0x1]
        %v546 = vld [vmem:[%s2] sm:$0x1]
        %vm547 = vcmask 261120
        %v548 = vsel %vm547, %v544, 0.0
        %549 = vadd.xlane.f32.xlu0 %v548
        %v550 = vpop.xlane.xlu0 %549
        %v551 = vrcp.pop 32.0
        %v552 = vmul.f32 %v550, %v551
        %v553 = vsub.f32 %v544, %v552
        %v554 = vmul.f32 %v553, %v553
        %v555 = vsel %vm547, %v554, 0.0
        %556 = vadd.xlane.f32.xlu0 %v555
        %v557 = vpop.xlane.xlu0 %556
        %v558 = vmul.f32 %v557, %v551
        %v559 = vadd.f32 %v558, 1e-05
        %v560 = vrsqrt.pop %v559
        %v561 = vmul.f32 %v553, %v560
        %v563 = vlaneseq
        %v564 = vshrl.u32 %v563, 7
        %v565 = vsub.s32 0, %v564
        %v566 = vrot.slane %v545, %v565
        %v568 = vmul.f32 %v561, %v566
        %v570 = vlaneseq
        %v571 = vshrl.u32 %v570, 7
        %v572 = vsub.s32 0, %v571
        %v573 = vrot.slane %v546, %v572
        %v575 = vadd.f32 %v568, %v573
        %v576 = vld [vmem:[%s3] sm:$0xff]
        %v577 = vld [vmem:[%s3 + $0x8] sm:$0xff]
        %v578 = vld [vmem:[%s3 + $0x10] sm:$0xff]
        %v579 = vld [vmem:[%s3 + $0x18] sm:$0xff]
        %v580 = vld [vmem:[%s4] sm:$0x1]
        %v582 = vlaneseq
        %v583 = vshrl.u32 %v582, 7
        %v584 = vsub.s32 0, %v583
        %v585 = vrot.slane %v580, %v584
        %v588 = vsel %vm547, %v575, 0
        %590 = vmatprep.subr.mxu0 0.0
        %591 = vmatpush1.msra.mxu0 %v576
        %592 = vmatprep.subr.mxu0 0.0
        %593 = vmatpush1.msra.mxu0 %v577
        %594 = vmatprep.subr.mxu0 0.0
        %595 = vmatpush1.msra.mxu0 %v578
        %596 = vmatprep.subr.mxu0 0.0
        %597 = vmatpush1.msra.mxu0 %v579
        %598 = vmatprep.subr.mxu0 0.0
        %599 = vmatpush1.msra.mxu0 0.0
        %600 = vmatprep.subr.mxu0 0.0
        %601 = vmatpush1.msra.mxu0 0.0
        %602 = vmatprep.subr.mxu0 0.0
        %603 = vmatpush1.msra.mxu0 0.0
        %604 = vmatprep.subr.mxu0 0.0
        %605 = vmatpush1.msra.mxu0 0.0
        %606 = vmatprep.subr.mxu0 0.0
        %607 = vmatpush1.msra.mxu0 0.0
        %608 = vmatprep.subr.mxu0 0.0
        %609 = vmatpush1.msra.mxu0 0.0
        %610 = vmatprep.subr.mxu0 0.0
        %611 = vmatpush1.msra.mxu0 0.0
        %612 = vmatprep.subr.mxu0 0.0
        %613 = vmatpush1.msra.mxu0 0.0
        %614 = vmatprep.subr.mxu0 0.0
        %615 = vmatpush1.msra.mxu0 0.0
        %616 = vmatprep.subr.mxu0 0.0
        %617 = vmatpush1.msra.mxu0 0.0
        %618 = vmatprep.subr.mxu0 0.0
        %619 = vmatpush1.msra.mxu0 0.0
        %620 = vmatprep.subr.mxu0 0.0
        %621 = vmatpush1.msra.mxu0 0.0
        %622 = vmatprep.subr.mxu0 0.0
        %623 = vmatpush1.msra.mxu0 0.0
        %624 = vmatprep.subr.mxu0 0.0
        %625 = vmatpush1.msra.mxu0 0.0
        %626 = vmatprep.subr.mxu0 0.0
        %627 = vmatpush1.msra.mxu0 0.0
        %628 = vmatprep.subr.mxu0 0.0
        %629 = vmatpush1.msra.mxu0 0.0
        %630 = vmatprep.subr.mxu0 0.0
        %631 = vmatpush1.msra.mxu0 0.0
        %632 = vmatprep.subr.mxu0 0.0
        %633 = vmatpush1.msra.mxu0 0.0
        %634 = vmatprep.subr.mxu0 0.0
        %635 = vmatpush1.msra.mxu0 0.0
        %636 = vmatprep.subr.mxu0 0.0
        %637 = vmatpush1.msra.mxu0 0.0
        %638 = vmatprep.subr.mxu0 0.0
        %639 = vmatpush1.msra.mxu0 0.0
        %640 = vmatprep.subr.mxu0 0.0
        %641 = vmatpush1.msra.mxu0 0.0
        %642 = vmatprep.subr.mxu0 0.0
        %643 = vmatpush1.msra.mxu0 0.0
        %644 = vmatprep.subr.mxu0 0.0
        %645 = vmatpush1.msra.mxu0 0.0
        %646 = vmatprep.subr.mxu0 0.0
        %647 = vmatpush1.msra.mxu0 0.0
        %648 = vmatprep.subr.mxu0 0.0
        %649 = vmatpush1.msra.mxu0 0.0
        %650 = vmatprep.subr.mxu0 0.0
        %651 = vmatpush1.msra.mxu0 0.0
        %652 = vmatprep.subr.mxu0 0.0
        %653 = vmatpush1.msra.mxu0 0.0
        %654 = vmatprep.mubr.f32.mxu0 0.0
        %655 = vmatmul.mubr.f32.gmra.mrb[0].mxu0 %v588
        %v656 = vpop.f32.mrb[0].mxu0
        %v657 = vadd.f32 %v585, %v656
        %v658 = vpop.f32.mrb[0].mxu0
        %659 = vdwg.mxu0
        %v660 = vld [vmem:[%s5] sm:$0xff]
        %v661 = vld [vmem:[%s5 + $0x8] sm:$0xff]
        %v662 = vld [vmem:[%s5 + $0x10] sm:$0xff]
        %v663 = vld [vmem:[%s5 + $0x18] sm:$0xff]
        %v664 = vld [vmem:[%s6] sm:$0x1]
        %v666 = vlaneseq
        %v667 = vshrl.u32 %v666, 7
        %v668 = vsub.s32 0, %v667
        %v669 = vrot.slane %v664, %v668
        %671 = vmatprep.subr.mxu0 0.0
        %672 = vmatpush1.msra.mxu0 %v660
        %673 = vmatprep.subr.mxu0 0.0
        %674 = vmatpush1.msra.mxu0 %v661
        %675 = vmatprep.subr.mxu0 0.0
        %676 = vmatpush1.msra.mxu0 %v662
        %677 = vmatprep.subr.mxu0 0.0
        %678 = vmatpush1.msra.mxu0 %v663
        %679 = vmatprep.subr.mxu0 0.0
        %680 = vmatpush1.msra.mxu0 0.0
        %681 = vmatprep.subr.mxu0 0.0
        %682 = vmatpush1.msra.mxu0 0.0
        %683 = vmatprep.subr.mxu0 0.0
        %684 = vmatpush1.msra.mxu0 0.0
        %685 = vmatprep.subr.mxu0 0.0
        %686 = vmatpush1.msra.mxu0 0.0
        %687 = vmatprep.subr.mxu0 0.0
        %688 = vmatpush1.msra.mxu0 0.0
        %689 = vmatprep.subr.mxu0 0.0
        %690 = vmatpush1.msra.mxu0 0.0
        %691 = vmatprep.subr.mxu0 0.0
        %692 = vmatpush1.msra.mxu0 0.0
        %693 = vmatprep.subr.mxu0 0.0
        %694 = vmatpush1.msra.mxu0 0.0
        %695 = vmatprep.subr.mxu0 0.0
        %696 = vmatpush1.msra.mxu0 0.0
        %697 = vmatprep.subr.mxu0 0.0
        %698 = vmatpush1.msra.mxu0 0.0
        %699 = vmatprep.subr.mxu0 0.0
        %700 = vmatpush1.msra.mxu0 0.0
        %701 = vmatprep.subr.mxu0 0.0
        %702 = vmatpush1.msra.mxu0 0.0
        %703 = vmatprep.subr.mxu0 0.0
        %704 = vmatpush1.msra.mxu0 0.0
        %705 = vmatprep.subr.mxu0 0.0
        %706 = vmatpush1.msra.mxu0 0.0
        %707 = vmatprep.subr.mxu0 0.0
        %708 = vmatpush1.msra.mxu0 0.0
        %709 = vmatprep.subr.mxu0 0.0
        %710 = vmatpush1.msra.mxu0 0.0
        %711 = vmatprep.subr.mxu0 0.0
        %712 = vmatpush1.msra.mxu0 0.0
        %713 = vmatprep.subr.mxu0 0.0
        %714 = vmatpush1.msra.mxu0 0.0
        %715 = vmatprep.subr.mxu0 0.0
        %716 = vmatpush1.msra.mxu0 0.0
        %717 = vmatprep.subr.mxu0 0.0
        %718 = vmatpush1.msra.mxu0 0.0
        %719 = vmatprep.subr.mxu0 0.0
        %720 = vmatpush1.msra.mxu0 0.0
        %721 = vmatprep.subr.mxu0 0.0
        %722 = vmatpush1.msra.mxu0 0.0
        %723 = vmatprep.subr.mxu0 0.0
        %724 = vmatpush1.msra.mxu0 0.0
        %725 = vmatprep.subr.mxu0 0.0
        %726 = vmatpush1.msra.mxu0 0.0
        %727 = vmatprep.subr.mxu0 0.0
        %728 = vmatpush1.msra.mxu0 0.0
        %729 = vmatprep.subr.mxu0 0.0
        %730 = vmatpush1.msra.mxu0 0.0
        %731 = vmatprep.subr.mxu0 0.0
        %732 = vmatpush1.msra.mxu0 0.0
        %733 = vmatprep.subr.mxu0 0.0
        %734 = vmatpush1.msra.mxu0 0.0
        %735 = vmatprep.mubr.f32.mxu0 0.0
        %736 = vmatmul.mubr.f32.gmra.mrb[0].mxu0 %v588
        %v737 = vpop.f32.mrb[0].mxu0
        %v738 = vadd.f32 %v669, %v737
        %v739 = vpop.f32.mrb[0].mxu0
        %740 = vdwg.mxu0
        %v741 = vld [vmem:[%s7] sm:$0xff]
        %v742 = vld [vmem:[%s7 + $0x8] sm:$0xff]
        %v743 = vld [vmem:[%s7 + $0x10] sm:$0xff]
        %v744 = vld [vmem:[%s7 + $0x18] sm:$0xff]
        %v745 = vld [vmem:[%s8] sm:$0x1]
        %v747 = vlaneseq
        %v748 = vshrl.u32 %v747, 7
        %v749 = vsub.s32 0, %v748
        %v750 = vrot.slane %v745, %v749
        %752 = vmatprep.subr.mxu0 0.0
        %753 = vmatpush1.msra.mxu0 %v741
        %754 = vmatprep.subr.mxu0 0.0
        %755 = vmatpush1.msra.mxu0 %v742
        %756 = vmatprep.subr.mxu0 0.0
        %757 = vmatpush1.msra.mxu0 %v743
        %758 = vmatprep.subr.mxu0 0.0
        %759 = vmatpush1.msra.mxu0 %v744
        %760 = vmatprep.subr.mxu0 0.0
        %761 = vmatpush1.msra.mxu0 0.0
        %762 = vmatprep.subr.mxu0 0.0
        %763 = vmatpush1.msra.mxu0 0.0
        %764 = vmatprep.subr.mxu0 0.0
        %765 = vmatpush1.msra.mxu0 0.0
        %766 = vmatprep.subr.mxu0 0.0
        %767 = vmatpush1.msra.mxu0 0.0
        %768 = vmatprep.subr.mxu0 0.0
        %769 = vmatpush1.msra.mxu0 0.0
        %770 = vmatprep.subr.mxu0 0.0
        %771 = vmatpush1.msra.mxu0 0.0
        %772 = vmatprep.subr.mxu0 0.0
        %773 = vmatpush1.msra.mxu0 0.0
        %774 = vmatprep.subr.mxu0 0.0
        %775 = vmatpush1.msra.mxu0 0.0
        %776 = vmatprep.subr.mxu0 0.0
        %777 = vmatpush1.msra.mxu0 0.0
        %778 = vmatprep.subr.mxu0 0.0
        %779 = vmatpush1.msra.mxu0 0.0
        %780 = vmatprep.subr.mxu0 0.0
        %781 = vmatpush1.msra.mxu0 0.0
        %782 = vmatprep.subr.mxu0 0.0
        %783 = vmatpush1.msra.mxu0 0.0
        %784 = vmatprep.subr.mxu0 0.0
        %785 = vmatpush1.msra.mxu0 0.0
        %786 = vmatprep.subr.mxu0 0.0
        %787 = vmatpush1.msra.mxu0 0.0
        %788 = vmatprep.subr.mxu0 0.0
        %789 = vmatpush1.msra.mxu0 0.0
        %790 = vmatprep.subr.mxu0 0.0
        %791 = vmatpush1.msra.mxu0 0.0
        %792 = vmatprep.subr.mxu0 0.0
        %793 = vmatpush1.msra.mxu0 0.0
        %794 = vmatprep.subr.mxu0 0.0
        %795 = vmatpush1.msra.mxu0 0.0
        %796 = vmatprep.subr.mxu0 0.0
        %797 = vmatpush1.msra.mxu0 0.0
        %798 = vmatprep.subr.mxu0 0.0
        %799 = vmatpush1.msra.mxu0 0.0
        %800 = vmatprep.subr.mxu0 0.0
        %801 = vmatpush1.msra.mxu0 0.0
        %802 = vmatprep.subr.mxu0 0.0
        %803 = vmatpush1.msra.mxu0 0.0
        %804 = vmatprep.subr.mxu0 0.0
        %805 = vmatpush1.msra.mxu0 0.0
        %806 = vmatprep.subr.mxu0 0.0
        %807 = vmatpush1.msra.mxu0 0.0
        %808 = vmatprep.subr.mxu0 0.0
        %809 = vmatpush1.msra.mxu0 0.0
        %810 = vmatprep.subr.mxu0 0.0
        %811 = vmatpush1.msra.mxu0 0.0
        %812 = vmatprep.subr.mxu0 0.0
        %813 = vmatpush1.msra.mxu0 0.0
        %814 = vmatprep.subr.mxu0 0.0
        %815 = vmatpush1.msra.mxu0 0.0
        %816 = vmatprep.mubr.f32.mxu0 0.0
        %817 = vmatmul.mubr.f32.gmra.mrb[0].mxu0 %v588
        %v818 = vpop.f32.mrb[0].mxu0
        %v819 = vadd.f32 %v750, %v818
        %v820 = vpop.f32.mrb[0].mxu0
        %821 = vdwg.mxu0
        %vm822 = vcmask 64512
        %v824 = vsel %vm822, %v657, 0
        %v827 = vsel %vm822, %v738, 0
        %829 = vmatprep.subr.mxu0 0.0
        %830 = vmatpush1.xpose.msra.mxu0 %v827
        %831 = vmatprep.subr.mxu0 0.0
        %832 = vmatpush1.xpose.msra.mxu0 0.0
        %833 = vmatprep.subr.mxu0 0.0
        %834 = vmatpush1.xpose.msra.mxu0 0.0
        %835 = vmatprep.subr.mxu0 0.0
        %836 = vmatpush1.xpose.msra.mxu0 0.0
        %837 = vmatprep.subr.mxu0 0.0
        %838 = vmatpush1.xpose.msra.mxu0 0.0
        %839 = vmatprep.subr.mxu0 0.0
        %840 = vmatpush1.xpose.msra.mxu0 0.0
        %841 = vmatprep.subr.mxu0 0.0
        %842 = vmatpush1.xpose.msra.mxu0 0.0
        %843 = vmatprep.subr.mxu0 0.0
        %844 = vmatpush1.xpose.msra.mxu0 0.0
        %845 = vmatprep.subr.mxu0 0.0
        %846 = vmatpush1.xpose.msra.mxu0 0.0
        %847 = vmatprep.subr.mxu0 0.0
        %848 = vmatpush1.xpose.msra.mxu0 0.0
        %849 = vmatprep.subr.mxu0 0.0
        %850 = vmatpush1.xpose.msra.mxu0 0.0
        %851 = vmatprep.subr.mxu0 0.0
        %852 = vmatpush1.xpose.msra.mxu0 0.0
        %853 = vmatprep.subr.mxu0 0.0
        %854 = vmatpush1.xpose.msra.mxu0 0.0
        %855 = vmatprep.subr.mxu0 0.0
        %856 = vmatpush1.xpose.msra.mxu0 0.0
        %857 = vmatprep.subr.mxu0 0.0
        %858 = vmatpush1.xpose.msra.mxu0 0.0
        %859 = vmatprep.subr.mxu0 0.0
        %860 = vmatpush1.xpose.msra.mxu0 0.0
        %861 = vmatprep.subr.mxu0 0.0
        %862 = vmatpush1.xpose.msra.mxu0 0.0
        %863 = vmatprep.subr.mxu0 0.0
        %864 = vmatpush1.xpose.msra.mxu0 0.0
        %865 = vmatprep.subr.mxu0 0.0
        %866 = vmatpush1.xpose.msra.mxu0 0.0
        %867 = vmatprep.subr.mxu0 0.0
        %868 = vmatpush1.xpose.msra.mxu0 0.0
        %869 = vmatprep.subr.mxu0 0.0
        %870 = vmatpush1.xpose.msra.mxu0 0.0
        %871 = vmatprep.subr.mxu0 0.0
        %872 = vmatpush1.xpose.msra.mxu0 0.0
        %873 = vmatprep.subr.mxu0 0.0
        %874 = vmatpush1.xpose.msra.mxu0 0.0
        %875 = vmatprep.subr.mxu0 0.0
        %876 = vmatpush1.xpose.msra.mxu0 0.0
        %877 = vmatprep.subr.mxu0 0.0
        %878 = vmatpush1.xpose.msra.mxu0 0.0
        %879 = vmatprep.subr.mxu0 0.0
        %880 = vmatpush1.xpose.msra.mxu0 0.0
        %881 = vmatprep.subr.mxu0 0.0
        %882 = vmatpush1.xpose.msra.mxu0 0.0
        %883 = vmatprep.subr.mxu0 0.0
        %884 = vmatpush1.xpose.msra.mxu0 0.0
        %885 = vmatprep.subr.mxu0 0.0
        %886 = vmatpush1.xpose.msra.mxu0 0.0
        %887 = vmatprep.subr.mxu0 0.0
        %888 = vmatpush1.xpose.msra.mxu0 0.0
        %889 = vmatprep.subr.mxu0 0.0
        %890 = vmatpush1.xpose.msra.mxu0 0.0
        %891 = vmatprep.subr.mxu0 0.0
        %892 = vmatpush1.xpose.msra.mxu0 0.0
        %893 = vmatprep.mubr.f32.mxu0 0.0
        %894 = vmatmul.mubr.f32.gmra.mrb[0].mxu0 %v824
        %v895 = vpop.f32.mrb[0].mxu0
        %v896 = vadd.f32 0.0, %v895
        %v897 = vpop.f32.mrb[0].mxu0
        %898 = vdwg.mxu0
        %v899 = vmul.f32 %v896, 0.35355338
        %v900 = vsel %vm822, %v899, -inf
        %901 = vmax.xlane.f32.xlu0 %v900
        %v902 = vpop.xlane.xlu0 %901
        %v903 = vsub.f32 %v899, %v902
        %v904 = vmul.f32 %v903, 1.442695
        %v905 = vpow.pop %v904
        %v906 = vsel %vm822, %v905, 0.0
        %907 = vadd.xlane.f32.xlu0 %v906
        %v908 = vpop.xlane.xlu0 %907
        %v909 = vrcp.pop %v908
        %v910 = vmul.f32 %v905, %v909
        %v912 = vsel %vm822, %v910, 0
        %914 = vmatprep.subr.mxu0 0.0
        %915 = vmatpush1.msra.mxu0 %v819
        %916 = vmatprep.subr.mxu0 0.0
        %917 = vmatpush1.msra.mxu0 0.0
        %918 = vmatprep.subr.mxu0 0.0
        %919 = vmatpush1.msra.mxu0 0.0
        %920 = vmatprep.subr.mxu0 0.0
        %921 = vmatpush1.msra.mxu0 0.0
        %922 = vmatprep.subr.mxu0 0.0
        %923 = vmatpush1.msra.mxu0 0.0
        %924 = vmatprep.subr.mxu0 0.0
        %925 = vmatpush1.msra.mxu0 0.0
        %926 = vmatprep.subr.mxu0 0.0
        %927 = vmatpush1.msra.mxu0 0.0
        %928 = vmatprep.subr.mxu0 0.0
        %929 = vmatpush1.msra.mxu0 0.0
        %930 = vmatprep.subr.mxu0 0.0
        %931 = vmatpush1.msra.mxu0 0.0
        %932 = vmatprep.subr.mxu0 0.0
        %933 = vmatpush1.msra.mxu0 0.0
        %934 = vmatprep.subr.mxu0 0.0
        %935 = vmatpush1.msra.mxu0 0.0
        %936 = vmatprep.subr.mxu0 0.0
        %937 = vmatpush1.msra.mxu0 0.0
        %938 = vmatprep.subr.mxu0 0.0
        %939 = vmatpush1.msra.mxu0 0.0
        %940 = vmatprep.subr.mxu0 0.0
        %941 = vmatpush1.msra.mxu0 0.0
        %942 = vmatprep.subr.mxu0 0.0
        %943 = vmatpush1.msra.mxu0 0.0
        %944 = vmatprep.subr.mxu0 0.0
        %945 = vmatpush1.msra.mxu0 0.0
        %946 = vmatprep.subr.mxu0 0.0
        %947 = vmatpush1.msra.mxu0 0.0
        %948 = vmatprep.subr.mxu0 0.0
        %949 = vmatpush1.msra.mxu0 0.0
        %950 = vmatprep.subr.mxu0 0.0
        %951 = vmatpush1.msra.mxu0 0.0
        %952 = vmatprep.subr.mxu0 0.0
        %953 = vmatpush1.msra.mxu0 0.0
        %954 = vmatprep.subr.mxu0 0.0
        %955 = vmatpush1.msra.mxu0 0.0
        %956 = vmatprep.subr.mxu0 0.0
        %957 = vmatpush1.msra.mxu0 0.0
        %958 = vmatprep.subr.mxu0 0.0
        %959 = vmatpush1.msra.mxu0 0.0
        %960 = vmatprep.subr.mxu0 0.0
        %961 = vmatpush1.msra.mxu0 0.0
        %962 = vmatprep.subr.mxu0 0.0
        %963 = vmatpush1.msra.mxu0 0.0
        %964 = vmatprep.subr.mxu0 0.0
        %965 = vmatpush1.msra.mxu0 0.0
        %966 = vmatprep.subr.mxu0 0.0
        %967 = vmatpush1.msra.mxu0 0.0
        %968 = vmatprep.subr.mxu0 0.0
        %969 = vmatpush1.msra.mxu0 0.0
        %970 = vmatprep.subr.mxu0 0.0
        %971 = vmatpush1.msra.mxu0 0.0
        %972 = vmatprep.subr.mxu0 0.0
        %973 = vmatpush1.msra.mxu0 0.0
        %974 = vmatprep.subr.mxu0 0.0
        %975 = vmatpush1.msra.mxu0 0.0
        %976 = vmatprep.subr.mxu0 0.0
        %977 = vmatpush1.msra.mxu0 0.0
        %978 = vmatprep.mubr.f32.mxu0 0.0
        %979 = vmatmul.mubr.f32.gmra.mrb[0].mxu0 %v912
        %v980 = vpop.f32.mrb[0].mxu0
        %v981 = vadd.f32 0.0, %v980
        %v982 = vpop.f32.mrb[0].mxu0
        %983 = vdwg.mxu0
        %v984 = vld [vmem:[%s9] sm:$0xff]
        %s985 = scalar_lea.vmem %s3, 32
        %v986 = vld [vmem:[%s985] sm:$0xff]
        %v987 = vld [vmem:[%s985 + $0x8] sm:$0xff]
        %v988 = vld [vmem:[%s985 + $0x10] sm:$0xff]
        %v989 = vld [vmem:[%s985 + $0x18] sm:$0xff]
        %s990 = scalar_lea.vmem %s4, 1
        %v991 = vld [vmem:[%s990] sm:$0x1]
        %v993 = vlaneseq
        %v994 = vshrl.u32 %v993, 7
        %v995 = vsub.s32 0, %v994
        %v996 = vrot.slane %v991, %v995
        %998 = vmatprep.subr.mxu0 0.0
        %999 = vmatpush1.msra.mxu0 %v986
        %1000 = vmatprep.subr.mxu0 0.0
        %1001 = vmatpush1.msra.mxu0 %v987
        %1002 = vmatprep.subr.mxu0 0.0
        %1003 = vmatpush1.msra.mxu0 %v988
        %1004 = vmatprep.subr.mxu0 0.0
        %1005 = vmatpush1.msra.mxu0 %v989
        %1006 = vmatprep.subr.mxu0 0.0
        %1007 = vmatpush1.msra.mxu0 0.0
        %1008 = vmatprep.subr.mxu0 0.0
        %1009 = vmatpush1.msra.mxu0 0.0
        %1010 = vmatprep.subr.mxu0 0.0
        %1011 = vmatpush1.msra.mxu0 0.0
        %1012 = vmatprep.subr.mxu0 0.0
        %1013 = vmatpush1.msra.mxu0 0.0
        %1014 = vmatprep.subr.mxu0 0.0
        %1015 = vmatpush1.msra.mxu0 0.0
        %1016 = vmatprep.subr.mxu0 0.0
        %1017 = vmatpush1.msra.mxu0 0.0
        %1018 = vmatprep.subr.mxu0 0.0
        %1019 = vmatpush1.msra.mxu0 0.0
        %1020 = vmatprep.subr.mxu0 0.0
        %1021 = vmatpush1.msra.mxu0 0.0
        %1022 = vmatprep.subr.mxu0 0.0
        %1023 = vmatpush1.msra.mxu0 0.0
        %1024 = vmatprep.subr.mxu0 0.0
        %1025 = vmatpush1.msra.mxu0 0.0
        %1026 = vmatprep.subr.mxu0 0.0
        %1027 = vmatpush1.msra.mxu0 0.0
        %1028 = vmatprep.subr.mxu0 0.0
        %1029 = vmatpush1.msra.mxu0 0.0
        %1030 = vmatprep.subr.mxu0 0.0
        %1031 = vmatpush1.msra.mxu0 0.0
        %1032 = vmatprep.subr.mxu0 0.0
        %1033 = vmatpush1.msra.mxu0 0.0
        %1034 = vmatprep.subr.mxu0 0.0
        %1035 = vmatpush1.msra.mxu0 0.0
        %1036 = vmatprep.subr.mxu0 0.0
        %1037 = vmatpush1.msra.mxu0 0.0
        %1038 = vmatprep.subr.mxu0 0.0
        %1039 = vmatpush1.msra.mxu0 0.0
        %1040 = vmatprep.subr.mxu0 0.0
        %1041 = vmatpush1.msra.mxu0 0.0
        %1042 = vmatprep.subr.mxu0 0.0
        %1043 = vmatpush1.msra.mxu0 0.0
        %1044 = vmatprep.subr.mxu0 0.0
        %1045 = vmatpush1.msra.mxu0 0.0
        %1046 = vmatprep.subr.mxu0 0.0
        %1047 = vmatpush1.msra.mxu0 0.0
        %1048 = vmatprep.subr.mxu0 0.0
        %1049 = vmatpush1.msra.mxu0 0.0
        %1050 = vmatprep.subr.mxu0 0.0
        %1051 = vmatpush1.msra.mxu0 0.0
        %1052 = vmatprep.subr.mxu0 0.0
        %1053 = vmatpush1.msra.mxu0 0.0
        %1054 = vmatprep.subr.mxu0 0.0
        %1055 = vmatpush1.msra.mxu0 0.0
        %1056 = vmatprep.subr.mxu0 0.0
        %1057 = vmatpush1.msra.mxu0 0.0
        %1058 = vmatprep.subr.mxu0 0.0
        %1059 = vmatpush1.msra.mxu0 0.0
        %1060 = vmatprep.subr.mxu0 0.0
        %1061 = vmatpush1.msra.mxu0 0.0
        %1062 = vmatprep.mubr.f32.mxu0 0.0
        %1063 = vmatmul.mubr.f32.gmra.mrb[0].mxu0 %v588
        %v1064 = vpop.f32.mrb[0].mxu0
        %v1065 = vadd.f32 %v996, %v1064
        %v1066 = vpop.f32.mrb[0].mxu0
        %1067 = vdwg.mxu0
        %s1068 = scalar_lea.vmem %s5, 32
        %v1069 = vld [vmem:[%s1068] sm:$0xff]
        %v1070 = vld [vmem:[%s1068 + $0x8] sm:$0xff]
        %v1071 = vld [vmem:[%s1068 + $0x10] sm:$0xff]
        %v1072 = vld [vmem:[%s1068 + $0x18] sm:$0xff]
        %s1073 = scalar_lea.vmem %s6, 1
        %v1074 = vld [vmem:[%s1073] sm:$0x1]
        %v1076 = vlaneseq
        %v1077 = vshrl.u32 %v1076, 7
        %v1078 = vsub.s32 0, %v1077
        %v1079 = vrot.slane %v1074, %v1078
        %1081 = vmatprep.subr.mxu0 0.0
        %1082 = vmatpush1.msra.mxu0 %v1069
        %1083 = vmatprep.subr.mxu0 0.0
        %1084 = vmatpush1.msra.mxu0 %v1070
        %1085 = vmatprep.subr.mxu0 0.0
        %1086 = vmatpush1.msra.mxu0 %v1071
        %1087 = vmatprep.subr.mxu0 0.0
        %1088 = vmatpush1.msra.mxu0 %v1072
        %1089 = vmatprep.subr.mxu0 0.0
        %1090 = vmatpush1.msra.mxu0 0.0
        %1091 = vmatprep.subr.mxu0 0.0
        %1092 = vmatpush1.msra.mxu0 0.0
        %1093 = vmatprep.subr.mxu0 0.0
        %1094 = vmatpush1.msra.mxu0 0.0
        %1095 = vmatprep.subr.mxu0 0.0
        %1096 = vmatpush1.msra.mxu0 0.0
        %1097 = vmatprep.subr.mxu0 0.0
        %1098 = vmatpush1.msra.mxu0 0.0
        %1099 = vmatprep.subr.mxu0 0.0
        %1100 = vmatpush1.msra.mxu0 0.0
        %1101 = vmatprep.subr.mxu0 0.0
        %1102 = vmatpush1.msra.mxu0 0.0
        %1103 = vmatprep.subr.mxu0 0.0
        %1104 = vmatpush1.msra.mxu0 0.0
        %1105 = vmatprep.subr.mxu0 0.0
        %1106 = vmatpush1.msra.mxu0 0.0
        %1107 = vmatprep.subr.mxu0 0.0
        %1108 = vmatpush1.msra.mxu0 0.0
        %1109 = vmatprep.subr.mxu0 0.0
        %1110 = vmatpush1.msra.mxu0 0.0
        %1111 = vmatprep.subr.mxu0 0.0
        %1112 = vmatpush1.msra.mxu0 0.0
        %1113 = vmatprep.subr.mxu0 0.0
        %1114 = vmatpush1.msra.mxu0 0.0
        %1115 = vmatprep.subr.mxu0 0.0
        %1116 = vmatpush1.msra.mxu0 0.0
        %1117 = vmatprep.subr.mxu0 0.0
        %1118 = vmatpush1.msra.mxu0 0.0
        %1119 = vmatprep.subr.mxu0 0.0
        %1120 = vmatpush1.msra.mxu0 0.0
        %1121 = vmatprep.subr.mxu0 0.0
        %1122 = vmatpush1.msra.mxu0 0.0
        %1123 = vmatprep.subr.mxu0 0.0
        %1124 = vmatpush1.msra.mxu0 0.0
        %1125 = vmatprep.subr.mxu0 0.0
        %1126 = vmatpush1.msra.mxu0 0.0
        %1127 = vmatprep.subr.mxu0 0.0
        %1128 = vmatpush1.msra.mxu0 0.0
        %1129 = vmatprep.subr.mxu0 0.0
        %1130 = vmatpush1.msra.mxu0 0.0
        %1131 = vmatprep.subr.mxu0 0.0
        %1132 = vmatpush1.msra.mxu0 0.0
        %1133 = vmatprep.subr.mxu0 0.0
        %1134 = vmatpush1.msra.mxu0 0.0
        %1135 = vmatprep.subr.mxu0 0.0
        %1136 = vmatpush1.msra.mxu0 0.0
        %1137 = vmatprep.subr.mxu0 0.0
        %1138 = vmatpush1.msra.mxu0 0.0
        %1139 = vmatprep.subr.mxu0 0.0
        %1140 = vmatpush1.msra.mxu0 0.0
        %1141 = vmatprep.subr.mxu0 0.0
        %1142 = vmatpush1.msra.mxu0 0.0
        %1143 = vmatprep.subr.mxu0 0.0
        %1144 = vmatpush1.msra.mxu0 0.0
        %1145 = vmatprep.mubr.f32.mxu0 0.0
        %1146 = vmatmul.mubr.f32.gmra.mrb[0].mxu0 %v588
        %v1147 = vpop.f32.mrb[0].mxu0
        %v1148 = vadd.f32 %v1079, %v1147
        %v1149 = vpop.f32.mrb[0].mxu0
        %1150 = vdwg.mxu0
        %s1151 = scalar_lea.vmem %s7, 32
        %v1152 = vld [vmem:[%s1151] sm:$0xff]
        %v1153 = vld [vmem:[%s1151 + $0x8] sm:$0xff]
        %v1154 = vld [vmem:[%s1151 + $0x10] sm:$0xff]
        %v1155 = vld [vmem:[%s1151 + $0x18] sm:$0xff]
        %s1156 = scalar_lea.vmem %s8, 1
        %v1157 = vld [vmem:[%s1156] sm:$0x1]
        %v1159 = vlaneseq
        %v1160 = vshrl.u32 %v1159, 7
        %v1161 = vsub.s32 0, %v1160
        %v1162 = vrot.slane %v1157, %v1161
        %1164 = vmatprep.subr.mxu0 0.0
        %1165 = vmatpush1.msra.mxu0 %v1152
        %1166 = vmatprep.subr.mxu0 0.0
        %1167 = vmatpush1.msra.mxu0 %v1153
        %1168 = vmatprep.subr.mxu0 0.0
        %1169 = vmatpush1.msra.mxu0 %v1154
        %1170 = vmatprep.subr.mxu0 0.0
        %1171 = vmatpush1.msra.mxu0 %v1155
        %1172 = vmatprep.subr.mxu0 0.0
        %1173 = vmatpush1.msra.mxu0 0.0
        %1174 = vmatprep.subr.mxu0 0.0
        %1175 = vmatpush1.msra.mxu0 0.0
        %1176 = vmatprep.subr.mxu0 0.0
        %1177 = vmatpush1.msra.mxu0 0.0
        %1178 = vmatprep.subr.mxu0 0.0
        %1179 = vmatpush1.msra.mxu0 0.0
        %1180 = vmatprep.subr.mxu0 0.0
        %1181 = vmatpush1.msra.mxu0 0.0
        %1182 = vmatprep.subr.mxu0 0.0
        %1183 = vmatpush1.msra.mxu0 0.0
        %1184 = vmatprep.subr.mxu0 0.0
        %1185 = vmatpush1.msra.mxu0 0.0
        %1186 = vmatprep.subr.mxu0 0.0
        %1187 = vmatpush1.msra.mxu0 0.0
        %1188 = vmatprep.subr.mxu0 0.0
        %1189 = vmatpush1.msra.mxu0 0.0
        %1190 = vmatprep.subr.mxu0 0.0
        %1191 = vmatpush1.msra.mxu0 0.0
        %1192 = vmatprep.subr.mxu0 0.0
        %1193 = vmatpush1.msra.mxu0 0.0
        %1194 = vmatprep.subr.mxu0 0.0
        %1195 = vmatpush1.msra.mxu0 0.0
        %1196 = vmatprep.subr.mxu0 0.0
        %1197 = vmatpush1.msra.mxu0 0.0
        %1198 = vmatprep.subr.mxu0 0.0
        %1199 = vmatpush1.msra.mxu0 0.0
        %1200 = vmatprep.subr.mxu0 0.0
        %1201 = vmatpush1.msra.mxu0 0.0
        %1202 = vmatprep.subr.mxu0 0.0
        %1203 = vmatpush1.msra.mxu0 0.0
        %1204 = vmatprep.subr.mxu0 0.0
        %1205 = vmatpush1.msra.mxu0 0.0
        %1206 = vmatprep.subr.mxu0 0.0
        %1207 = vmatpush1.msra.mxu0 0.0
        %1208 = vmatprep.subr.mxu0 0.0
        %1209 = vmatpush1.msra.mxu0 0.0
        %1210 = vmatprep.subr.mxu0 0.0
        %1211 = vmatpush1.msra.mxu0 0.0
        %1212 = vmatprep.subr.mxu0 0.0
        %1213 = vmatpush1.msra.mxu0 0.0
        %1214 = vmatprep.subr.mxu0 0.0
        %1215 = vmatpush1.msra.mxu0 0.0
        %1216 = vmatprep.subr.mxu0 0.0
        %1217 = vmatpush1.msra.mxu0 0.0
        %1218 = vmatprep.subr.mxu0 0.0
        %1219 = vmatpush1.msra.mxu0 0.0
        %1220 = vmatprep.subr.mxu0 0.0
        %1221 = vmatpush1.msra.mxu0 0.0
        %1222 = vmatprep.subr.mxu0 0.0
        %1223 = vmatpush1.msra.mxu0 0.0
        %1224 = vmatprep.subr.mxu0 0.0
        %1225 = vmatpush1.msra.mxu0 0.0
        %1226 = vmatprep.subr.mxu0 0.0
        %1227 = vmatpush1.msra.mxu0 0.0
        %1228 = vmatprep.mubr.f32.mxu0 0.0
        %1229 = vmatmul.mubr.f32.gmra.mrb[0].mxu0 %v588
        %v1230 = vpop.f32.mrb[0].mxu0
        %v1231 = vadd.f32 %v1162, %v1230
        %v1232 = vpop.f32.mrb[0].mxu0
        %1233 = vdwg.mxu0
        %v1235 = vsel %vm822, %v1065, 0
        %v1238 = vsel %vm822, %v1148, 0
        %1240 = vmatprep.subr.mxu0 0.0
        %1241 = vmatpush1.xpose.msra.mxu0 %v1238
        %1242 = vmatprep.subr.mxu0 0.0
        %1243 = vmatpush1.xpose.msra.mxu0 0.0
        %1244 = vmatprep.subr.mxu0 0.0
        %1245 = vmatpush1.xpose.msra.mxu0 0.0
        %1246 = vmatprep.subr.mxu0 0.0
        %1247 = vmatpush1.xpose.msra.mxu0 0.0
        %1248 = vmatprep.subr.mxu0 0.0
        %1249 = vmatpush1.xpose.msra.mxu0 0.0
        %1250 = vmatprep.subr.mxu0 0.0
        %1251 = vmatpush1.xpose.msra.mxu0 0.0
        %1252 = vmatprep.subr.mxu0 0.0
        %1253 = vmatpush1.xpose.msra.mxu0 0.0
        %1254 = vmatprep.subr.mxu0 0.0
        %1255 = vmatpush1.xpose.msra.mxu0 0.0
        %1256 = vmatprep.subr.mxu0 0.0
        %1257 = vmatpush1.xpose.msra.mxu0 0.0
        %1258 = vmatprep.subr.mxu0 0.0
        %1259 = vmatpush1.xpose.msra.mxu0 0.0
        %1260 = vmatprep.subr.mxu0 0.0
        %1261 = vmatpush1.xpose.msra.mxu0 0.0
        %1262 = vmatprep.subr.mxu0 0.0
        %1263 = vmatpush1.xpose.msra.mxu0 0.0
        %1264 = vmatprep.subr.mxu0 0.0
        %1265 = vmatpush1.xpose.msra.mxu0 0.0
        %1266 = vmatprep.subr.mxu0 0.0
        %1267 = vmatpush1.xpose.msra.mxu0 0.0
        %1268 = vmatprep.subr.mxu0 0.0
        %1269 = vmatpush1.xpose.msra.mxu0 0.0
        %1270 = vmatprep.subr.mxu0 0.0
        %1271 = vmatpush1.xpose.msra.mxu0 0.0
        %1272 = vmatprep.subr.mxu0 0.0
        %1273 = vmatpush1.xpose.msra.mxu0 0.0
        %1274 = vmatprep.subr.mxu0 0.0
        %1275 = vmatpush1.xpose.msra.mxu0 0.0
        %1276 = vmatprep.subr.mxu0 0.0
        %1277 = vmatpush1.xpose.msra.mxu0 0.0
        %1278 = vmatprep.subr.mxu0 0.0
        %1279 = vmatpush1.xpose.msra.mxu0 0.0
        %1280 = vmatprep.subr.mxu0 0.0
        %1281 = vmatpush1.xpose.msra.mxu0 0.0
        %1282 = vmatprep.subr.mxu0 0.0
        %1283 = vmatpush1.xpose.msra.mxu0 0.0
        %1284 = vmatprep.subr.mxu0 0.0
        %1285 = vmatpush1.xpose.msra.mxu0 0.0
        %1286 = vmatprep.subr.mxu0 0.0
        %1287 = vmatpush1.xpose.msra.mxu0 0.0
        %1288 = vmatprep.subr.mxu0 0.0
        %1289 = vmatpush1.xpose.msra.mxu0 0.0
        %1290 = vmatprep.subr.mxu0 0.0
        %1291 = vmatpush1.xpose.msra.mxu0 0.0
        %1292 = vmatprep.subr.mxu0 0.0
        %1293 = vmatpush1.xpose.msra.mxu0 0.0
        %1294 = vmatprep.subr.mxu0 0.0
        %1295 = vmatpush1.xpose.msra.mxu0 0.0
        %1296 = vmatprep.subr.mxu0 0.0
        %1297 = vmatpush1.xpose.msra.mxu0 0.0
        %1298 = vmatprep.subr.mxu0 0.0
        %1299 = vmatpush1.xpose.msra.mxu0 0.0
        %1300 = vmatprep.subr.mxu0 0.0
        %1301 = vmatpush1.xpose.msra.mxu0 0.0
        %1302 = vmatprep.subr.mxu0 0.0
        %1303 = vmatpush1.xpose.msra.mxu0 0.0
        %1304 = vmatprep.mubr.f32.mxu0 0.0
        %1305 = vmatmul.mubr.f32.gmra.mrb[0].mxu0 %v1235
        %v1306 = vpop.f32.mrb[0].mxu0
        %v1307 = vadd.f32 0.0, %v1306
        %v1308 = vpop.f32.mrb[0].mxu0
        %1309 = vdwg.mxu0
        %v1310 = vmul.f32 %v1307, 0.35355338
        %v1311 = vsel %vm822, %v1310, -inf
        %1312 = vmax.xlane.f32.xlu0 %v1311
        %v1313 = vpop.xlane.xlu0 %1312
        %v1314 = vsub.f32 %v1310, %v1313
        %v1315 = vmul.f32 %v1314, 1.442695
        %v1316 = vpow.pop %v1315
        %v1317 = vsel %vm822, %v1316, 0.0
        %1318 = vadd.xlane.f32.xlu0 %v1317
        %v1319 = vpop.xlane.xlu0 %1318
        %v1320 = vrcp.pop %v1319
        %v1321 = vmul.f32 %v1316, %v1320
        %v1323 = vsel %vm822, %v1321, 0
        %1325 = vmatprep.subr.mxu0 0.0
        %1326 = vmatpush1.msra.mxu0 %v1231
        %1327 = vmatprep.subr.mxu0 0.0
        %1328 = vmatpush1.msra.mxu0 0.0
        %1329 = vmatprep.subr.mxu0 0.0
        %1330 = vmatpush1.msra.mxu0 0.0
        %1331 = vmatprep.subr.mxu0 0.0
        %1332 = vmatpush1.msra.mxu0 0.0
        %1333 = vmatprep.subr.mxu0 0.0
        %1334 = vmatpush1.msra.mxu0 0.0
        %1335 = vmatprep.subr.mxu0 0.0
        %1336 = vmatpush1.msra.mxu0 0.0
        %1337 = vmatprep.subr.mxu0 0.0
        %1338 = vmatpush1.msra.mxu0 0.0
        %1339 = vmatprep.subr.mxu0 0.0
        %1340 = vmatpush1.msra.mxu0 0.0
        %1341 = vmatprep.subr.mxu0 0.0
        %1342 = vmatpush1.msra.mxu0 0.0
        %1343 = vmatprep.subr.mxu0 0.0
        %1344 = vmatpush1.msra.mxu0 0.0
        %1345 = vmatprep.subr.mxu0 0.0
        %1346 = vmatpush1.msra.mxu0 0.0
        %1347 = vmatprep.subr.mxu0 0.0
        %1348 = vmatpush1.msra.mxu0 0.0
        %1349 = vmatprep.subr.mxu0 0.0
        %1350 = vmatpush1.msra.mxu0 0.0
        %1351 = vmatprep.subr.mxu0 0.0
        %1352 = vmatpush1.msra.mxu0 0.0
        %1353 = vmatprep.subr.mxu0 0.0
        %1354 = vmatpush1.msra.mxu0 0.0
        %1355 = vmatprep.subr.mxu0 0.0
        %1356 = vmatpush1.msra.mxu0 0.0
        %1357 = vmatprep.subr.mxu0 0.0
        %1358 = vmatpush1.msra.mxu0 0.0
        %1359 = vmatprep.subr.mxu0 0.0
        %1360 = vmatpush1.msra.mxu0 0.0
        %1361 = vmatprep.subr.mxu0 0.0
        %1362 = vmatpush1.msra.mxu0 0.0
        %1363 = vmatprep.subr.mxu0 0.0
        %1364 = vmatpush1.msra.mxu0 0.0
        %1365 = vmatprep.subr.mxu0 0.0
        %1366 = vmatpush1.msra.mxu0 0.0
        %1367 = vmatprep.subr.mxu0 0.0
        %1368 = vmatpush1.msra.mxu0 0.0
        %1369 = vmatprep.subr.mxu0 0.0
        %1370 = vmatpush1.msra.mxu0 0.0
        %1371 = vmatprep.subr.mxu0 0.0
        %1372 = vmatpush1.msra.mxu0 0.0
        %1373 = vmatprep.subr.mxu0 0.0
        %1374 = vmatpush1.msra.mxu0 0.0
        %1375 = vmatprep.subr.mxu0 0.0
        %1376 = vmatpush1.msra.mxu0 0.0
        %1377 = vmatprep.subr.mxu0 0.0
        %1378 = vmatpush1.msra.mxu0 0.0
        %1379 = vmatprep.subr.mxu0 0.0
        %1380 = vmatpush1.msra.mxu0 0.0
        %1381 = vmatprep.subr.mxu0 0.0
        %1382 = vmatpush1.msra.mxu0 0.0
        %1383 = vmatprep.subr.mxu0 0.0
        %1384 = vmatpush1.msra.mxu0 0.0
        %1385 = vmatprep.subr.mxu0 0.0
        %1386 = vmatpush1.msra.mxu0 0.0
        %1387 = vmatprep.subr.mxu0 0.0
        %1388 = vmatpush1.msra.mxu0 0.0
        %1389 = vmatprep.mubr.f32.mxu0 0.0
        %1390 = vmatmul.mubr.f32.gmra.mrb[0].mxu0 %v1323
        %v1391 = vpop.f32.mrb[0].mxu0
        %v1392 = vadd.f32 0.0, %v1391
        %v1393 = vpop.f32.mrb[0].mxu0
        %1394 = vdwg.mxu0
        %s1395 = scalar_lea.vmem %s9, 8
        %v1396 = vld [vmem:[%s1395] sm:$0xff]
        %v1398 = vsel %vm822, %v1392, 0
        %1400 = vmatprep.subr.mxu0 0.0
        %1401 = vmatpush1.msra.mxu0 %v1396
        %1402 = vmatprep.subr.mxu0 0.0
        %1403 = vmatpush1.msra.mxu0 0.0
        %1404 = vmatprep.subr.mxu0 0.0
        %1405 = vmatpush1.msra.mxu0 0.0
        %1406 = vmatprep.subr.mxu0 0.0
        %1407 = vmatpush1.msra.mxu0 0.0
        %1408 = vmatprep.subr.mxu0 0.0
        %1409 = vmatpush1.msra.mxu0 0.0
        %1410 = vmatprep.subr.mxu0 0.0
        %1411 = vmatpush1.msra.mxu0 0.0
        %1412 = vmatprep.subr.mxu0 0.0
        %1413 = vmatpush1.msra.mxu0 0.0
        %1414 = vmatprep.subr.mxu0 0.0
        %1415 = vmatpush1.msra.mxu0 0.0
        %1416 = vmatprep.subr.mxu0 0.0
        %1417 = vmatpush1.msra.mxu0 0.0
        %1418 = vmatprep.subr.mxu0 0.0
        %1419 = vmatpush1.msra.mxu0 0.0
        %1420 = vmatprep.subr.mxu0 0.0
        %1421 = vmatpush1.msra.mxu0 0.0
        %1422 = vmatprep.subr.mxu0 0.0
        %1423 = vmatpush1.msra.mxu0 0.0
        %1424 = vmatprep.subr.mxu0 0.0
        %1425 = vmatpush1.msra.mxu0 0.0
        %1426 = vmatprep.subr.mxu0 0.0
        %1427 = vmatpush1.msra.mxu0 0.0
        %1428 = vmatprep.subr.mxu0 0.0
        %1429 = vmatpush1.msra.mxu0 0.0
        %1430 = vmatprep.subr.mxu0 0.0
        %1431 = vmatpush1.msra.mxu0 0.0
        %1432 = vmatprep.subr.mxu0 0.0
        %1433 = vmatpush1.msra.mxu0 0.0
        %1434 = vmatprep.subr.mxu0 0.0
        %1435 = vmatpush1.msra.mxu0 0.0
        %1436 = vmatprep.subr.mxu0 0.0
        %1437 = vmatpush1.msra.mxu0 0.0
        %1438 = vmatprep.subr.mxu0 0.0
        %1439 = vmatpush1.msra.mxu0 0.0
        %1440 = vmatprep.subr.mxu0 0.0
        %1441 = vmatpush1.msra.mxu0 0.0
        %1442 = vmatprep.subr.mxu0 0.0
        %1443 = vmatpush1.msra.mxu0 0.0
        %1444 = vmatprep.subr.mxu0 0.0
        %1445 = vmatpush1.msra.mxu0 0.0
        %1446 = vmatprep.subr.mxu0 0.0
        %1447 = vmatpush1.msra.mxu0 0.0
        %1448 = vmatprep.subr.mxu0 0.0
        %1449 = vmatpush1.msra.mxu0 0.0
        %1450 = vmatprep.subr.mxu0 0.0
        %1451 = vmatpush1.msra.mxu0 0.0
        %1452 = vmatprep.subr.mxu0 0.0
        %1453 = vmatpush1.msra.mxu0 0.0
        %1454 = vmatprep.subr.mxu0 0.0
        %1455 = vmatpush1.msra.mxu0 0.0
        %1456 = vmatprep.subr.mxu0 0.0
        %1457 = vmatpush1.msra.mxu0 0.0
        %1458 = vmatprep.subr.mxu0 0.0
        %1459 = vmatpush1.msra.mxu0 0.0
        %1460 = vmatprep.subr.mxu0 0.0
        %1461 = vmatpush1.msra.mxu0 0.0
        %1462 = vmatprep.subr.mxu0 0.0
        %1463 = vmatpush1.msra.mxu0 0.0
        %1464 = vmatprep.mubr.f32.mxu0 0.0
        %1465 = vmatmul.mubr.f32.gmra.mrb[0].mxu0 %v1398
        %v1466 = vpop.f32.mrb[0].mxu0
        %v1467 = vadd.f32 0.0, %v1466
        %v1468 = vpop.f32.mrb[0].mxu0
        %1469 = vdwg.mxu0
        %v1471 = vsel %vm822, %v981, 0
        %1473 = vmatprep.subr.mxu0 0.0
        %1474 = vmatpush1.msra.mxu0 %v984
        %1475 = vmatprep.subr.mxu0 0.0
        %1476 = vmatpush1.msra.mxu0 0.0
        %1477 = vmatprep.subr.mxu0 0.0
        %1478 = vmatpush1.msra.mxu0 0.0
        %1479 = vmatprep.subr.mxu0 0.0
        %1480 = vmatpush1.msra.mxu0 0.0
        %1481 = vmatprep.subr.mxu0 0.0
        %1482 = vmatpush1.msra.mxu0 0.0
        %1483 = vmatprep.subr.mxu0 0.0
        %1484 = vmatpush1.msra.mxu0 0.0
        %1485 = vmatprep.subr.mxu0 0.0
        %1486 = vmatpush1.msra.mxu0 0.0
        %1487 = vmatprep.subr.mxu0 0.0
        %1488 = vmatpush1.msra.mxu0 0.0
        %1489 = vmatprep.subr.mxu0 0.0
        %1490 = vmatpush1.msra.mxu0 0.0
        %1491 = vmatprep.subr.mxu0 0.0
        %1492 = vmatpush1.msra.mxu0 0.0
        %1493 = vmatprep.subr.mxu0 0.0
        %1494 = vmatpush1.msra.mxu0 0.0
        %1495 = vmatprep.subr.mxu0 0.0
        %1496 = vmatpush1.msra.mxu0 0.0
        %1497 = vmatprep.subr.mxu0 0.0
        %1498 = vmatpush1.msra.mxu0 0.0
        %1499 = vmatprep.subr.mxu0 0.0
        %1500 = vmatpush1.msra.mxu0 0.0
        %1501 = vmatprep.subr.mxu0 0.0
        %1502 = vmatpush1.msra.mxu0 0.0
        %1503 = vmatprep.subr.mxu0 0.0
        %1504 = vmatpush1.msra.mxu0 0.0
        %1505 = vmatprep.subr.mxu0 0.0
        %1506 = vmatpush1.msra.mxu0 0.0
        %1507 = vmatprep.subr.mxu0 0.0
        %1508 = vmatpush1.msra.mxu0 0.0
        %1509 = vmatprep.subr.mxu0 0.0
        %1510 = vmatpush1.msra.mxu0 0.0
        %1511 = vmatprep.subr.mxu0 0.0
        %1512 = vmatpush1.msra.mxu0 0.0
        %1513 = vmatprep.subr.mxu0 0.0
        %1514 = vmatpush1.msra.mxu0 0.0
        %1515 = vmatprep.subr.mxu0 0.0
        %1516 = vmatpush1.msra.mxu0 0.0
        %1517 = vmatprep.subr.mxu0 0.0
        %1518 = vmatpush1.msra.mxu0 0.0
        %1519 = vmatprep.subr.mxu0 0.0
        %1520 = vmatpush1.msra.mxu0 0.0
        %1521 = vmatprep.subr.mxu0 0.0
        %1522 = vmatpush1.msra.mxu0 0.0
        %1523 = vmatprep.subr.mxu0 0.0
        %1524 = vmatpush1.msra.mxu0 0.0
        %1525 = vmatprep.subr.mxu0 0.0
        %1526 = vmatpush1.msra.mxu0 0.0
        %1527 = vmatprep.subr.mxu0 0.0
        %1528 = vmatpush1.msra.mxu0 0.0
        %1529 = vmatprep.subr.mxu0 0.0
        %1530 = vmatpush1.msra.mxu0 0.0
        %1531 = vmatprep.subr.mxu0 0.0
        %1532 = vmatpush1.msra.mxu0 0.0
        %1533 = vmatprep.subr.mxu0 0.0
        %1534 = vmatpush1.msra.mxu0 0.0
        %1535 = vmatprep.subr.mxu0 0.0
        %1536 = vmatpush1.msra.mxu0 0.0
        %1537 = vmatprep.mubr.f32.mxu0 0.0
        %1538 = vmatmul.mubr.f32.gmra.mrb[0].mxu0 %v1471
        %v1539 = vpop.f32.mrb[0].mxu0
        %v1540 = vadd.f32 %v1467, %v1539
        %v1541 = vpop.f32.mrb[0].mxu0
        %1542 = vdwg.mxu0
        %s1543 = scalar_lea.vmem %s3, 64
        %v1544 = vld [vmem:[%s1543] sm:$0xff]
        %v1545 = vld [vmem:[%s1543 + $0x8] sm:$0xff]
        %v1546 = vld [vmem:[%s1543 + $0x10] sm:$0xff]
        %v1547 = vld [vmem:[%s1543 + $0x18] sm:$0xff]
        %s1548 = scalar_lea.vmem %s4, 2
        %v1549 = vld [vmem:[%s1548] sm:$0x1]
        %v1551 = vlaneseq
        %v1552 = vshrl.u32 %v1551, 7
        %v1553 = vsub.s32 0, %v1552
        %v1554 = vrot.slane %v1549, %v1553
        %1556 = vmatprep.subr.mxu0 0.0
        %1557 = vmatpush1.msra.mxu0 %v1544
        %1558 = vmatprep.subr.mxu0 0.0
        %1559 = vmatpush1.msra.mxu0 %v1545
        %1560 = vmatprep.subr.mxu0 0.0
        %1561 = vmatpush1.msra.mxu0 %v1546
        %1562 = vmatprep.subr.mxu0 0.0
        %1563 = vmatpush1.msra.mxu0 %v1547
        %1564 = vmatprep.subr.mxu0 0.0
        %1565 = vmatpush1.msra.mxu0 0.0
        %1566 = vmatprep.subr.mxu0 0.0
        %1567 = vmatpush1.msra.mxu0 0.0
        %1568 = vmatprep.subr.mxu0 0.0
        %1569 = vmatpush1.msra.mxu0 0.0
        %1570 = vmatprep.subr.mxu0 0.0
        %1571 = vmatpush1.msra.mxu0 0.0
        %1572 = vmatprep.subr.mxu0 0.0
        %1573 = vmatpush1.msra.mxu0 0.0
        %1574 = vmatprep.subr.mxu0 0.0
        %1575 = vmatpush1.msra.mxu0 0.0
        %1576 = vmatprep.subr.mxu0 0.0
        %1577 = vmatpush1.msra.mxu0 0.0
        %1578 = vmatprep.subr.mxu0 0.0
        %1579 = vmatpush1.msra.mxu0 0.0
        %1580 = vmatprep.subr.mxu0 0.0
        %1581 = vmatpush1.msra.mxu0 0.0
        %1582 = vmatprep.subr.mxu0 0.0
        %1583 = vmatpush1.msra.mxu0 0.0
        %1584 = vmatprep.subr.mxu0 0.0
        %1585 = vmatpush1.msra.mxu0 0.0
        %1586 = vmatprep.subr.mxu0 0.0
        %1587 = vmatpush1.msra.mxu0 0.0
        %1588 = vmatprep.subr.mxu0 0.0
        %1589 = vmatpush1.msra.mxu0 0.0
        %1590 = vmatprep.subr.mxu0 0.0
        %1591 = vmatpush1.msra.mxu0 0.0
        %1592 = vmatprep.subr.mxu0 0.0
        %1593 = vmatpush1.msra.mxu0 0.0
        %1594 = vmatprep.subr.mxu0 0.0
        %1595 = vmatpush1.msra.mxu0 0.0
        %1596 = vmatprep.subr.mxu0 0.0
        %1597 = vmatpush1.msra.mxu0 0.0
        %1598 = vmatprep.subr.mxu0 0.0
        %1599 = vmatpush1.msra.mxu0 0.0
        %1600 = vmatprep.subr.mxu0 0.0
        %1601 = vmatpush1.msra.mxu0 0.0
        %1602 = vmatprep.subr.mxu0 0.0
        %1603 = vmatpush1.msra.mxu0 0.0
        %1604 = vmatprep.subr.mxu0 0.0
        %1605 = vmatpush1.msra.mxu0 0.0
        %1606 = vmatprep.subr.mxu0 0.0
        %1607 = vmatpush1.msra.mxu0 0.0
        %1608 = vmatprep.subr.mxu0 0.0
        %1609 = vmatpush1.msra.mxu0 0.0
        %1610 = vmatprep.subr.mxu0 0.0
        %1611 = vmatpush1.msra.mxu0 0.0
        %1612 = vmatprep.subr.mxu0 0.0
        %1613 = vmatpush1.msra.mxu0 0.0
        %1614 = vmatprep.subr.mxu0 0.0
        %1615 = vmatpush1.msra.mxu0 0.0
        %1616 = vmatprep.subr.mxu0 0.0
        %1617 = vmatpush1.msra.mxu0 0.0
        %1618 = vmatprep.subr.mxu0 0.0
        %1619 = vmatpush1.msra.mxu0 0.0
        %1620 = vmatprep.mubr.f32.mxu0 0.0
        %1621 = vmatmul.mubr.f32.gmra.mrb[0].mxu0 %v588
        %v1622 = vpop.f32.mrb[0].mxu0
        %v1623 = vadd.f32 %v1554, %v1622
        %v1624 = vpop.f32.mrb[0].mxu0
        %1625 = vdwg.mxu0
        %s1626 = scalar_lea.vmem %s5, 64
        %v1627 = vld [vmem:[%s1626] sm:$0xff]
        %v1628 = vld [vmem:[%s1626 + $0x8] sm:$0xff]
        %v1629 = vld [vmem:[%s1626 + $0x10] sm:$0xff]
        %v1630 = vld [vmem:[%s1626 + $0x18] sm:$0xff]
        %s1631 = scalar_lea.vmem %s6, 2
        %v1632 = vld [vmem:[%s1631] sm:$0x1]
        %v1634 = vlaneseq
        %v1635 = vshrl.u32 %v1634, 7
        %v1636 = vsub.s32 0, %v1635
        %v1637 = vrot.slane %v1632, %v1636
        %1639 = vmatprep.subr.mxu0 0.0
        %1640 = vmatpush1.msra.mxu0 %v1627
        %1641 = vmatprep.subr.mxu0 0.0
        %1642 = vmatpush1.msra.mxu0 %v1628
        %1643 = vmatprep.subr.mxu0 0.0
        %1644 = vmatpush1.msra.mxu0 %v1629
        %1645 = vmatprep.subr.mxu0 0.0
        %1646 = vmatpush1.msra.mxu0 %v1630
        %1647 = vmatprep.subr.mxu0 0.0
        %1648 = vmatpush1.msra.mxu0 0.0
        %1649 = vmatprep.subr.mxu0 0.0
        %1650 = vmatpush1.msra.mxu0 0.0
        %1651 = vmatprep.subr.mxu0 0.0
        %1652 = vmatpush1.msra.mxu0 0.0
        %1653 = vmatprep.subr.mxu0 0.0
        %1654 = vmatpush1.msra.mxu0 0.0
        %1655 = vmatprep.subr.mxu0 0.0
        %1656 = vmatpush1.msra.mxu0 0.0
        %1657 = vmatprep.subr.mxu0 0.0
        %1658 = vmatpush1.msra.mxu0 0.0
        %1659 = vmatprep.subr.mxu0 0.0
        %1660 = vmatpush1.msra.mxu0 0.0
        %1661 = vmatprep.subr.mxu0 0.0
        %1662 = vmatpush1.msra.mxu0 0.0
        %1663 = vmatprep.subr.mxu0 0.0
        %1664 = vmatpush1.msra.mxu0 0.0
        %1665 = vmatprep.subr.mxu0 0.0
        %1666 = vmatpush1.msra.mxu0 0.0
        %1667 = vmatprep.subr.mxu0 0.0
        %1668 = vmatpush1.msra.mxu0 0.0
        %1669 = vmatprep.subr.mxu0 0.0
        %1670 = vmatpush1.msra.mxu0 0.0
        %1671 = vmatprep.subr.mxu0 0.0
        %1672 = vmatpush1.msra.mxu0 0.0
        %1673 = vmatprep.subr.mxu0 0.0
        %1674 = vmatpush1.msra.mxu0 0.0
        %1675 = vmatprep.subr.mxu0 0.0
        %1676 = vmatpush1.msra.mxu0 0.0
        %1677 = vmatprep.subr.mxu0 0.0
        %1678 = vmatpush1.msra.mxu0 0.0
        %1679 = vmatprep.subr.mxu0 0.0
        %1680 = vmatpush1.msra.mxu0 0.0
        %1681 = vmatprep.subr.mxu0 0.0
        %1682 = vmatpush1.msra.mxu0 0.0
        %1683 = vmatprep.subr.mxu0 0.0
        %1684 = vmatpush1.msra.mxu0 0.0
        %1685 = vmatprep.subr.mxu0 0.0
        %1686 = vmatpush1.msra.mxu0 0.0
        %1687 = vmatprep.subr.mxu0 0.0
        %1688 = vmatpush1.msra.mxu0 0.0
        %1689 = vmatprep.subr.mxu0 0.0
        %1690 = vmatpush1.msra.mxu0 0.0
        %1691 = vmatprep.subr.mxu0 0.0
        %1692 = vmatpush1.msra.mxu0 0.0
        %1693 = vmatprep.subr.mxu0 0.0
        %1694 = vmatpush1.msra.mxu0 0.0
        %1695 = vmatprep.subr.mxu0 0.0
        %1696 = vmatpush1.msra.mxu0 0.0
        %1697 = vmatprep.subr.mxu0 0.0
        %1698 = vmatpush1.msra.mxu0 0.0
        %1699 = vmatprep.subr.mxu0 0.0
        %1700 = vmatpush1.msra.mxu0 0.0
        %1701 = vmatprep.subr.mxu0 0.0
        %1702 = vmatpush1.msra.mxu0 0.0
        %1703 = vmatprep.mubr.f32.mxu0 0.0
        %1704 = vmatmul.mubr.f32.gmra.mrb[0].mxu0 %v588
        %v1705 = vpop.f32.mrb[0].mxu0
        %v1706 = vadd.f32 %v1637, %v1705
        %v1707 = vpop.f32.mrb[0].mxu0
        %1708 = vdwg.mxu0
        %s1709 = scalar_lea.vmem %s7, 64
        %v1710 = vld [vmem:[%s1709] sm:$0xff]
        %v1711 = vld [vmem:[%s1709 + $0x8] sm:$0xff]
        %v1712 = vld [vmem:[%s1709 + $0x10] sm:$0xff]
        %v1713 = vld [vmem:[%s1709 + $0x18] sm:$0xff]
        %s1714 = scalar_lea.vmem %s8, 2
        %v1715 = vld [vmem:[%s1714] sm:$0x1]
        %v1717 = vlaneseq
        %v1718 = vshrl.u32 %v1717, 7
        %v1719 = vsub.s32 0, %v1718
        %v1720 = vrot.slane %v1715, %v1719
        %1722 = vmatprep.subr.mxu0 0.0
        %1723 = vmatpush1.msra.mxu0 %v1710
        %1724 = vmatprep.subr.mxu0 0.0
        %1725 = vmatpush1.msra.mxu0 %v1711
        %1726 = vmatprep.subr.mxu0 0.0
        %1727 = vmatpush1.msra.mxu0 %v1712
        %1728 = vmatprep.subr.mxu0 0.0
        %1729 = vmatpush1.msra.mxu0 %v1713
        %1730 = vmatprep.subr.mxu0 0.0
        %1731 = vmatpush1.msra.mxu0 0.0
        %1732 = vmatprep.subr.mxu0 0.0
        %1733 = vmatpush1.msra.mxu0 0.0
        %1734 = vmatprep.subr.mxu0 0.0
        %1735 = vmatpush1.msra.mxu0 0.0
        %1736 = vmatprep.subr.mxu0 0.0
        %1737 = vmatpush1.msra.mxu0 0.0
        %1738 = vmatprep.subr.mxu0 0.0
        %1739 = vmatpush1.msra.mxu0 0.0
        %1740 = vmatprep.subr.mxu0 0.0
        %1741 = vmatpush1.msra.mxu0 0.0
        %1742 = vmatprep.subr.mxu0 0.0
        %1743 = vmatpush1.msra.mxu0 0.0
        %1744 = vmatprep.subr.mxu0 0.0
        %1745 = vmatpush1.msra.mxu0 0.0
        %1746 = vmatprep.subr.mxu0 0.0
        %1747 = vmatpush1.msra.mxu0 0.0
        %1748 = vmatprep.subr.mxu0 0.0
        %1749 = vmatpush1.msra.mxu0 0.0
        %1750 = vmatprep.subr.mxu0 0.0
        %1751 = vmatpush1.msra.mxu0 0.0
        %1752 = vmatprep.subr.mxu0 0.0
        %1753 = vmatpush1.msra.mxu0 0.0
        %1754 = vmatprep.subr.mxu0 0.0
        %1755 = vmatpush1.msra.mxu0 0.0
        %1756 = vmatprep.subr.mxu0 0.0
        %1757 = vmatpush1.msra.mxu0 0.0
        %1758 = vmatprep.subr.mxu0 0.0
        %1759 = vmatpush1.msra.mxu0 0.0
        %1760 = vmatprep.subr.mxu0 0.0
        %1761 = vmatpush1.msra.mxu0 0.0
        %1762 = vmatprep.subr.mxu0 0.0
        %1763 = vmatpush1.msra.mxu0 0.0
        %1764 = vmatprep.subr.mxu0 0.0
        %1765 = vmatpush1.msra.mxu0 0.0
        %1766 = vmatprep.subr.mxu0 0.0
        %1767 = vmatpush1.msra.mxu0 0.0
        %1768 = vmatprep.subr.mxu0 0.0
        %1769 = vmatpush1.msra.mxu0 0.0
        %1770 = vmatprep.subr.mxu0 0.0
        %1771 = vmatpush1.msra.mxu0 0.0
        %1772 = vmatprep.subr.mxu0 0.0
        %1773 = vmatpush1.msra.mxu0 0.0
        %1774 = vmatprep.subr.mxu0 0.0
        %1775 = vmatpush1.msra.mxu0 0.0
        %1776 = vmatprep.subr.mxu0 0.0
        %1777 = vmatpush1.msra.mxu0 0.0
        %1778 = vmatprep.subr.mxu0 0.0
        %1779 = vmatpush1.msra.mxu0 0.0
        %1780 = vmatprep.subr.mxu0 0.0
        %1781 = vmatpush1.msra.mxu0 0.0
        %1782 = vmatprep.subr.mxu0 0.0
        %1783 = vmatpush1.msra.mxu0 0.0
        %1784 = vmatprep.subr.mxu0 0.0
        %1785 = vmatpush1.msra.mxu0 0.0
        %1786 = vmatprep.mubr.f32.mxu0 0.0
        %1787 = vmatmul.mubr.f32.gmra.mrb[0].mxu0 %v588
        %v1788 = vpop.f32.mrb[0].mxu0
        %v1789 = vadd.f32 %v1720, %v1788
        %v1790 = vpop.f32.mrb[0].mxu0
        %1791 = vdwg.mxu0
        %v1793 = vsel %vm822, %v1623, 0
        %v1796 = vsel %vm822, %v1706, 0
        %1798 = vmatprep.subr.mxu0 0.0
        %1799 = vmatpush1.xpose.msra.mxu0 %v1796
        %1800 = vmatprep.subr.mxu0 0.0
        %1801 = vmatpush1.xpose.msra.mxu0 0.0
        %1802 = vmatprep.subr.mxu0 0.0
        %1803 = vmatpush1.xpose.msra.mxu0 0.0
        %1804 = vmatprep.subr.mxu0 0.0
        %1805 = vmatpush1.xpose.msra.mxu0 0.0
        %1806 = vmatprep.subr.mxu0 0.0
        %1807 = vmatpush1.xpose.msra.mxu0 0.0
        %1808 = vmatprep.subr.mxu0 0.0
        %1809 = vmatpush1.xpose.msra.mxu0 0.0
        %1810 = vmatprep.subr.mxu0 0.0
        %1811 = vmatpush1.xpose.msra.mxu0 0.0
        %1812 = vmatprep.subr.mxu0 0.0
        %1813 = vmatpush1.xpose.msra.mxu0 0.0
        %1814 = vmatprep.subr.mxu0 0.0
        %1815 = vmatpush1.xpose.msra.mxu0 0.0
        %1816 = vmatprep.subr.mxu0 0.0
        %1817 = vmatpush1.xpose.msra.mxu0 0.0
        %1818 = vmatprep.subr.mxu0 0.0
        %1819 = vmatpush1.xpose.msra.mxu0 0.0
        %1820 = vmatprep.subr.mxu0 0.0
        %1821 = vmatpush1.xpose.msra.mxu0 0.0
        %1822 = vmatprep.subr.mxu0 0.0
        %1823 = vmatpush1.xpose.msra.mxu0 0.0
        %1824 = vmatprep.subr.mxu0 0.0
        %1825 = vmatpush1.xpose.msra.mxu0 0.0
        %1826 = vmatprep.subr.mxu0 0.0
        %1827 = vmatpush1.xpose.msra.mxu0 0.0
        %1828 = vmatprep.subr.mxu0 0.0
        %1829 = vmatpush1.xpose.msra.mxu0 0.0
        %1830 = vmatprep.subr.mxu0 0.0
        %1831 = vmatpush1.xpose.msra.mxu0 0.0
        %1832 = vmatprep.subr.mxu0 0.0
        %1833 = vmatpush1.xpose.msra.mxu0 0.0
        %1834 = vmatprep.subr.mxu0 0.0
        %1835 = vmatpush1.xpose.msra.mxu0 0.0
        %1836 = vmatprep.subr.mxu0 0.0
        %1837 = vmatpush1.xpose.msra.mxu0 0.0
        %1838 = vmatprep.subr.mxu0 0.0
        %1839 = vmatpush1.xpose.msra.mxu0 0.0
        %1840 = vmatprep.subr.mxu0 0.0
        %1841 = vmatpush1.xpose.msra.mxu0 0.0
        %1842 = vmatprep.subr.mxu0 0.0
        %1843 = vmatpush1.xpose.msra.mxu0 0.0
        %1844 = vmatprep.subr.mxu0 0.0
        %1845 = vmatpush1.xpose.msra.mxu0 0.0
        %1846 = vmatprep.subr.mxu0 0.0
        %1847 = vmatpush1.xpose.msra.mxu0 0.0
        %1848 = vmatprep.subr.mxu0 0.0
        %1849 = vmatpush1.xpose.msra.mxu0 0.0
        %1850 = vmatprep.subr.mxu0 0.0
        %1851 = vmatpush1.xpose.msra.mxu0 0.0
        %1852 = vmatprep.subr.mxu0 0.0
        %1853 = vmatpush1.xpose.msra.mxu0 0.0
        %1854 = vmatprep.subr.mxu0 0.0
        %1855 = vmatpush1.xpose.msra.mxu0 0.0
        %1856 = vmatprep.subr.mxu0 0.0
        %1857 = vmatpush1.xpose.msra.mxu0 0.0
        %1858 = vmatprep.subr.mxu0 0.0
        %1859 = vmatpush1.xpose.msra.mxu0 0.0
        %1860 = vmatprep.subr.mxu0 0.0
        %1861 = vmatpush1.xpose.msra.mxu0 0.0
        %1862 = vmatprep.mubr.f32.mxu0 0.0
        %1863 = vmatmul.mubr.f32.gmra.mrb[0].mxu0 %v1793
        %v1864 = vpop.f32.mrb[0].mxu0
        %v1865 = vadd.f32 0.0, %v1864
        %v1866 = vpop.f32.mrb[0].mxu0
        %1867 = vdwg.mxu0
        %v1868 = vmul.f32 %v1865, 0.35355338
        %v1869 = vsel %vm822, %v1868, -inf
        %1870 = vmax.xlane.f32.xlu0 %v1869
        %v1871 = vpop.xlane.xlu0 %1870
        %v1872 = vsub.f32 %v1868, %v1871
        %v1873 = vmul.f32 %v1872, 1.442695
        %v1874 = vpow.pop %v1873
        %v1875 = vsel %vm822, %v1874, 0.0
        %1876 = vadd.xlane.f32.xlu0 %v1875
        %v1877 = vpop.xlane.xlu0 %1876
        %v1878 = vrcp.pop %v1877
        %v1879 = vmul.f32 %v1874, %v1878
        %v1881 = vsel %vm822, %v1879, 0
        %1883 = vmatprep.subr.mxu0 0.0
        %1884 = vmatpush1.msra.mxu0 %v1789
        %1885 = vmatprep.subr.mxu0 0.0
        %1886 = vmatpush1.msra.mxu0 0.0
        %1887 = vmatprep.subr.mxu0 0.0
        %1888 = vmatpush1.msra.mxu0 0.0
        %1889 = vmatprep.subr.mxu0 0.0
        %1890 = vmatpush1.msra.mxu0 0.0
        %1891 = vmatprep.subr.mxu0 0.0
        %1892 = vmatpush1.msra.mxu0 0.0
        %1893 = vmatprep.subr.mxu0 0.0
        %1894 = vmatpush1.msra.mxu0 0.0
        %1895 = vmatprep.subr.mxu0 0.0
        %1896 = vmatpush1.msra.mxu0 0.0
        %1897 = vmatprep.subr.mxu0 0.0
        %1898 = vmatpush1.msra.mxu0 0.0
        %1899 = vmatprep.subr.mxu0 0.0
        %1900 = vmatpush1.msra.mxu0 0.0
        %1901 = vmatprep.subr.mxu0 0.0
        %1902 = vmatpush1.msra.mxu0 0.0
        %1903 = vmatprep.subr.mxu0 0.0
        %1904 = vmatpush1.msra.mxu0 0.0
        %1905 = vmatprep.subr.mxu0 0.0
        %1906 = vmatpush1.msra.mxu0 0.0
        %1907 = vmatprep.subr.mxu0 0.0
        %1908 = vmatpush1.msra.mxu0 0.0
        %1909 = vmatprep.subr.mxu0 0.0
        %1910 = vmatpush1.msra.mxu0 0.0
        %1911 = vmatprep.subr.mxu0 0.0
        %1912 = vmatpush1.msra.mxu0 0.0
        %1913 = vmatprep.subr.mxu0 0.0
        %1914 = vmatpush1.msra.mxu0 0.0
        %1915 = vmatprep.subr.mxu0 0.0
        %1916 = vmatpush1.msra.mxu0 0.0
        %1917 = vmatprep.subr.mxu0 0.0
        %1918 = vmatpush1.msra.mxu0 0.0
        %1919 = vmatprep.subr.mxu0 0.0
        %1920 = vmatpush1.msra.mxu0 0.0
        %1921 = vmatprep.subr.mxu0 0.0
        %1922 = vmatpush1.msra.mxu0 0.0
        %1923 = vmatprep.subr.mxu0 0.0
        %1924 = vmatpush1.msra.mxu0 0.0
        %1925 = vmatprep.subr.mxu0 0.0
        %1926 = vmatpush1.msra.mxu0 0.0
        %1927 = vmatprep.subr.mxu0 0.0
        %1928 = vmatpush1.msra.mxu0 0.0
        %1929 = vmatprep.subr.mxu0 0.0
        %1930 = vmatpush1.msra.mxu0 0.0
        %1931 = vmatprep.subr.mxu0 0.0
        %1932 = vmatpush1.msra.mxu0 0.0
        %1933 = vmatprep.subr.mxu0 0.0
        %1934 = vmatpush1.msra.mxu0 0.0
        %1935 = vmatprep.subr.mxu0 0.0
        %1936 = vmatpush1.msra.mxu0 0.0
        %1937 = vmatprep.subr.mxu0 0.0
        %1938 = vmatpush1.msra.mxu0 0.0
        %1939 = vmatprep.subr.mxu0 0.0
        %1940 = vmatpush1.msra.mxu0 0.0
        %1941 = vmatprep.subr.mxu0 0.0
        %1942 = vmatpush1.msra.mxu0 0.0
        %1943 = vmatprep.subr.mxu0 0.0
        %1944 = vmatpush1.msra.mxu0 0.0
        %1945 = vmatprep.subr.mxu0 0.0
        %1946 = vmatpush1.msra.mxu0 0.0
        %1947 = vmatprep.mubr.f32.mxu0 0.0
        %1948 = vmatmul.mubr.f32.gmra.mrb[0].mxu0 %v1881
        %v1949 = vpop.f32.mrb[0].mxu0
        %v1950 = vadd.f32 0.0, %v1949
        %v1951 = vpop.f32.mrb[0].mxu0
        %1952 = vdwg.mxu0
        %s1953 = scalar_lea.vmem %s9, 16
        %v1954 = vld [vmem:[%s1953] sm:$0xff]
        %v1956 = vsel %vm822, %v1950, 0
        %1958 = vmatprep.subr.mxu0 0.0
        %1959 = vmatpush1.msra.mxu0 %v1954
        %1960 = vmatprep.subr.mxu0 0.0
        %1961 = vmatpush1.msra.mxu0 0.0
        %1962 = vmatprep.subr.mxu0 0.0
        %1963 = vmatpush1.msra.mxu0 0.0
        %1964 = vmatprep.subr.mxu0 0.0
        %1965 = vmatpush1.msra.mxu0 0.0
        %1966 = vmatprep.subr.mxu0 0.0
        %1967 = vmatpush1.msra.mxu0 0.0
        %1968 = vmatprep.subr.mxu0 0.0
        %1969 = vmatpush1.msra.mxu0 0.0
        %1970 = vmatprep.subr.mxu0 0.0
        %1971 = vmatpush1.msra.mxu0 0.0
        %1972 = vmatprep.subr.mxu0 0.0
        %1973 = vmatpush1.msra.mxu0 0.0
        %1974 = vmatprep.subr.mxu0 0.0
        %1975 = vmatpush1.msra.mxu0 0.0
        %1976 = vmatprep.subr.mxu0 0.0
        %1977 = vmatpush1.msra.mxu0 0.0
        %1978 = vmatprep.subr.mxu0 0.0
        %1979 = vmatpush1.msra.mxu0 0.0
        %1980 = vmatprep.subr.mxu0 0.0
        %1981 = vmatpush1.msra.mxu0 0.0
        %1982 = vmatprep.subr.mxu0 0.0
        %1983 = vmatpush1.msra.mxu0 0.0
        %1984 = vmatprep.subr.mxu0 0.0
        %1985 = vmatpush1.msra.mxu0 0.0
        %1986 = vmatprep.subr.mxu0 0.0
        %1987 = vmatpush1.msra.mxu0 0.0
        %1988 = vmatprep.subr.mxu0 0.0
        %1989 = vmatpush1.msra.mxu0 0.0
        %1990 = vmatprep.subr.mxu0 0.0
        %1991 = vmatpush1.msra.mxu0 0.0
        %1992 = vmatprep.subr.mxu0 0.0
        %1993 = vmatpush1.msra.mxu0 0.0
        %1994 = vmatprep.subr.mxu0 0.0
        %1995 = vmatpush1.msra.mxu0 0.0
        %1996 = vmatprep.subr.mxu0 0.0
        %1997 = vmatpush1.msra.mxu0 0.0
        %1998 = vmatprep.subr.mxu0 0.0
        %1999 = vmatpush1.msra.mxu0 0.0
        %2000 = vmatprep.subr.mxu0 0.0
        %2001 = vmatpush1.msra.mxu0 0.0
        %2002 = vmatprep.subr.mxu0 0.0
        %2003 = vmatpush1.msra.mxu0 0.0
        %2004 = vmatprep.subr.mxu0 0.0
        %2005 = vmatpush1.msra.mxu0 0.0
        %2006 = vmatprep.subr.mxu0 0.0
        %2007 = vmatpush1.msra.mxu0 0.0
        %2008 = vmatprep.subr.mxu0 0.0
        %2009 = vmatpush1.msra.mxu0 0.0
        %2010 = vmatprep.subr.mxu0 0.0
        %2011 = vmatpush1.msra.mxu0 0.0
        %2012 = vmatprep.subr.mxu0 0.0
        %2013 = vmatpush1.msra.mxu0 0.0
        %2014 = vmatprep.subr.mxu0 0.0
        %2015 = vmatpush1.msra.mxu0 0.0
        %2016 = vmatprep.subr.mxu0 0.0
        %2017 = vmatpush1.msra.mxu0 0.0
        %2018 = vmatprep.subr.mxu0 0.0
        %2019 = vmatpush1.msra.mxu0 0.0
        %2020 = vmatprep.subr.mxu0 0.0
        %2021 = vmatpush1.msra.mxu0 0.0
        %2022 = vmatprep.mubr.f32.mxu0 0.0
        %2023 = vmatmul.mubr.f32.gmra.mrb[0].mxu0 %v1956
        %v2024 = vpop.f32.mrb[0].mxu0
        %v2025 = vadd.f32 0.0, %v2024
        %v2026 = vpop.f32.mrb[0].mxu0
        %2027 = vdwg.mxu0
        %v2028 = vadd.f32 %v1540, %v2025
        %s2029 = scalar_lea.vmem %s3, 96
        %v2030 = vld [vmem:[%s2029] sm:$0xff]
        %v2031 = vld [vmem:[%s2029 + $0x8] sm:$0xff]
        %v2032 = vld [vmem:[%s2029 + $0x10] sm:$0xff]
        %v2033 = vld [vmem:[%s2029 + $0x18] sm:$0xff]
        %s2034 = scalar_lea.vmem %s4, 3
        %v2035 = vld [vmem:[%s2034] sm:$0x1]
        %v2037 = vlaneseq
        %v2038 = vshrl.u32 %v2037, 7
        %v2039 = vsub.s32 0, %v2038
        %v2040 = vrot.slane %v2035, %v2039
        %2042 = vmatprep.subr.mxu0 0.0
        %2043 = vmatpush1.msra.mxu0 %v2030
        %2044 = vmatprep.subr.mxu0 0.0
        %2045 = vmatpush1.msra.mxu0 %v2031
        %2046 = vmatprep.subr.mxu0 0.0
        %2047 = vmatpush1.msra.mxu0 %v2032
        %2048 = vmatprep.subr.mxu0 0.0
        %2049 = vmatpush1.msra.mxu0 %v2033
        %2050 = vmatprep.subr.mxu0 0.0
        %2051 = vmatpush1.msra.mxu0 0.0
        %2052 = vmatprep.subr.mxu0 0.0
        %2053 = vmatpush1.msra.mxu0 0.0
        %2054 = vmatprep.subr.mxu0 0.0
        %2055 = vmatpush1.msra.mxu0 0.0
        %2056 = vmatprep.subr.mxu0 0.0
        %2057 = vmatpush1.msra.mxu0 0.0
        %2058 = vmatprep.subr.mxu0 0.0
        %2059 = vmatpush1.msra.mxu0 0.0
        %2060 = vmatprep.subr.mxu0 0.0
        %2061 = vmatpush1.msra.mxu0 0.0
        %2062 = vmatprep.subr.mxu0 0.0
        %2063 = vmatpush1.msra.mxu0 0.0
        %2064 = vmatprep.subr.mxu0 0.0
        %2065 = vmatpush1.msra.mxu0 0.0
        %2066 = vmatprep.subr.mxu0 0.0
        %2067 = vmatpush1.msra.mxu0 0.0
        %2068 = vmatprep.subr.mxu0 0.0
        %2069 = vmatpush1.msra.mxu0 0.0
        %2070 = vmatprep.subr.mxu0 0.0
        %2071 = vmatpush1.msra.mxu0 0.0
        %2072 = vmatprep.subr.mxu0 0.0
        %2073 = vmatpush1.msra.mxu0 0.0
        %2074 = vmatprep.subr.mxu0 0.0
        %2075 = vmatpush1.msra.mxu0 0.0
        %2076 = vmatprep.subr.mxu0 0.0
        %2077 = vmatpush1.msra.mxu0 0.0
        %2078 = vmatprep.subr.mxu0 0.0
        %2079 = vmatpush1.msra.mxu0 0.0
        %2080 = vmatprep.subr.mxu0 0.0
        %2081 = vmatpush1.msra.mxu0 0.0
        %2082 = vmatprep.subr.mxu0 0.0
        %2083 = vmatpush1.msra.mxu0 0.0
        %2084 = vmatprep.subr.mxu0 0.0
        %2085 = vmatpush1.msra.mxu0 0.0
        %2086 = vmatprep.subr.mxu0 0.0
        %2087 = vmatpush1.msra.mxu0 0.0
        %2088 = vmatprep.subr.mxu0 0.0
        %2089 = vmatpush1.msra.mxu0 0.0
        %2090 = vmatprep.subr.mxu0 0.0
        %2091 = vmatpush1.msra.mxu0 0.0
        %2092 = vmatprep.subr.mxu0 0.0
        %2093 = vmatpush1.msra.mxu0 0.0
        %2094 = vmatprep.subr.mxu0 0.0
        %2095 = vmatpush1.msra.mxu0 0.0
        %2096 = vmatprep.subr.mxu0 0.0
        %2097 = vmatpush1.msra.mxu0 0.0
        %2098 = vmatprep.subr.mxu0 0.0
        %2099 = vmatpush1.msra.mxu0 0.0
        %2100 = vmatprep.subr.mxu0 0.0
        %2101 = vmatpush1.msra.mxu0 0.0
        %2102 = vmatprep.subr.mxu0 0.0
        %2103 = vmatpush1.msra.mxu0 0.0
        %2104 = vmatprep.subr.mxu0 0.0
        %2105 = vmatpush1.msra.mxu0 0.0
        %2106 = vmatprep.mubr.f32.mxu0 0.0
        %2107 = vmatmul.mubr.f32.gmra.mrb[0].mxu0 %v588
        %v2108 = vpop.f32.mrb[0].mxu0
        %v2109 = vadd.f32 %v2040, %v2108
        %v2110 = vpop.f32.mrb[0].mxu0
        %2111 = vdwg.mxu0
        %s2112 = scalar_lea.vmem %s5, 96
        %v2113 = vld [vmem:[%s2112] sm:$0xff]
        %v2114 = vld [vmem:[%s2112 + $0x8] sm:$0xff]
        %v2115 = vld [vmem:[%s2112 + $0x10] sm:$0xff]
        %v2116 = vld [vmem:[%s2112 + $0x18] sm:$0xff]
        %s2117 = scalar_lea.vmem %s6, 3
        %v2118 = vld [vmem:[%s2117] sm:$0x1]
        %v2120 = vlaneseq
        %v2121 = vshrl.u32 %v2120, 7
        %v2122 = vsub.s32 0, %v2121
        %v2123 = vrot.slane %v2118, %v2122
        %2125 = vmatprep.subr.mxu0 0.0
        %2126 = vmatpush1.msra.mxu0 %v2113
        %2127 = vmatprep.subr.mxu0 0.0
        %2128 = vmatpush1.msra.mxu0 %v2114
        %2129 = vmatprep.subr.mxu0 0.0
        %2130 = vmatpush1.msra.mxu0 %v2115
        %2131 = vmatprep.subr.mxu0 0.0
        %2132 = vmatpush1.msra.mxu0 %v2116
        %2133 = vmatprep.subr.mxu0 0.0
        %2134 = vmatpush1.msra.mxu0 0.0
        %2135 = vmatprep.subr.mxu0 0.0
        %2136 = vmatpush1.msra.mxu0 0.0
        %2137 = vmatprep.subr.mxu0 0.0
        %2138 = vmatpush1.msra.mxu0 0.0
        %2139 = vmatprep.subr.mxu0 0.0
        %2140 = vmatpush1.msra.mxu0 0.0
        %2141 = vmatprep.subr.mxu0 0.0
        %2142 = vmatpush1.msra.mxu0 0.0
        %2143 = vmatprep.subr.mxu0 0.0
        %2144 = vmatpush1.msra.mxu0 0.0
        %2145 = vmatprep.subr.mxu0 0.0
        %2146 = vmatpush1.msra.mxu0 0.0
        %2147 = vmatprep.subr.mxu0 0.0
        %2148 = vmatpush1.msra.mxu0 0.0
        %2149 = vmatprep.subr.mxu0 0.0
        %2150 = vmatpush1.msra.mxu0 0.0
        %2151 = vmatprep.subr.mxu0 0.0
        %2152 = vmatpush1.msra.mxu0 0.0
        %2153 = vmatprep.subr.mxu0 0.0
        %2154 = vmatpush1.msra.mxu0 0.0
        %2155 = vmatprep.subr.mxu0 0.0
        %2156 = vmatpush1.msra.mxu0 0.0
        %2157 = vmatprep.subr.mxu0 0.0
        %2158 = vmatpush1.msra.mxu0 0.0
        %2159 = vmatprep.subr.mxu0 0.0
        %2160 = vmatpush1.msra.mxu0 0.0
        %2161 = vmatprep.subr.mxu0 0.0
        %2162 = vmatpush1.msra.mxu0 0.0
        %2163 = vmatprep.subr.mxu0 0.0
        %2164 = vmatpush1.msra.mxu0 0.0
        %2165 = vmatprep.subr.mxu0 0.0
        %2166 = vmatpush1.msra.mxu0 0.0
        %2167 = vmatprep.subr.mxu0 0.0
        %2168 = vmatpush1.msra.mxu0 0.0
        %2169 = vmatprep.subr.mxu0 0.0
        %2170 = vmatpush1.msra.mxu0 0.0
        %2171 = vmatprep.subr.mxu0 0.0
        %2172 = vmatpush1.msra.mxu0 0.0
        %2173 = vmatprep.subr.mxu0 0.0
        %2174 = vmatpush1.msra.mxu0 0.0
        %2175 = vmatprep.subr.mxu0 0.0
        %2176 = vmatpush1.msra.mxu0 0.0
        %2177 = vmatprep.subr.mxu0 0.0
        %2178 = vmatpush1.msra.mxu0 0.0
        %2179 = vmatprep.subr.mxu0 0.0
        %2180 = vmatpush1.msra.mxu0 0.0
        %2181 = vmatprep.subr.mxu0 0.0
        %2182 = vmatpush1.msra.mxu0 0.0
        %2183 = vmatprep.subr.mxu0 0.0
        %2184 = vmatpush1.msra.mxu0 0.0
        %2185 = vmatprep.subr.mxu0 0.0
        %2186 = vmatpush1.msra.mxu0 0.0
        %2187 = vmatprep.subr.mxu0 0.0
        %2188 = vmatpush1.msra.mxu0 0.0
        %2189 = vmatprep.mubr.f32.mxu0 0.0
        %2190 = vmatmul.mubr.f32.gmra.mrb[0].mxu0 %v588
        %v2191 = vpop.f32.mrb[0].mxu0
        %v2192 = vadd.f32 %v2123, %v2191
        %v2193 = vpop.f32.mrb[0].mxu0
        %2194 = vdwg.mxu0
        %s2195 = scalar_lea.vmem %s7, 96
        %v2196 = vld [vmem:[%s2195] sm:$0xff]
        %v2197 = vld [vmem:[%s2195 + $0x8] sm:$0xff]
        %v2198 = vld [vmem:[%s2195 + $0x10] sm:$0xff]
        %v2199 = vld [vmem:[%s2195 + $0x18] sm:$0xff]
        %s2200 = scalar_lea.vmem %s8, 3
        %v2201 = vld [vmem:[%s2200] sm:$0x1]
        %v2203 = vlaneseq
        %v2204 = vshrl.u32 %v2203, 7
        %v2205 = vsub.s32 0, %v2204
        %v2206 = vrot.slane %v2201, %v2205
        %2208 = vmatprep.subr.mxu0 0.0
        %2209 = vmatpush1.msra.mxu0 %v2196
        %2210 = vmatprep.subr.mxu0 0.0
        %2211 = vmatpush1.msra.mxu0 %v2197
        %2212 = vmatprep.subr.mxu0 0.0
        %2213 = vmatpush1.msra.mxu0 %v2198
        %2214 = vmatprep.subr.mxu0 0.0
        %2215 = vmatpush1.msra.mxu0 %v2199
        %2216 = vmatprep.subr.mxu0 0.0
        %2217 = vmatpush1.msra.mxu0 0.0
        %2218 = vmatprep.subr.mxu0 0.0
        %2219 = vmatpush1.msra.mxu0 0.0
        %2220 = vmatprep.subr.mxu0 0.0
        %2221 = vmatpush1.msra.mxu0 0.0
        %2222 = vmatprep.subr.mxu0 0.0
        %2223 = vmatpush1.msra.mxu0 0.0
        %2224 = vmatprep.subr.mxu0 0.0
        %2225 = vmatpush1.msra.mxu0 0.0
        %2226 = vmatprep.subr.mxu0 0.0
        %2227 = vmatpush1.msra.mxu0 0.0
        %2228 = vmatprep.subr.mxu0 0.0
        %2229 = vmatpush1.msra.mxu0 0.0
        %2230 = vmatprep.subr.mxu0 0.0
        %2231 = vmatpush1.msra.mxu0 0.0
        %2232 = vmatprep.subr.mxu0 0.0
        %2233 = vmatpush1.msra.mxu0 0.0
        %2234 = vmatprep.subr.mxu0 0.0
        %2235 = vmatpush1.msra.mxu0 0.0
        %2236 = vmatprep.subr.mxu0 0.0
        %2237 = vmatpush1.msra.mxu0 0.0
        %2238 = vmatprep.subr.mxu0 0.0
        %2239 = vmatpush1.msra.mxu0 0.0
        %2240 = vmatprep.subr.mxu0 0.0
        %2241 = vmatpush1.msra.mxu0 0.0
        %2242 = vmatprep.subr.mxu0 0.0
        %2243 = vmatpush1.msra.mxu0 0.0
        %2244 = vmatprep.subr.mxu0 0.0
        %2245 = vmatpush1.msra.mxu0 0.0
        %2246 = vmatprep.subr.mxu0 0.0
        %2247 = vmatpush1.msra.mxu0 0.0
        %2248 = vmatprep.subr.mxu0 0.0
        %2249 = vmatpush1.msra.mxu0 0.0
        %2250 = vmatprep.subr.mxu0 0.0
        %2251 = vmatpush1.msra.mxu0 0.0
        %2252 = vmatprep.subr.mxu0 0.0
        %2253 = vmatpush1.msra.mxu0 0.0
        %2254 = vmatprep.subr.mxu0 0.0
        %2255 = vmatpush1.msra.mxu0 0.0
        %2256 = vmatprep.subr.mxu0 0.0
        %2257 = vmatpush1.msra.mxu0 0.0
        %2258 = vmatprep.subr.mxu0 0.0
        %2259 = vmatpush1.msra.mxu0 0.0
        %2260 = vmatprep.subr.mxu0 0.0
        %2261 = vmatpush1.msra.mxu0 0.0
        %2262 = vmatprep.subr.mxu0 0.0
        %2263 = vmatpush1.msra.mxu0 0.0
        %2264 = vmatprep.subr.mxu0 0.0
        %2265 = vmatpush1.msra.mxu0 0.0
        %2266 = vmatprep.subr.mxu0 0.0
        %2267 = vmatpush1.msra.mxu0 0.0
        %2268 = vmatprep.subr.mxu0 0.0
        %2269 = vmatpush1.msra.mxu0 0.0
        %2270 = vmatprep.subr.mxu0 0.0
        %2271 = vmatpush1.msra.mxu0 0.0
        %2272 = vmatprep.mubr.f32.mxu0 0.0
        %2273 = vmatmul.mubr.f32.gmra.mrb[0].mxu0 %v588
        %v2274 = vpop.f32.mrb[0].mxu0
        %v2275 = vadd.f32 %v2206, %v2274
        %v2276 = vpop.f32.mrb[0].mxu0
        %2277 = vdwg.mxu0
        %v2279 = vsel %vm822, %v2109, 0
        %v2282 = vsel %vm822, %v2192, 0
        %2284 = vmatprep.subr.mxu0 0.0
        %2285 = vmatpush1.xpose.msra.mxu0 %v2282
        %2286 = vmatprep.subr.mxu0 0.0
        %2287 = vmatpush1.xpose.msra.mxu0 0.0
        %2288 = vmatprep.subr.mxu0 0.0
        %2289 = vmatpush1.xpose.msra.mxu0 0.0
        %2290 = vmatprep.subr.mxu0 0.0
        %2291 = vmatpush1.xpose.msra.mxu0 0.0
        %2292 = vmatprep.subr.mxu0 0.0
        %2293 = vmatpush1.xpose.msra.mxu0 0.0
        %2294 = vmatprep.subr.mxu0 0.0
        %2295 = vmatpush1.xpose.msra.mxu0 0.0
        %2296 = vmatprep.subr.mxu0 0.0
        %2297 = vmatpush1.xpose.msra.mxu0 0.0
        %2298 = vmatprep.subr.mxu0 0.0
        %2299 = vmatpush1.xpose.msra.mxu0 0.0
        %2300 = vmatprep.subr.mxu0 0.0
        %2301 = vmatpush1.xpose.msra.mxu0 0.0
        %2302 = vmatprep.subr.mxu0 0.0
        %2303 = vmatpush1.xpose.msra.mxu0 0.0
        %2304 = vmatprep.subr.mxu0 0.0
        %2305 = vmatpush1.xpose.msra.mxu0 0.0
        %2306 = vmatprep.subr.mxu0 0.0
        %2307 = vmatpush1.xpose.msra.mxu0 0.0
        %2308 = vmatprep.subr.mxu0 0.0
        %2309 = vmatpush1.xpose.msra.mxu0 0.0
        %2310 = vmatprep.subr.mxu0 0.0
        %2311 = vmatpush1.xpose.msra.mxu0 0.0
        %2312 = vmatprep.subr.mxu0 0.0
        %2313 = vmatpush1.xpose.msra.mxu0 0.0
        %2314 = vmatprep.subr.mxu0 0.0
        %2315 = vmatpush1.xpose.msra.mxu0 0.0
        %2316 = vmatprep.subr.mxu0 0.0
        %2317 = vmatpush1.xpose.msra.mxu0 0.0
        %2318 = vmatprep.subr.mxu0 0.0
        %2319 = vmatpush1.xpose.msra.mxu0 0.0
        %2320 = vmatprep.subr.mxu0 0.0
        %2321 = vmatpush1.xpose.msra.mxu0 0.0
        %2322 = vmatprep.subr.mxu0 0.0
        %2323 = vmatpush1.xpose.msra.mxu0 0.0
        %2324 = vmatprep.subr.mxu0 0.0
        %2325 = vmatpush1.xpose.msra.mxu0 0.0
        %2326 = vmatprep.subr.mxu0 0.0
        %2327 = vmatpush1.xpose.msra.mxu0 0.0
        %2328 = vmatprep.subr.mxu0 0.0
        %2329 = vmatpush1.xpose.msra.mxu0 0.0
        %2330 = vmatprep.subr.mxu0 0.0
        %2331 = vmatpush1.xpose.msra.mxu0 0.0
        %2332 = vmatprep.subr.mxu0 0.0
        %2333 = vmatpush1.xpose.msra.mxu0 0.0
        %2334 = vmatprep.subr.mxu0 0.0
        %2335 = vmatpush1.xpose.msra.mxu0 0.0
        %2336 = vmatprep.subr.mxu0 0.0
        %2337 = vmatpush1.xpose.msra.mxu0 0.0
        %2338 = vmatprep.subr.mxu0 0.0
        %2339 = vmatpush1.xpose.msra.mxu0 0.0
        %2340 = vmatprep.subr.mxu0 0.0
        %2341 = vmatpush1.xpose.msra.mxu0 0.0
        %2342 = vmatprep.subr.mxu0 0.0
        %2343 = vmatpush1.xpose.msra.mxu0 0.0
        %2344 = vmatprep.subr.mxu0 0.0
        %2345 = vmatpush1.xpose.msra.mxu0 0.0
        %2346 = vmatprep.subr.mxu0 0.0
        %2347 = vmatpush1.xpose.msra.mxu0 0.0
        %2348 = vmatprep.mubr.f32.mxu0 0.0
        %2349 = vmatmul.mubr.f32.gmra.mrb[0].mxu0 %v2279
        %v2350 = vpop.f32.mrb[0].mxu0
        %v2351 = vadd.f32 0.0, %v2350
        %v2352 = vpop.f32.mrb[0].mxu0
        %2353 = vdwg.mxu0
        %v2354 = vmul.f32 %v2351, 0.35355338
        %v2355 = vsel %vm822, %v2354, -inf
        %2356 = vmax.xlane.f32.xlu0 %v2355
        %v2357 = vpop.xlane.xlu0 %2356
        %v2358 = vsub.f32 %v2354, %v2357
        %v2359 = vmul.f32 %v2358, 1.442695
        %v2360 = vpow.pop %v2359
        %v2361 = vsel %vm822, %v2360, 0.0
        %2362 = vadd.xlane.f32.xlu0 %v2361
        %v2363 = vpop.xlane.xlu0 %2362
        %v2364 = vrcp.pop %v2363
        %v2365 = vmul.f32 %v2360, %v2364
        %v2367 = vsel %vm822, %v2365, 0
        %2369 = vmatprep.subr.mxu0 0.0
        %2370 = vmatpush1.msra.mxu0 %v2275
        %2371 = vmatprep.subr.mxu0 0.0
        %2372 = vmatpush1.msra.mxu0 0.0
        %2373 = vmatprep.subr.mxu0 0.0
        %2374 = vmatpush1.msra.mxu0 0.0
        %2375 = vmatprep.subr.mxu0 0.0
        %2376 = vmatpush1.msra.mxu0 0.0
        %2377 = vmatprep.subr.mxu0 0.0
        %2378 = vmatpush1.msra.mxu0 0.0
        %2379 = vmatprep.subr.mxu0 0.0
        %2380 = vmatpush1.msra.mxu0 0.0
        %2381 = vmatprep.subr.mxu0 0.0
        %2382 = vmatpush1.msra.mxu0 0.0
        %2383 = vmatprep.subr.mxu0 0.0
        %2384 = vmatpush1.msra.mxu0 0.0
        %2385 = vmatprep.subr.mxu0 0.0
        %2386 = vmatpush1.msra.mxu0 0.0
        %2387 = vmatprep.subr.mxu0 0.0
        %2388 = vmatpush1.msra.mxu0 0.0
        %2389 = vmatprep.subr.mxu0 0.0
        %2390 = vmatpush1.msra.mxu0 0.0
        %2391 = vmatprep.subr.mxu0 0.0
        %2392 = vmatpush1.msra.mxu0 0.0
        %2393 = vmatprep.subr.mxu0 0.0
        %2394 = vmatpush1.msra.mxu0 0.0
        %2395 = vmatprep.subr.mxu0 0.0
        %2396 = vmatpush1.msra.mxu0 0.0
        %2397 = vmatprep.subr.mxu0 0.0
        %2398 = vmatpush1.msra.mxu0 0.0
        %2399 = vmatprep.subr.mxu0 0.0
        %2400 = vmatpush1.msra.mxu0 0.0
        %2401 = vmatprep.subr.mxu0 0.0
        %2402 = vmatpush1.msra.mxu0 0.0
        %2403 = vmatprep.subr.mxu0 0.0
        %2404 = vmatpush1.msra.mxu0 0.0
        %2405 = vmatprep.subr.mxu0 0.0
        %2406 = vmatpush1.msra.mxu0 0.0
        %2407 = vmatprep.subr.mxu0 0.0
        %2408 = vmatpush1.msra.mxu0 0.0
        %2409 = vmatprep.subr.mxu0 0.0
        %2410 = vmatpush1.msra.mxu0 0.0
        %2411 = vmatprep.subr.mxu0 0.0
        %2412 = vmatpush1.msra.mxu0 0.0
        %2413 = vmatprep.subr.mxu0 0.0
        %2414 = vmatpush1.msra.mxu0 0.0
        %2415 = vmatprep.subr.mxu0 0.0
        %2416 = vmatpush1.msra.mxu0 0.0
        %2417 = vmatprep.subr.mxu0 0.0
        %2418 = vmatpush1.msra.mxu0 0.0
        %2419 = vmatprep.subr.mxu0 0.0
        %2420 = vmatpush1.msra.mxu0 0.0
        %2421 = vmatprep.subr.mxu0 0.0
        %2422 = vmatpush1.msra.mxu0 0.0
        %2423 = vmatprep.subr.mxu0 0.0
        %2424 = vmatpush1.msra.mxu0 0.0
        %2425 = vmatprep.subr.mxu0 0.0
        %2426 = vmatpush1.msra.mxu0 0.0
        %2427 = vmatprep.subr.mxu0 0.0
        %2428 = vmatpush1.msra.mxu0 0.0
        %2429 = vmatprep.subr.mxu0 0.0
        %2430 = vmatpush1.msra.mxu0 0.0
        %2431 = vmatprep.subr.mxu0 0.0
        %2432 = vmatpush1.msra.mxu0 0.0
        %2433 = vmatprep.mubr.f32.mxu0 0.0
        %2434 = vmatmul.mubr.f32.gmra.mrb[0].mxu0 %v2367
        %v2435 = vpop.f32.mrb[0].mxu0
        %v2436 = vadd.f32 0.0, %v2435
        %v2437 = vpop.f32.mrb[0].mxu0
        %2438 = vdwg.mxu0
        %s2439 = scalar_lea.vmem %s9, 24
        %v2440 = vld [vmem:[%s2439] sm:$0xff]
        %v2442 = vsel %vm822, %v2436, 0
        %2444 = vmatprep.subr.mxu0 0.0
        %2445 = vmatpush1.msra.mxu0 %v2440
        %2446 = vmatprep.subr.mxu0 0.0
        %2447 = vmatpush1.msra.mxu0 0.0
        %2448 = vmatprep.subr.mxu0 0.0
        %2449 = vmatpush1.msra.mxu0 0.0
        %2450 = vmatprep.subr.mxu0 0.0
        %2451 = vmatpush1.msra.mxu0 0.0
        %2452 = vmatprep.subr.mxu0 0.0
        %2453 = vmatpush1.msra.mxu0 0.0
        %2454 = vmatprep.subr.mxu0 0.0
        %2455 = vmatpush1.msra.mxu0 0.0
        %2456 = vmatprep.subr.mxu0 0.0
        %2457 = vmatpush1.msra.mxu0 0.0
        %2458 = vmatprep.subr.mxu0 0.0
        %2459 = vmatpush1.msra.mxu0 0.0
        %2460 = vmatprep.subr.mxu0 0.0
        %2461 = vmatpush1.msra.mxu0 0.0
        %2462 = vmatprep.subr.mxu0 0.0
        %2463 = vmatpush1.msra.mxu0 0.0
        %2464 = vmatprep.subr.mxu0 0.0
        %2465 = vmatpush1.msra.mxu0 0.0
        %2466 = vmatprep.subr.mxu0 0.0
        %2467 = vmatpush1.msra.mxu0 0.0
        %2468 = vmatprep.subr.mxu0 0.0
        %2469 = vmatpush1.msra.mxu0 0.0
        %2470 = vmatprep.subr.mxu0 0.0
        %2471 = vmatpush1.msra.mxu0 0.0
        %2472 = vmatprep.subr.mxu0 0.0
        %2473 = vmatpush1.msra.mxu0 0.0
        %2474 = vmatprep.subr.mxu0 0.0
        %2475 = vmatpush1.msra.mxu0 0.0
        %2476 = vmatprep.subr.mxu0 0.0
        %2477 = vmatpush1.msra.mxu0 0.0
        %2478 = vmatprep.subr.mxu0 0.0
        %2479 = vmatpush1.msra.mxu0 0.0
        %2480 = vmatprep.subr.mxu0 0.0
        %2481 = vmatpush1.msra.mxu0 0.0
        %2482 = vmatprep.subr.mxu0 0.0
        %2483 = vmatpush1.msra.mxu0 0.0
        %2484 = vmatprep.subr.mxu0 0.0
        %2485 = vmatpush1.msra.mxu0 0.0
        %2486 = vmatprep.subr.mxu0 0.0
        %2487 = vmatpush1.msra.mxu0 0.0
        %2488 = vmatprep.subr.mxu0 0.0
        %2489 = vmatpush1.msra.mxu0 0.0
        %2490 = vmatprep.subr.mxu0 0.0
        %2491 = vmatpush1.msra.mxu0 0.0
        %2492 = vmatprep.subr.mxu0 0.0
        %2493 = vmatpush1.msra.mxu0 0.0
        %2494 = vmatprep.subr.mxu0 0.0
        %2495 = vmatpush1.msra.mxu0 0.0
        %2496 = vmatprep.subr.mxu0 0.0
        %2497 = vmatpush1.msra.mxu0 0.0
        %2498 = vmatprep.subr.mxu0 0.0
        %2499 = vmatpush1.msra.mxu0 0.0
        %2500 = vmatprep.subr.mxu0 0.0
        %2501 = vmatpush1.msra.mxu0 0.0
        %2502 = vmatprep.subr.mxu0 0.0
        %2503 = vmatpush1.msra.mxu0 0.0
        %2504 = vmatprep.subr.mxu0 0.0
        %2505 = vmatpush1.msra.mxu0 0.0
        %2506 = vmatprep.subr.mxu0 0.0
        %2507 = vmatpush1.msra.mxu0 0.0
        %2508 = vmatprep.mubr.f32.mxu0 0.0
        %2509 = vmatmul.mubr.f32.gmra.mrb[0].mxu0 %v2442
        %v2510 = vpop.f32.mrb[0].mxu0
        %v2511 = vadd.f32 0.0, %v2510
        %v2512 = vpop.f32.mrb[0].mxu0
        %2513 = vdwg.mxu0
        %v2514 = vadd.f32 %v2028, %v2511
        %v2515 = vadd.f32 %v544, %v2514
        %v2516 = vld [vmem:[%s10] sm:$0x1]
        %v2518 = vlaneseq
        %v2519 = vshrl.u32 %v2518, 7
        %v2520 = vsub.s32 0, %v2519
        %v2521 = vrot.slane %v2516, %v2520
        %v2523 = vadd.f32 %v2515, %v2521
        %v2524 = vld [vmem:[%s11] sm:$0x1]
        %v2525 = vld [vmem:[%s12] sm:$0x1]
        %v2526 = vsel %vm547, %v2523, 0.0
        %2527 = vadd.xlane.f32.xlu0 %v2526
        %v2528 = vpop.xlane.xlu0 %2527
        %v2529 = vmul.f32 %v2528, %v551
        %v2530 = vsub.f32 %v2523, %v2529
        %v2531 = vmul.f32 %v2530, %v2530
        %v2532 = vsel %vm547, %v2531, 0.0
        %2533 = vadd.xlane.f32.xlu0 %v2532
        %v2534 = vpop.xlane.xlu0 %2533
        %v2535 = vmul.f32 %v2534, %v551
        %v2536 = vadd.f32 %v2535, 1e-05
        %v2537 = vrsqrt.pop %v2536
        %v2538 = vmul.f32 %v2530, %v2537
        %v2540 = vlaneseq
        %v2541 = vshrl.u32 %v2540, 7
        %v2542 = vsub.s32 0, %v2541
        %v2543 = vrot.slane %v2524, %v2542
        %v2545 = vmul.f32 %v2538, %v2543
        %v2547 = vlaneseq
        %v2548 = vshrl.u32 %v2547, 7
        %v2549 = vsub.s32 0, %v2548
        %v2550 = vrot.slane %v2525, %v2549
        %v2552 = vadd.f32 %v2545, %v2550
        %v2553 = vld [vmem:[%s13] sm:$0xff]
        %v2554 = vld [vmem:[%s13 + $0x8] sm:$0xff]
        %v2555 = vld [vmem:[%s13 + $0x10] sm:$0xff]
        %v2556 = vld [vmem:[%s13 + $0x18] sm:$0xff]
        %v2557 = vld [vmem:[%s14] sm:$0x1]
        %v2559 = vlaneseq
        %v2560 = vshrl.u32 %v2559, 7
        %v2561 = vsub.s32 0, %v2560
        %v2562 = vrot.slane %v2557, %v2561
        %v2565 = vsel %vm547, %v2552, 0
        %2567 = vmatprep.subr.mxu0 0.0
        %2568 = vmatpush1.msra.mxu0 %v2553
        %2569 = vmatprep.subr.mxu0 0.0
        %2570 = vmatpush1.msra.mxu0 %v2554
        %2571 = vmatprep.subr.mxu0 0.0
        %2572 = vmatpush1.msra.mxu0 %v2555
        %2573 = vmatprep.subr.mxu0 0.0
        %2574 = vmatpush1.msra.mxu0 %v2556
        %2575 = vmatprep.subr.mxu0 0.0
        %2576 = vmatpush1.msra.mxu0 0.0
        %2577 = vmatprep.subr.mxu0 0.0
        %2578 = vmatpush1.msra.mxu0 0.0
        %2579 = vmatprep.subr.mxu0 0.0
        %2580 = vmatpush1.msra.mxu0 0.0
        %2581 = vmatprep.subr.mxu0 0.0
        %2582 = vmatpush1.msra.mxu0 0.0
        %2583 = vmatprep.subr.mxu0 0.0
        %2584 = vmatpush1.msra.mxu0 0.0
        %2585 = vmatprep.subr.mxu0 0.0
        %2586 = vmatpush1.msra.mxu0 0.0
        %2587 = vmatprep.subr.mxu0 0.0
        %2588 = vmatpush1.msra.mxu0 0.0
        %2589 = vmatprep.subr.mxu0 0.0
        %2590 = vmatpush1.msra.mxu0 0.0
        %2591 = vmatprep.subr.mxu0 0.0
        %2592 = vmatpush1.msra.mxu0 0.0
        %2593 = vmatprep.subr.mxu0 0.0
        %2594 = vmatpush1.msra.mxu0 0.0
        %2595 = vmatprep.subr.mxu0 0.0
        %2596 = vmatpush1.msra.mxu0 0.0
        %2597 = vmatprep.subr.mxu0 0.0
        %2598 = vmatpush1.msra.mxu0 0.0
        %2599 = vmatprep.subr.mxu0 0.0
        %2600 = vmatpush1.msra.mxu0 0.0
        %2601 = vmatprep.subr.mxu0 0.0
        %2602 = vmatpush1.msra.mxu0 0.0
        %2603 = vmatprep.subr.mxu0 0.0
        %2604 = vmatpush1.msra.mxu0 0.0
        %2605 = vmatprep.subr.mxu0 0.0
        %2606 = vmatpush1.msra.mxu0 0.0
        %2607 = vmatprep.subr.mxu0 0.0
        %2608 = vmatpush1.msra.mxu0 0.0
        %2609 = vmatprep.subr.mxu0 0.0
        %2610 = vmatpush1.msra.mxu0 0.0
        %2611 = vmatprep.subr.mxu0 0.0
        %2612 = vmatpush1.msra.mxu0 0.0
        %2613 = vmatprep.subr.mxu0 0.0
        %2614 = vmatpush1.msra.mxu0 0.0
        %2615 = vmatprep.subr.mxu0 0.0
        %2616 = vmatpush1.msra.mxu0 0.0
        %2617 = vmatprep.subr.mxu0 0.0
        %2618 = vmatpush1.msra.mxu0 0.0
        %2619 = vmatprep.subr.mxu0 0.0
        %2620 = vmatpush1.msra.mxu0 0.0
        %2621 = vmatprep.subr.mxu0 0.0
        %2622 = vmatpush1.msra.mxu0 0.0
        %2623 = vmatprep.subr.mxu0 0.0
        %2624 = vmatpush1.msra.mxu0 0.0
        %2625 = vmatprep.subr.mxu0 0.0
        %2626 = vmatpush1.msra.mxu0 0.0
        %2627 = vmatprep.subr.mxu0 0.0
        %2628 = vmatpush1.msra.mxu0 0.0
        %2629 = vmatprep.subr.mxu0 0.0
        %2630 = vmatpush1.msra.mxu0 0.0
        %2631 = vmatprep.mubr.f32.mxu0 0.0
        %2632 = vmatmul.mubr.f32.gmra.mrb[0].mxu0 %v2565
        %v2633 = vpop.f32.mrb[0].mxu0
        %v2634 = vadd.f32 %v2562, %v2633
        %v2635 = vpop.f32.mrb[0].mxu0
        %2636 = vdwg.mxu0
        %v2637 = vmul.f32 %v2634, 0.5
        %v2638 = vmul.f32 %v2634, 0.70710677
        %vm2639 = vcmp.ge.f32.partialorder %v2638, 0.0
        %v2640 = vsel %vm2639, 1.0, -1.0
        %v2641 = vand.u32 2147483647, %v2638
        %v2642 = vmul.f32 %v2641, 0.3275911
        %v2643 = vadd.f32 %v2642, 1.0
        %v2644 = vrcp.pop %v2643
        %v2645 = vmul.f32 1.0, %v2644
        %v2646 = vmul.f32 %v2645, 1.0614054
        %v2647 = vadd.f32 %v2646, -1.4531521
        %v2648 = vmul.f32 %v2647, %v2645
        %v2649 = vadd.f32 %v2648, 1.4214138
        %v2650 = vmul.f32 %v2649, %v2645
        %v2651 = vadd.f32 %v2650, -0.28449672
        %v2652 = vmul.f32 %v2651, %v2645
        %v2653 = vadd.f32 %v2652, 0.2548296
        %v2654 = vmul.f32 %v2653, %v2645
        %v2655 = vsub.f32 0.0, %v2641
        %v2656 = vmul.f32 %v2655, %v2641
        %v2657 = vmul.f32 %v2656, 1.442695
        %v2658 = vpow.pop %v2657
        %v2659 = vmul.f32 %v2654, %v2658
        %v2660 = vsub.f32 1.0, %v2659
        %v2661 = vmul.f32 %v2640, %v2660
        %v2662 = vadd.f32 %v2661, 1.0
        %v2663 = vmul.f32 %v2637, %v2662
        %v2664 = vld [vmem:[%s15] sm:$0xff]
        %v2665 = vld [vmem:[%s15 + $0x8] sm:$0xff]
        %v2666 = vld [vmem:[%s15 + $0x10] sm:$0xff]
        %v2667 = vld [vmem:[%s15 + $0x18] sm:$0xff]
        %v2668 = vld [vmem:[%s15 + $0x20] sm:$0xff]
        %v2669 = vld [vmem:[%s15 + $0x28] sm:$0xff]
        %v2670 = vld [vmem:[%s15 + $0x30] sm:$0xff]
        %v2671 = vld [vmem:[%s15 + $0x38] sm:$0xff]
        %v2672 = vld [vmem:[%s15 + $0x40] sm:$0xff]
        %v2673 = vld [vmem:[%s15 + $0x48] sm:$0xff]
        %v2674 = vld [vmem:[%s15 + $0x50] sm:$0xff]
        %v2675 = vld [vmem:[%s15 + $0x58] sm:$0xff]
        %v2676 = vld [vmem:[%s15 + $0x60] sm:$0xff]
        %v2677 = vld [vmem:[%s15 + $0x68] sm:$0xff]
        %v2678 = vld [vmem:[%s15 + $0x70] sm:$0xff]
        %v2679 = vld [vmem:[%s15 + $0x78] sm:$0xff]
        %v2680 = vld [vmem:[%s16] sm:$0x1]
        %v2682 = vlaneseq
        %v2683 = vshrl.u32 %v2682, 7
        %v2684 = vsub.s32 0, %v2683
        %v2685 = vrot.slane %v2680, %v2684
        %2687 = vmatprep.subr.mxu0 0.0
        %2688 = vmatpush1.msra.mxu0 %v2664
        %2689 = vmatprep.subr.mxu0 0.0
        %2690 = vmatpush1.msra.mxu0 %v2665
        %2691 = vmatprep.subr.mxu0 0.0
        %2692 = vmatpush1.msra.mxu0 %v2666
        %2693 = vmatprep.subr.mxu0 0.0
        %2694 = vmatpush1.msra.mxu0 %v2667
        %2695 = vmatprep.subr.mxu0 0.0
        %2696 = vmatpush1.msra.mxu0 %v2668
        %2697 = vmatprep.subr.mxu0 0.0
        %2698 = vmatpush1.msra.mxu0 %v2669
        %2699 = vmatprep.subr.mxu0 0.0
        %2700 = vmatpush1.msra.mxu0 %v2670
        %2701 = vmatprep.subr.mxu0 0.0
        %2702 = vmatpush1.msra.mxu0 %v2671
        %2703 = vmatprep.subr.mxu0 0.0
        %2704 = vmatpush1.msra.mxu0 %v2672
        %2705 = vmatprep.subr.mxu0 0.0
        %2706 = vmatpush1.msra.mxu0 %v2673
        %2707 = vmatprep.subr.mxu0 0.0
        %2708 = vmatpush1.msra.mxu0 %v2674
        %2709 = vmatprep.subr.mxu0 0.0
        %2710 = vmatpush1.msra.mxu0 %v2675
        %2711 = vmatprep.subr.mxu0 0.0
        %2712 = vmatpush1.msra.mxu0 %v2676
        %2713 = vmatprep.subr.mxu0 0.0
        %2714 = vmatpush1.msra.mxu0 %v2677
        %2715 = vmatprep.subr.mxu0 0.0
        %2716 = vmatpush1.msra.mxu0 %v2678
        %2717 = vmatprep.subr.mxu0 0.0
        %2718 = vmatpush1.msra.mxu0 %v2679
        %2719 = vmatprep.subr.mxu0 0.0
        %2720 = vmatpush1.msra.mxu0 0.0
        %2721 = vmatprep.subr.mxu0 0.0
        %2722 = vmatpush1.msra.mxu0 0.0
        %2723 = vmatprep.subr.mxu0 0.0
        %2724 = vmatpush1.msra.mxu0 0.0
        %2725 = vmatprep.subr.mxu0 0.0
        %2726 = vmatpush1.msra.mxu0 0.0
        %2727 = vmatprep.subr.mxu0 0.0
        %2728 = vmatpush1.msra.mxu0 0.0
        %2729 = vmatprep.subr.mxu0 0.0
        %2730 = vmatpush1.msra.mxu0 0.0
        %2731 = vmatprep.subr.mxu0 0.0
        %2732 = vmatpush1.msra.mxu0 0.0
        %2733 = vmatprep.subr.mxu0 0.0
        %2734 = vmatpush1.msra.mxu0 0.0
        %2735 = vmatprep.subr.mxu0 0.0
        %2736 = vmatpush1.msra.mxu0 0.0
        %2737 = vmatprep.subr.mxu0 0.0
        %2738 = vmatpush1.msra.mxu0 0.0
        %2739 = vmatprep.subr.mxu0 0.0
        %2740 = vmatpush1.msra.mxu0 0.0
        %2741 = vmatprep.subr.mxu0 0.0
        %2742 = vmatpush1.msra.mxu0 0.0
        %2743 = vmatprep.subr.mxu0 0.0
        %2744 = vmatpush1.msra.mxu0 0.0
        %2745 = vmatprep.subr.mxu0 0.0
        %2746 = vmatpush1.msra.mxu0 0.0
        %2747 = vmatprep.subr.mxu0 0.0
        %2748 = vmatpush1.msra.mxu0 0.0
        %2749 = vmatprep.subr.mxu0 0.0
        %2750 = vmatpush1.msra.mxu0 0.0
        %2751 = vmatprep.mubr.f32.mxu0 0.0
        %2752 = vmatmul.mubr.f32.gmra.mrb[0].mxu0 %v2663
        %v2753 = vpop.f32.mrb[0].mxu0
        %v2754 = vadd.f32 %v2685, %v2753
        %v2755 = vpop.f32.mrb[0].mxu0
        %2756 = vdwg.mxu0
        %v2757 = vadd.f32 %v2523, %v2754
        %2758 = vst.msk [vmem:[%s539] sm:$0xff] %vm547, %v2757
        %s2759 = sand.u32 %s401, 1
        %s2760 = scalar_lea.sflag [#allocation3], %s2759
        %s2761 = sand.u32 %s401, 1
        %s2762 = smul.addr %s2761, 8
        %s2763 = scalar_lea.vmem [#allocation2], %s2762
        // Predicated region
        $region89: #{tpu_custom_call.1} parent=87 // pred_check
          %p2764 = pneg %p411
        $region90: #{tpu_custom_call.1} parent=87 // pred_check_branch
          %2766 = sbr.rel (%p2764) target = $region92
        $region91: #{tpu_custom_call.1} parent=87 // pred_region
          %s2768 = ssub.s32 128, 128
          %2769 = vsyncadd %s2760, %s2768
          %s2770 = smul.addr %s31, 128
          %s2771 = scalar_lea.hbm %s17, %s2770
          %s2773 = sshll.u32 %s2763, 4
          %s2774 = int_to_ptr.vmem [resolvable:$true] %s2773
          %2776 = dma.vmem_to_hbm [thread:$0]  %s2774, 128, %s2771, %s2760
        $region92: #{tpu_custom_call.1} parent=87 // pred_fallthru
          _
      $region88: #{tpu_custom_call.1} parent=5 // pred_fallthru
        _
      %p2777 = scmp.le.s32.totalorder 2, %s26
      // Predicated region
      $region93: #{tpu_custom_call.1} parent=5 // pred_check
        %p2778 = pneg %p2777
      $region94: #{tpu_custom_call.1} parent=5 // pred_check_branch
        %2780 = sbr.rel (%p2778) target = $region96
      $region95: #{tpu_custom_call.1} parent=5 // pred_region
        %s2781 = ssub.s32 %s26, 2
        // Predicated region
        $region97: #{tpu_custom_call.1} parent=95 // pred_check
          %p2782 = pneg %p417
        $region98: #{tpu_custom_call.1} parent=95 // pred_check_branch
          %2784 = sbr.rel (%p2782) target = $region100
        $region99: #{tpu_custom_call.1} parent=95 // pred_region
          %s2785 = sand.u32 %s402, 1
          %s2786 = scalar_lea.sflag [#allocation3], %s2785
          %s2787 = sand.u32 %s402, 1
          %s2788 = smul.addr %s2787, 8
          %s2789 = scalar_lea.vmem [#allocation2], %s2788
          %2790 = dma.done %s2786, 128
        $region100: #{tpu_custom_call.1} parent=95 // pred_fallthru
          _
      $region96: #{tpu_custom_call.1} parent=5 // pred_fallthru
        _
    $region6: #{tpu_custom_call.1} parent=1 // loop_footer
      %s30 = sadd.s32 1, %s26
    $region7: #{tpu_custom_call.1} parent=1 // loop_footer_branch
      %25 = sbr.rel target = $region3
    $region8: #{tpu_custom_call.1} parent=1 // loop_exit
      _
    %2791 = vsyncpa [#allocation3], 1
    %s2792 = scalar_lea.sflag [#allocation3], 1
    %2793 = vsyncpa %s2792, 1

</llo_original>
